<compile_context>
chip_gen: v7x
topology: tpu7x:2x2x1
jax: 0.10.0
libtpu: 0.0.40
codegen_flags: <defaults>
</compile_context>

<pallas_src>
import functools

import numpy as np
import jax
import jax.numpy as jnp
from jax import lax
from jax.experimental import pallas as pl
from jax.experimental.pallas import tpu as pltpu

BN_EPS = 1e-5
BN_SCALE = float(1.0 / np.sqrt(1.0 + BN_EPS))   # eval-mode BN with default stats


# ------------------------------ Pallas kernel -------------------------------

def _gla_kernel(x_ref, gates_ref, k_ref, w18_ref, wtap_ref, w5_ref, wout_ref,
                masks_ref, wts_ref, o_ref, *, shifts, needs_mask, rd, bb):
    """Processes `bb` batch elements per grid step.  x_ref block: (bb, C, HW)."""
    hw = x_ref.shape[2]

    # Grid-step-invariant loads, hoisted out of the (unrolled) batch loop.
    w18 = w18_ref[...]                     # (2*rd, C)   stacked lsa_conv1 | gsa_qkv
    wtap = wtap_ref[...]                   # (27*rd, rd) per-tap channel mixes
    w5 = w5_ref[...]                       # (4*rd, 1)   lsa_conv5
    wout = wout_ref[...]                   # (C, rd)     gsa conv_out
    w_id, w_lf, w_gf = wts_ref[0], wts_ref[1], wts_ref[2]
    ones_row = jnp.ones((1, hw), jnp.float32)

    for b in range(bb):                    # small static unrolled batch loop
        x = x_ref[b]                       # (C, HW) f32

        # Shared 1x1 convs: LSA conv1 -> rows [0, rd), GSA q=k=v -> rows [rd, 2rd).
        y8 = jnp.maximum(
            BN_SCALE * jnp.dot(w18, x, preferred_element_type=jnp.float32), 0.0)
        x1 = y8[:rd, :]                    # (rd, HW)
        qk = y8[rd:, :]                    # (rd, HW)

        # ------------- LSA: dilated 3x3 pyramid, shift-after-matmul ----------
        # mask * roll(W_tap @ x1) == W_tap @ (mask * roll(x1)) -> one MXU
        # dispatch for all 27 taps, then XLU rolls + VPU mask/accumulate.
        y_taps = jnp.dot(wtap, x1, preferred_element_type=jnp.float32)  # (27rd, HW)
        lsa_acc = jnp.sum(w5[:rd] * x1, axis=0, keepdims=True)          # conv5 . x1
        for d in range(3):                                              # dilations 1,2,3
            acc = None
            for t in range(9):                                          # 3x3 taps
                i = d * 9 + t
                piece = y_taps[i * rd:(i + 1) * rd, :]
                if shifts[i]:
                    piece = pltpu.roll(piece, shift=shifts[i], axis=1)
                if needs_mask[i]:
                    piece = piece * masks_ref[pl.ds(i, 1), :]
                acc = piece if acc is None else acc + piece
            branch = jnp.maximum(BN_SCALE * acc, 0.0)                   # conv{2,3,4}
            lsa_acc = lsa_acc + jnp.sum(w5[(d + 1) * rd:(d + 2) * rd] * branch,
                                        axis=0, keepdims=True)
        lsa = jnp.maximum(BN_SCALE * lsa_acc, 0.0)                      # (1, HW)

        # ------------- GSA: softmax(q^T k) v, normalised after PV ------------
        qk16 = qk.astype(jnp.bfloat16)
        s = lax.dot_general(qk16, qk16, (((0,), (0,)), ((), ())),
                            preferred_element_type=jnp.float32)         # (HW, HW)
        p16 = jnp.exp(s - jnp.max(s, axis=-1, keepdims=True)).astype(jnp.bfloat16)
        # appended ones-row -> per-row softmax denominator lands on the lane axis
        v_aug = jnp.concatenate([qk, ones_row], axis=0).astype(jnp.bfloat16)
        nd = lax.dot_general(v_aug, p16, (((1,), (1,)), ((), ())),
                             preferred_element_type=jnp.float32)        # (rd+1, HW)
        attn_v = nd[:rd, :] / nd[rd:rd + 1, :]                          # (rd, HW)
        gsa = jnp.maximum(
            BN_SCALE * jnp.dot(wout, attn_v, preferred_element_type=jnp.float32),
            0.0)                                                        # (C, HW)

        # ------------- GCA: softmax(q outer k) @ x ----------------------------
        g = gates_ref[b]                   # (C, 2): col 0 = LCA gate, col 1 = GCA q
        lca = g[:, 0:1]                    # (C, 1)
        logits = g[:, 1:2] * k_ref[b]      # (C, 1) * (1, C) VPU outer product
        pe = jnp.exp(logits - jnp.max(logits, axis=-1, keepdims=True))
        cattn = pe / jnp.sum(pe, axis=-1, keepdims=True)                # (C, C)
        gca = jnp.dot(cattn, x, preferred_element_type=jnp.float32)     # (C, HW)

        # ------------- gating + learned softmax-weighted sum ------------------
        lf = lca * x + x
        lf = lsa * lf + lf
        gf = gca * x
        gf = gsa * gf + gf
        o_ref[b] = w_id * x + w_lf * lf + w_gf * gf


# ------------------------------- host helpers --------------------------------

@functools.lru_cache(maxsize=None)
def _roll_like_jnp():
    """True iff pltpu.roll(x, s, axis)[p] == x[(p - s) % L] (jnp.roll semantics)."""
    def probe(x_ref, o_ref):
        o_ref[...] = pltpu.roll(x_ref[...], shift=1, axis=1)
    try:
        x = jnp.arange(8 * 128, dtype=jnp.float32).reshape(8, 128)
        y = pl.pallas_call(
            probe, out_shape=jax.ShapeDtypeStruct((8, 128), jnp.float32))(x)
        return bool(jnp.array_equal(y, jnp.roll(x, 1, axis=1)))
    except Exception:
        return True   # assume jnp.roll semantics if the probe cannot run


def _make_tap_tables(h, w, dilations=(1, 2, 3)):
    """Border masks, lane-roll amounts and mask-needed flags for the 27 taps."""
    hw = h * w
    sign = -1 if _roll_like_jnp() else 1
    pos = np.arange(hw)
    rows, cols = pos // w, pos % w
    masks, shifts, needs_mask = [], [], []
    for d in dilations:
        for kh in range(3):
            for kw in range(3):
                dh, dw = (kh - 1) * d, (kw - 1) * d
                valid = ((rows + dh >= 0) & (rows + dh < h)
                         & (cols + dw >= 0) & (cols + dw < w))
                masks.append(valid.astype(np.float32))
                shifts.append(int((sign * (dh * w + dw)) % hw))
                needs_mask.append(not bool(valid.all()))
    return jnp.asarray(np.stack(masks)), tuple(shifts), tuple(needs_mask)


def _largest_divisor_at_most(n, cap):
    for d in range(max(1, min(cap, n)), 0, -1):
        if n % d == 0:
            return d
    return 1


def _pick_batch_block(n):
    """Batches per grid step: one step on single-TC chips (v5e/v6e), >=2 steps
    kept on 2-TensorCore chips (v7x) so both cores get 'parallel' work."""
    if n <= 1:
        return 1
    try:
        kind = jax.devices()[0].device_kind
    except Exception:
        kind = ""
    if "7" in kind:                                   # v7x family: 2 TCs / chip
        return _largest_divisor_at_most(n, min(8, max(1, n // 2)))
    return _largest_divisor_at_most(n, 8)             # single TC: 1 (or few) steps


def conv1d_bn_sigmoid(m, w3, bias):
    # TODO(synk): kernel-size-3 Conv1d on the (N, C) channel-mean vector is tiny
    # scalar-scale work; kept in plain JAX glue (XLA fuses it) rather than a
    # dedicated Pallas launch.
    mp = jnp.pad(m, ((0, 0), (1, 1)))
    y = w3[0] * mp[:, :-2] + w3[1] * mp[:, 1:-1] + w3[2] * mp[:, 2:]
    if bias is not None:
        y = y + bias
    y = y * BN_SCALE                                  # BatchNorm1d(1), eval mode
    return jax.nn.sigmoid(y)


def init_params(key, channels):
    rd = channels // 8
    ks = jax.random.split(key, 12)

    def w(k, shape, scale=0.1):
        return scale * jax.random.normal(k, shape, jnp.float32)

    return {
        "lca_w": w(ks[0], (3,)),                   # Conv1d(1,1,3) weight
        "lca_b": w(ks[1], ()),                     # Conv1d bias
        "gca_q_w": w(ks[2], (3,)),                 # Conv1d(1,1,3), no bias
        "gca_k_w": w(ks[3], (3,)),
        "lsa_conv1_w": w(ks[4], (rd, channels)),   # 1x1 conv (out, in)
        "lsa_conv2_w": w(ks[5], (rd, rd, 3, 3)),   # dilation 1
        "lsa_conv3_w": w(ks[6], (rd, rd, 3, 3)),   # dilation 2
        "lsa_conv4_w": w(ks[7], (rd, rd, 3, 3)),   # dilation 3
        "lsa_conv5_w": w(ks[8], (1, 4 * rd)),
        "gsa_qkv_w": w(ks[9], (rd, channels)),     # shared conv_query/key/value
        "gsa_out_w": w(ks[10], (channels, rd)),
        "weights": jnp.ones((3,), jnp.float32),    # nn.Parameter(torch.ones(3))
    }


# --------------------------------- forward -----------------------------------

def gla_forward(x, params, batch_block=None):
    n, c, h, w = x.shape
    hw = h * w
    rd = c // 8
    bb = batch_block if batch_block is not None else _pick_batch_block(n)
    if n % bb:
        bb = 1
    x_flat = x.reshape(n, c, hw).astype(jnp.float32)

    # Tiny per-image scalar front end (channel means -> k=3 conv1d -> BN -> sigmoid);
    # XLA fuses this with the surrounding reshapes.
    m = jnp.mean(x_flat, axis=-1)                                       # (N, C)
    lca = conv1d_bn_sigmoid(m, params["lca_w"], params["lca_b"])        # (N, C)
    q = conv1d_bn_sigmoid(m, params["gca_q_w"], None)                   # (N, C)
    k = conv1d_bn_sigmoid(m, params["gca_k_w"], None)                   # (N, C)
    gates = jnp.stack([lca, q], axis=-1)                                # (N, C, 2)
    wts = jax.nn.softmax(params["weights"]).astype(jnp.float32)         # (3,)

    masks, shifts, needs_mask = _make_tap_tables(h, w)                  # (27, HW)
    # stacked 1x1 weights: [lsa_conv1 ; gsa q/k/v]  -> one M=2*rd matmul
    w18 = jnp.concatenate([params["lsa_conv1_w"], params["gsa_qkv_w"]], axis=0)
    # per-tap channel-mix weights, tap order = (dilation, kh, kw)
    wtap = jnp.concatenate(
        [params[name][:, :, kh, kw]
         for name in ("lsa_conv2_w", "lsa_conv3_w", "lsa_conv4_w")
         for kh in range(3) for kw in range(3)], axis=0)                # (27rd, rd)
    w5 = params["lsa_conv5_w"].reshape(4 * rd, 1)

    kernel = functools.partial(_gla_kernel, shifts=shifts,
                               needs_mask=needs_mask, rd=rd, bb=bb)
    out_flat = pl.pallas_call(
        kernel,
        out_shape=jax.ShapeDtypeStruct((n, c, hw), jnp.float32),
        grid=(n // bb,),
        in_specs=[
            pl.BlockSpec((bb, c, hw), lambda i: (i, 0, 0)),      # x (batch block)
            pl.BlockSpec((bb, c, 2), lambda i: (i, 0, 0)),       # [LCA gate, GCA q]
            pl.BlockSpec((bb, 1, c), lambda i: (i, 0, 0)),       # GCA key
            pl.BlockSpec((2 * rd, c), lambda i: (0, 0)),         # lsa_conv1 | gsa_qkv
            pl.BlockSpec((27 * rd, rd), lambda i: (0, 0)),       # dilated-tap mixes
            pl.BlockSpec((4 * rd, 1), lambda i: (0, 0)),         # lsa_conv5
            pl.BlockSpec((c, rd), lambda i: (0, 0)),             # gsa conv_out
            pl.BlockSpec((27, hw), lambda i: (0, 0)),            # tap border masks
            pl.BlockSpec(memory_space=pltpu.MemorySpace.SMEM),   # softmax(weights)
        ],
        out_specs=pl.BlockSpec((bb, c, hw), lambda i: (i, 0, 0)),
        compiler_params=pltpu.CompilerParams(
            dimension_semantics=("parallel",)),
    )(x_flat, gates, k.reshape(n, 1, c), w18, wtap, w5,
      params["gsa_out_w"], masks, wts)
    return out_flat.reshape(n, c, h, w)


# ----------------------------------- main -------------------------------------

if __name__ == "__main__":
    key = jax.random.PRNGKey(0)
    k_x, k_p = jax.random.split(key)
    N, C, H, W = 2, 32, 16, 16          # rd = C // 8 = 4, H*W = 256
    x = jax.random.normal(k_x, (N, C, H, W), jnp.float32)
    params = init_params(k_p, C)

    _roll_like_jnp()                    # run the roll-direction probe outside jit

    out = jax.jit(gla_forward)(x, params)
    out = jax.block_until_ready(out)
    assert out.shape == (N, C, H, W)
    assert bool(jnp.all(jnp.isfinite(out)))
    print("KERNEL_OK")
</pallas_src>

<mosaic_0001>
module attributes {stable_mosaic.version = 11 : i64} {
  func.func @probe(%arg0: memref<8x128xf32, #tpu.memory_space<vmem>>, %arg1: memref<8x128xf32, #tpu.memory_space<vmem>>) attributes {dimension_semantics = [], scalar_prefetch = 0 : i64, scratch_operands = 0 : i64, tpu.core_type = #tpu.core_type<tc>} {
    %c0 = arith.constant 0 : index
    %c0_0 = arith.constant 0 : index
    %0 = vector.load %arg0[%c0, %c0_0] : memref<8x128xf32, #tpu.memory_space<vmem>>, vector<8x128xf32>
    %c1_i32 = arith.constant 1 : i32
    %1 = tpu.dynamic_rotate %0 by %c1_i32 dim 1 : vector<8x128xf32>, i32 -> vector<8x128xf32>
    %c0_1 = arith.constant 0 : index
    %c0_2 = arith.constant 0 : index
    %2 = vector.load %arg1[%c0_1, %c0_2] : memref<8x128xf32, #tpu.memory_space<vmem>>, vector<8x128xf32>
    tpu.vector_store %arg1[%c0_1, %c0_2], %1 {strides = array<i32>} : memref<8x128xf32, #tpu.memory_space<vmem>>, vector<8x128xf32>,
    return
  }
}

module attributes {stable_mosaic.version = 11 : i64} {
  func.func @_gla_kernel(%arg0: i32, %arg1: memref<2x32x256xf32, #tpu.memory_space<vmem>>, %arg2: memref<2x32x2xf32, #tpu.memory_space<vmem>>, %arg3: memref<2x1x32xf32, #tpu.memory_space<vmem>>, %arg4: memref<8x32xf32, #tpu.memory_space<vmem>>, %arg5: memref<108x4xf32, #tpu.memory_space<vmem>>, %arg6: memref<16x1xf32, #tpu.memory_space<vmem>>, %arg7: memref<32x4xf32, #tpu.memory_space<vmem>>, %arg8: memref<27x256xf32, #tpu.memory_space<vmem>>, %arg9: memref<3xf32, #tpu.memory_space<smem>>, %arg10: memref<2x32x256xf32, #tpu.memory_space<vmem>>) attributes {dimension_semantics = [#tpu.dimension_semantics<parallel>], iteration_bounds = array<i64: 1>, scalar_prefetch = 0 : i64, scratch_operands = 0 : i64, tpu.core_type = #tpu.core_type<tc>, window_params = [{transform_indices = @transform_0, window_bounds = array<i64: 2, 32, 256>}, {transform_indices = @transform_1, window_bounds = array<i64: 2, 32, 2>}, {transform_indices = @transform_2, window_bounds = array<i64: 2, 1, 32>}, {pipeline_mode = #tpu.pipeline_mode<synchronous>, transform_indices = @transform_3, window_bounds = array<i64: 8, 32>}, {pipeline_mode = #tpu.pipeline_mode<synchronous>, transform_indices = @transform_4, window_bounds = array<i64: 108, 4>}, {pipeline_mode = #tpu.pipeline_mode<synchronous>, transform_indices = @transform_5, window_bounds = array<i64: 16, 1>}, {pipeline_mode = #tpu.pipeline_mode<synchronous>, transform_indices = @transform_6, window_bounds = array<i64: 32, 4>}, {pipeline_mode = #tpu.pipeline_mode<synchronous>, transform_indices = @transform_7, window_bounds = array<i64: 27, 256>}, {transform_indices = @transform_8, window_bounds = array<i64: 3>}, {transform_indices = @transform_9, window_bounds = array<i64: 2, 32, 256>}]} {
    %c0 = arith.constant 0 : index
    %c0_0 = arith.constant 0 : index
    %0 = vector.load %arg4[%c0, %c0_0] : memref<8x32xf32, #tpu.memory_space<vmem>>, vector<8x32xf32>
    %c0_1 = arith.constant 0 : index
    %c0_2 = arith.constant 0 : index
    %1 = vector.load %arg5[%c0_1, %c0_2] : memref<108x4xf32, #tpu.memory_space<vmem>>, vector<108x4xf32>
    %c0_3 = arith.constant 0 : index
    %c0_4 = arith.constant 0 : index
    %2 = vector.load %arg6[%c0_3, %c0_4] : memref<16x1xf32, #tpu.memory_space<vmem>>, vector<16x1xf32>
    %c0_5 = arith.constant 0 : index
    %c0_6 = arith.constant 0 : index
    %3 = vector.load %arg7[%c0_5, %c0_6] : memref<32x4xf32, #tpu.memory_space<vmem>>, vector<32x4xf32>
    %c0_7 = arith.constant 0 : index
    %4 = memref.load %arg9[%c0_7] : memref<3xf32, #tpu.memory_space<smem>>
    %c1 = arith.constant 1 : index
    %5 = memref.load %arg9[%c1] : memref<3xf32, #tpu.memory_space<smem>>
    %c2 = arith.constant 2 : index
    %6 = memref.load %arg9[%c2] : memref<3xf32, #tpu.memory_space<smem>>
    %cst = arith.constant 1.000000e+00 : f32
    %7 = vector.broadcast %cst : f32 to vector<1x256xf32>
    %c0_8 = arith.constant 0 : index
    %c0_9 = arith.constant 0 : index
    %c0_10 = arith.constant 0 : index
    %8 = vector.load %arg1[%c0_8, %c0_9, %c0_10] : memref<2x32x256xf32, #tpu.memory_space<vmem>>, vector<1x32x256xf32>
    %9 = vector.shape_cast %8 : vector<1x32x256xf32> to vector<32x256xf32>
    %cst_11 = arith.constant dense<0.000000e+00> : vector<8x256xf32>
    %10 = tpu.matmul %0, %9, %cst_11 {dimension_numbers = #tpu.dot_dimension_numbers<[1], [0], [0], [1], [0, 0, 1, 1], [], []>} : vector<8x32xf32>, vector<32x256xf32>, vector<8x256xf32> -> vector<8x256xf32>
    %cst_12 = arith.constant 0.999994993 : f32
    %11 = vector.broadcast %cst_12 : f32 to vector<8x256xf32>
    %12 = arith.mulf %11, %10 : vector<8x256xf32>
    %cst_13 = arith.constant 0.000000e+00 : f32
    %13 = vector.broadcast %cst_13 : f32 to vector<8x256xf32>
    %14 = arith.maximumf %12, %13 : vector<8x256xf32>
    %15 = vector.extract_strided_slice %14 {offsets = [0, 0], sizes = [4, 256], strides = [1, 1]} : vector<8x256xf32> to vector<4x256xf32>
    %16 = vector.extract_strided_slice %14 {offsets = [4, 0], sizes = [4, 256], strides = [1, 1]} : vector<8x256xf32> to vector<4x256xf32>
    %cst_14 = arith.constant dense<0.000000e+00> : vector<108x256xf32>
    %17 = tpu.matmul %1, %15, %cst_14 {dimension_numbers = #tpu.dot_dimension_numbers<[1], [0], [0], [1], [0, 0, 1, 1], [], []>} : vector<108x4xf32>, vector<4x256xf32>, vector<108x256xf32> -> vector<108x256xf32>
    %18 = vector.extract_strided_slice %2 {offsets = [0, 0], sizes = [4, 1], strides = [1, 1]} : vector<16x1xf32> to vector<4x1xf32>
    %19 = vector.broadcast %18 : vector<4x1xf32> to vector<4x256xf32>
    %20 = arith.mulf %19, %15 : vector<4x256xf32>
    %cst_15 = arith.constant dense<0.000000e+00> : vector<256xf32>
    %21 = vector.multi_reduction <add>, %20, %cst_15 [0] : vector<4x256xf32> to vector<256xf32>
    %22 = vector.shape_cast %21 : vector<256xf32> to vector<1x256xf32>
    %23 = vector.extract_strided_slice %17 {offsets = [0, 0], sizes = [4, 256], strides = [1, 1]} : vector<108x256xf32> to vector<4x256xf32>
    %c17_i32 = arith.constant 17 : i32
    %24 = tpu.dynamic_rotate %23 by %c17_i32 dim 1 : vector<4x256xf32>, i32 -> vector<4x256xf32>
    %c0_16 = arith.constant 0 : index
    %c0_17 = arith.constant 0 : index
    %25 = vector.load %arg8[%c0_16, %c0_17] : memref<27x256xf32, #tpu.memory_space<vmem>>, vector<1x256xf32>
    %26 = vector.broadcast %25 : vector<1x256xf32> to vector<4x256xf32>
    %27 = arith.mulf %24, %26 : vector<4x256xf32>
    %28 = vector.extract_strided_slice %17 {offsets = [4, 0], sizes = [4, 256], strides = [1, 1]} : vector<108x256xf32> to vector<4x256xf32>
    %c16_i32 = arith.constant 16 : i32
    %29 = tpu.dynamic_rotate %28 by %c16_i32 dim 1 : vector<4x256xf32>, i32 -> vector<4x256xf32>
    %c1_18 = arith.constant 1 : index
    %c0_19 = arith.constant 0 : index
    %30 = vector.load %arg8[%c1_18, %c0_19] : memref<27x256xf32, #tpu.memory_space<vmem>>, vector<1x256xf32>
    %31 = vector.broadcast %30 : vector<1x256xf32> to vector<4x256xf32>
    %32 = arith.mulf %29, %31 : vector<4x256xf32>
    %33 = arith.addf %27, %32 : vector<4x256xf32>
    %34 = vector.extract_strided_slice %17 {offsets = [8, 0], sizes = [4, 256], strides = [1, 1]} : vector<108x256xf32> to vector<4x256xf32>
    %c15_i32 = arith.constant 15 : i32
    %35 = tpu.dynamic_rotate %34 by %c15_i32 dim 1 : vector<4x256xf32>, i32 -> vector<4x256xf32>
    %c2_20 = arith.constant 2 : index
    %c0_21 = arith.constant 0 : index
    %36 = vector.load %arg8[%c2_20, %c0_21] : memref<27x256xf32, #tpu.memory_space<vmem>>, vector<1x256xf32>
    %37 = vector.broadcast %36 : vector<1x256xf32> to vector<4x256xf32>
    %38 = arith.mulf %35, %37 : vector<4x256xf32>
    %39 = arith.addf %33, %38 : vector<4x256xf32>
    %40 = vector.extract_strided_slice %17 {offsets = [12, 0], sizes = [4, 256], strides = [1, 1]} : vector<108x256xf32> to vector<4x256xf32>
    %c1_i32 = arith.constant 1 : i32
    %41 = tpu.dynamic_rotate %40 by %c1_i32 dim 1 : vector<4x256xf32>, i32 -> vector<4x256xf32>
    %c3 = arith.constant 3 : index
    %c0_22 = arith.constant 0 : index
    %42 = vector.load %arg8[%c3, %c0_22] : memref<27x256xf32, #tpu.memory_space<vmem>>, vector<1x256xf32>
    %43 = vector.broadcast %42 : vector<1x256xf32> to vector<4x256xf32>
    %44 = arith.mulf %41, %43 : vector<4x256xf32>
    %45 = arith.addf %39, %44 : vector<4x256xf32>
    %46 = vector.extract_strided_slice %17 {offsets = [16, 0], sizes = [4, 256], strides = [1, 1]} : vector<108x256xf32> to vector<4x256xf32>
    %47 = arith.addf %45, %46 : vector<4x256xf32>
    %48 = vector.extract_strided_slice %17 {offsets = [20, 0], sizes = [4, 256], strides = [1, 1]} : vector<108x256xf32> to vector<4x256xf32>
    %c255_i32 = arith.constant 255 : i32
    %49 = tpu.dynamic_rotate %48 by %c255_i32 dim 1 : vector<4x256xf32>, i32 -> vector<4x256xf32>
    %c5 = arith.constant 5 : index
    %c0_23 = arith.constant 0 : index
    %50 = vector.load %arg8[%c5, %c0_23] : memref<27x256xf32, #tpu.memory_space<vmem>>, vector<1x256xf32>
    %51 = vector.broadcast %50 : vector<1x256xf32> to vector<4x256xf32>
    %52 = arith.mulf %49, %51 : vector<4x256xf32>
    %53 = arith.addf %47, %52 : vector<4x256xf32>
    %54 = vector.extract_strided_slice %17 {offsets = [24, 0], sizes = [4, 256], strides = [1, 1]} : vector<108x256xf32> to vector<4x256xf32>
    %c241_i32 = arith.constant 241 : i32
    %55 = tpu.dynamic_rotate %54 by %c241_i32 dim 1 : vector<4x256xf32>, i32 -> vector<4x256xf32>
    %c6 = arith.constant 6 : index
    %c0_24 = arith.constant 0 : index
    %56 = vector.load %arg8[%c6, %c0_24] : memref<27x256xf32, #tpu.memory_space<vmem>>, vector<1x256xf32>
    %57 = vector.broadcast %56 : vector<1x256xf32> to vector<4x256xf32>
    %58 = arith.mulf %55, %57 : vector<4x256xf32>
    %59 = arith.addf %53, %58 : vector<4x256xf32>
    %60 = vector.extract_strided_slice %17 {offsets = [28, 0], sizes = [4, 256], strides = [1, 1]} : vector<108x256xf32> to vector<4x256xf32>
    %c240_i32 = arith.constant 240 : i32
    %61 = tpu.dynamic_rotate %60 by %c240_i32 dim 1 : vector<4x256xf32>, i32 -> vector<4x256xf32>
    %c7 = arith.constant 7 : index
    %c0_25 = arith.constant 0 : index
    %62 = vector.load %arg8[%c7, %c0_25] : memref<27x256xf32, #tpu.memory_space<vmem>>, vector<1x256xf32>
    %63 = vector.broadcast %62 : vector<1x256xf32> to vector<4x256xf32>
    %64 = arith.mulf %61, %63 : vector<4x256xf32>
    %65 = arith.addf %59, %64 : vector<4x256xf32>
    %66 = vector.extract_strided_slice %17 {offsets = [32, 0], sizes = [4, 256], strides = [1, 1]} : vector<108x256xf32> to vector<4x256xf32>
    %c239_i32 = arith.constant 239 : i32
    %67 = tpu.dynamic_rotate %66 by %c239_i32 dim 1 : vector<4x256xf32>, i32 -> vector<4x256xf32>
    %c8 = arith.constant 8 : index
    %c0_26 = arith.constant 0 : index
    %68 = vector.load %arg8[%c8, %c0_26] : memref<27x256xf32, #tpu.memory_space<vmem>>, vector<1x256xf32>
    %69 = vector.broadcast %68 : vector<1x256xf32> to vector<4x256xf32>
    %70 = arith.mulf %67, %69 : vector<4x256xf32>
    %71 = arith.addf %65, %70 : vector<4x256xf32>
    %cst_27 = arith.constant 0.999994993 : f32
    %72 = vector.broadcast %cst_27 : f32 to vector<4x256xf32>
    %73 = arith.mulf %72, %71 : vector<4x256xf32>
    %cst_28 = arith.constant 0.000000e+00 : f32
    %74 = vector.broadcast %cst_28 : f32 to vector<4x256xf32>
    %75 = arith.maximumf %73, %74 : vector<4x256xf32>
    %76 = vector.extract_strided_slice %2 {offsets = [4, 0], sizes = [4, 1], strides = [1, 1]} : vector<16x1xf32> to vector<4x1xf32>
    %77 = vector.broadcast %76 : vector<4x1xf32> to vector<4x256xf32>
    %78 = arith.mulf %77, %75 : vector<4x256xf32>
    %cst_29 = arith.constant dense<0.000000e+00> : vector<256xf32>
    %79 = vector.multi_reduction <add>, %78, %cst_29 [0] : vector<4x256xf32> to vector<256xf32>
    %80 = vector.shape_cast %79 : vector<256xf32> to vector<1x256xf32>
    %81 = arith.addf %22, %80 : vector<1x256xf32>
    %82 = vector.extract_strided_slice %17 {offsets = [36, 0], sizes = [4, 256], strides = [1, 1]} : vector<108x256xf32> to vector<4x256xf32>
    %c34_i32 = arith.constant 34 : i32
    %83 = tpu.dynamic_rotate %82 by %c34_i32 dim 1 : vector<4x256xf32>, i32 -> vector<4x256xf32>
    %c9 = arith.constant 9 : index
    %c0_30 = arith.constant 0 : index
    %84 = vector.load %arg8[%c9, %c0_30] : memref<27x256xf32, #tpu.memory_space<vmem>>, vector<1x256xf32>
    %85 = vector.broadcast %84 : vector<1x256xf32> to vector<4x256xf32>
    %86 = arith.mulf %83, %85 : vector<4x256xf32>
    %87 = vector.extract_strided_slice %17 {offsets = [40, 0], sizes = [4, 256], strides = [1, 1]} : vector<108x256xf32> to vector<4x256xf32>
    %c32_i32 = arith.constant 32 : i32
    %88 = tpu.dynamic_rotate %87 by %c32_i32 dim 1 : vector<4x256xf32>, i32 -> vector<4x256xf32>
    %c10 = arith.constant 10 : index
    %c0_31 = arith.constant 0 : index
    %89 = vector.load %arg8[%c10, %c0_31] : memref<27x256xf32, #tpu.memory_space<vmem>>, vector<1x256xf32>
    %90 = vector.broadcast %89 : vector<1x256xf32> to vector<4x256xf32>
    %91 = arith.mulf %88, %90 : vector<4x256xf32>
    %92 = arith.addf %86, %91 : vector<4x256xf32>
    %93 = vector.extract_strided_slice %17 {offsets = [44, 0], sizes = [4, 256], strides = [1, 1]} : vector<108x256xf32> to vector<4x256xf32>
    %c30_i32 = arith.constant 30 : i32
    %94 = tpu.dynamic_rotate %93 by %c30_i32 dim 1 : vector<4x256xf32>, i32 -> vector<4x256xf32>
    %c11 = arith.constant 11 : index
    %c0_32 = arith.constant 0 : index
    %95 = vector.load %arg8[%c11, %c0_32] : memref<27x256xf32, #tpu.memory_space<vmem>>, vector<1x256xf32>
    %96 = vector.broadcast %95 : vector<1x256xf32> to vector<4x256xf32>
    %97 = arith.mulf %94, %96 : vector<4x256xf32>
    %98 = arith.addf %92, %97 : vector<4x256xf32>
    %99 = vector.extract_strided_slice %17 {offsets = [48, 0], sizes = [4, 256], strides = [1, 1]} : vector<108x256xf32> to vector<4x256xf32>
    %c2_i32 = arith.constant 2 : i32
    %100 = tpu.dynamic_rotate %99 by %c2_i32 dim 1 : vector<4x256xf32>, i32 -> vector<4x256xf32>
    %c12 = arith.constant 12 : index
    %c0_33 = arith.constant 0 : index
    %101 = vector.load %arg8[%c12, %c0_33] : memref<27x256xf32, #tpu.memory_space<vmem>>, vector<1x256xf32>
    %102 = vector.broadcast %101 : vector<1x256xf32> to vector<4x256xf32>
    %103 = arith.mulf %100, %102 : vector<4x256xf32>
    %104 = arith.addf %98, %103 : vector<4x256xf32>
    %105 = vector.extract_strided_slice %17 {offsets = [52, 0], sizes = [4, 256], strides = [1, 1]} : vector<108x256xf32> to vector<4x256xf32>
    %106 = arith.addf %104, %105 : vector<4x256xf32>
    %107 = vector.extract_strided_slice %17 {offsets = [56, 0], sizes = [4, 256], strides = [1, 1]} : vector<108x256xf32> to vector<4x256xf32>
    %c254_i32 = arith.constant 254 : i32
    %108 = tpu.dynamic_rotate %107 by %c254_i32 dim 1 : vector<4x256xf32>, i32 -> vector<4x256xf32>
    %c14 = arith.constant 14 : index
    %c0_34 = arith.constant 0 : index
    %109 = vector.load %arg8[%c14, %c0_34] : memref<27x256xf32, #tpu.memory_space<vmem>>, vector<1x256xf32>
    %110 = vector.broadcast %109 : vector<1x256xf32> to vector<4x256xf32>
    %111 = arith.mulf %108, %110 : vector<4x256xf32>
    %112 = arith.addf %106, %111 : vector<4x256xf32>
    %113 = vector.extract_strided_slice %17 {offsets = [60, 0], sizes = [4, 256], strides = [1, 1]} : vector<108x256xf32> to vector<4x256xf32>
    %c226_i32 = arith.constant 226 : i32
    %114 = tpu.dynamic_rotate %113 by %c226_i32 dim 1 : vector<4x256xf32>, i32 -> vector<4x256xf32>
    %c15 = arith.constant 15 : index
    %c0_35 = arith.constant 0 : index
    %115 = vector.load %arg8[%c15, %c0_35] : memref<27x256xf32, #tpu.memory_space<vmem>>, vector<1x256xf32>
    %116 = vector.broadcast %115 : vector<1x256xf32> to vector<4x256xf32>
    %117 = arith.mulf %114, %116 : vector<4x256xf32>
    %118 = arith.addf %112, %117 : vector<4x256xf32>
    %119 = vector.extract_strided_slice %17 {offsets = [64, 0], sizes = [4, 256], strides = [1, 1]} : vector<108x256xf32> to vector<4x256xf32>
    %c224_i32 = arith.constant 224 : i32
    %120 = tpu.dynamic_rotate %119 by %c224_i32 dim 1 : vector<4x256xf32>, i32 -> vector<4x256xf32>
    %c16 = arith.constant 16 : index
    %c0_36 = arith.constant 0 : index
    %121 = vector.load %arg8[%c16, %c0_36] : memref<27x256xf32, #tpu.memory_space<vmem>>, vector<1x256xf32>
    %122 = vector.broadcast %121 : vector<1x256xf32> to vector<4x256xf32>
    %123 = arith.mulf %120, %122 : vector<4x256xf32>
    %124 = arith.addf %118, %123 : vector<4x256xf32>
    %125 = vector.extract_strided_slice %17 {offsets = [68, 0], sizes = [4, 256], strides = [1, 1]} : vector<108x256xf32> to vector<4x256xf32>
    %c222_i32 = arith.constant 222 : i32
    %126 = tpu.dynamic_rotate %125 by %c222_i32 dim 1 : vector<4x256xf32>, i32 -> vector<4x256xf32>
    %c17 = arith.constant 17 : index
    %c0_37 = arith.constant 0 : index
    %127 = vector.load %arg8[%c17, %c0_37] : memref<27x256xf32, #tpu.memory_space<vmem>>, vector<1x256xf32>
    %128 = vector.broadcast %127 : vector<1x256xf32> to vector<4x256xf32>
    %129 = arith.mulf %126, %128 : vector<4x256xf32>
    %130 = arith.addf %124, %129 : vector<4x256xf32>
    %cst_38 = arith.constant 0.999994993 : f32
    %131 = vector.broadcast %cst_38 : f32 to vector<4x256xf32>
    %132 = arith.mulf %131, %130 : vector<4x256xf32>
    %cst_39 = arith.constant 0.000000e+00 : f32
    %133 = vector.broadcast %cst_39 : f32 to vector<4x256xf32>
    %134 = arith.maximumf %132, %133 : vector<4x256xf32>
    %135 = vector.extract_strided_slice %2 {offsets = [8, 0], sizes = [4, 1], strides = [1, 1]} : vector<16x1xf32> to vector<4x1xf32>
    %136 = vector.broadcast %135 : vector<4x1xf32> to vector<4x256xf32>
    %137 = arith.mulf %136, %134 : vector<4x256xf32>
    %cst_40 = arith.constant dense<0.000000e+00> : vector<256xf32>
    %138 = vector.multi_reduction <add>, %137, %cst_40 [0] : vector<4x256xf32> to vector<256xf32>
    %139 = vector.shape_cast %138 : vector<256xf32> to vector<1x256xf32>
    %140 = arith.addf %81, %139 : vector<1x256xf32>
    %141 = vector.extract_strided_slice %17 {offsets = [72, 0], sizes = [4, 256], strides = [1, 1]} : vector<108x256xf32> to vector<4x256xf32>
    %c51_i32 = arith.constant 51 : i32
    %142 = tpu.dynamic_rotate %141 by %c51_i32 dim 1 : vector<4x256xf32>, i32 -> vector<4x256xf32>
    %c18 = arith.constant 18 : index
    %c0_41 = arith.constant 0 : index
    %143 = vector.load %arg8[%c18, %c0_41] : memref<27x256xf32, #tpu.memory_space<vmem>>, vector<1x256xf32>
    %144 = vector.broadcast %143 : vector<1x256xf32> to vector<4x256xf32>
    %145 = arith.mulf %142, %144 : vector<4x256xf32>
    %146 = vector.extract_strided_slice %17 {offsets = [76, 0], sizes = [4, 256], strides = [1, 1]} : vector<108x256xf32> to vector<4x256xf32>
    %c48_i32 = arith.constant 48 : i32
    %147 = tpu.dynamic_rotate %146 by %c48_i32 dim 1 : vector<4x256xf32>, i32 -> vector<4x256xf32>
    %c19 = arith.constant 19 : index
    %c0_42 = arith.constant 0 : index
    %148 = vector.load %arg8[%c19, %c0_42] : memref<27x256xf32, #tpu.memory_space<vmem>>, vector<1x256xf32>
    %149 = vector.broadcast %148 : vector<1x256xf32> to vector<4x256xf32>
    %150 = arith.mulf %147, %149 : vector<4x256xf32>
    %151 = arith.addf %145, %150 : vector<4x256xf32>
    %152 = vector.extract_strided_slice %17 {offsets = [80, 0], sizes = [4, 256], strides = [1, 1]} : vector<108x256xf32> to vector<4x256xf32>
    %c45_i32 = arith.constant 45 : i32
    %153 = tpu.dynamic_rotate %152 by %c45_i32 dim 1 : vector<4x256xf32>, i32 -> vector<4x256xf32>
    %c20 = arith.constant 20 : index
    %c0_43 = arith.constant 0 : index
    %154 = vector.load %arg8[%c20, %c0_43] : memref<27x256xf32, #tpu.memory_space<vmem>>, vector<1x256xf32>
    %155 = vector.broadcast %154 : vector<1x256xf32> to vector<4x256xf32>
    %156 = arith.mulf %153, %155 : vector<4x256xf32>
    %157 = arith.addf %151, %156 : vector<4x256xf32>
    %158 = vector.extract_strided_slice %17 {offsets = [84, 0], sizes = [4, 256], strides = [1, 1]} : vector<108x256xf32> to vector<4x256xf32>
    %c3_i32 = arith.constant 3 : i32
    %159 = tpu.dynamic_rotate %158 by %c3_i32 dim 1 : vector<4x256xf32>, i32 -> vector<4x256xf32>
    %c21 = arith.constant 21 : index
    %c0_44 = arith.constant 0 : index
    %160 = vector.load %arg8[%c21, %c0_44] : memref<27x256xf32, #tpu.memory_space<vmem>>, vector<1x256xf32>
    %161 = vector.broadcast %160 : vector<1x256xf32> to vector<4x256xf32>
    %162 = arith.mulf %159, %161 : vector<4x256xf32>
    %163 = arith.addf %157, %162 : vector<4x256xf32>
    %164 = vector.extract_strided_slice %17 {offsets = [88, 0], sizes = [4, 256], strides = [1, 1]} : vector<108x256xf32> to vector<4x256xf32>
    %165 = arith.addf %163, %164 : vector<4x256xf32>
    %166 = vector.extract_strided_slice %17 {offsets = [92, 0], sizes = [4, 256], strides = [1, 1]} : vector<108x256xf32> to vector<4x256xf32>
    %c253_i32 = arith.constant 253 : i32
    %167 = tpu.dynamic_rotate %166 by %c253_i32 dim 1 : vector<4x256xf32>, i32 -> vector<4x256xf32>
    %c23 = arith.constant 23 : index
    %c0_45 = arith.constant 0 : index
    %168 = vector.load %arg8[%c23, %c0_45] : memref<27x256xf32, #tpu.memory_space<vmem>>, vector<1x256xf32>
    %169 = vector.broadcast %168 : vector<1x256xf32> to vector<4x256xf32>
    %170 = arith.mulf %167, %169 : vector<4x256xf32>
    %171 = arith.addf %165, %170 : vector<4x256xf32>
    %172 = vector.extract_strided_slice %17 {offsets = [96, 0], sizes = [4, 256], strides = [1, 1]} : vector<108x256xf32> to vector<4x256xf32>
    %c211_i32 = arith.constant 211 : i32
    %173 = tpu.dynamic_rotate %172 by %c211_i32 dim 1 : vector<4x256xf32>, i32 -> vector<4x256xf32>
    %c24 = arith.constant 24 : index
    %c0_46 = arith.constant 0 : index
    %174 = vector.load %arg8[%c24, %c0_46] : memref<27x256xf32, #tpu.memory_space<vmem>>, vector<1x256xf32>
    %175 = vector.broadcast %174 : vector<1x256xf32> to vector<4x256xf32>
    %176 = arith.mulf %173, %175 : vector<4x256xf32>
    %177 = arith.addf %171, %176 : vector<4x256xf32>
    %178 = vector.extract_strided_slice %17 {offsets = [100, 0], sizes = [4, 256], strides = [1, 1]} : vector<108x256xf32> to vector<4x256xf32>
    %c208_i32 = arith.constant 208 : i32
    %179 = tpu.dynamic_rotate %178 by %c208_i32 dim 1 : vector<4x256xf32>, i32 -> vector<4x256xf32>
    %c25 = arith.constant 25 : index
    %c0_47 = arith.constant 0 : index
    %180 = vector.load %arg8[%c25, %c0_47] : memref<27x256xf32, #tpu.memory_space<vmem>>, vector<1x256xf32>
    %181 = vector.broadcast %180 : vector<1x256xf32> to vector<4x256xf32>
    %182 = arith.mulf %179, %181 : vector<4x256xf32>
    %183 = arith.addf %177, %182 : vector<4x256xf32>
    %184 = vector.extract_strided_slice %17 {offsets = [104, 0], sizes = [4, 256], strides = [1, 1]} : vector<108x256xf32> to vector<4x256xf32>
    %c205_i32 = arith.constant 205 : i32
    %185 = tpu.dynamic_rotate %184 by %c205_i32 dim 1 : vector<4x256xf32>, i32 -> vector<4x256xf32>
    %c26 = arith.constant 26 : index
    %c0_48 = arith.constant 0 : index
    %186 = vector.load %arg8[%c26, %c0_48] : memref<27x256xf32, #tpu.memory_space<vmem>>, vector<1x256xf32>
    %187 = vector.broadcast %186 : vector<1x256xf32> to vector<4x256xf32>
    %188 = arith.mulf %185, %187 : vector<4x256xf32>
    %189 = arith.addf %183, %188 : vector<4x256xf32>
    %cst_49 = arith.constant 0.999994993 : f32
    %190 = vector.broadcast %cst_49 : f32 to vector<4x256xf32>
    %191 = arith.mulf %190, %189 : vector<4x256xf32>
    %cst_50 = arith.constant 0.000000e+00 : f32
    %192 = vector.broadcast %cst_50 : f32 to vector<4x256xf32>
    %193 = arith.maximumf %191, %192 : vector<4x256xf32>
    %194 = vector.extract_strided_slice %2 {offsets = [12, 0], sizes = [4, 1], strides = [1, 1]} : vector<16x1xf32> to vector<4x1xf32>
    %195 = vector.broadcast %194 : vector<4x1xf32> to vector<4x256xf32>
    %196 = arith.mulf %195, %193 : vector<4x256xf32>
    %cst_51 = arith.constant dense<0.000000e+00> : vector<256xf32>
    %197 = vector.multi_reduction <add>, %196, %cst_51 [0] : vector<4x256xf32> to vector<256xf32>
    %198 = vector.shape_cast %197 : vector<256xf32> to vector<1x256xf32>
    %199 = arith.addf %140, %198 : vector<1x256xf32>
    %cst_52 = arith.constant 0.999994993 : f32
    %200 = vector.broadcast %cst_52 : f32 to vector<1x256xf32>
    %201 = arith.mulf %200, %199 : vector<1x256xf32>
    %cst_53 = arith.constant 0.000000e+00 : f32
    %202 = vector.broadcast %cst_53 : f32 to vector<1x256xf32>
    %203 = arith.maximumf %201, %202 : vector<1x256xf32>
    %204 = arith.truncf %16 : vector<4x256xf32> to vector<4x256xbf16>
    %cst_54 = arith.constant dense<0.000000e+00> : vector<256x256xf32>
    %205 = tpu.matmul %204, %204, %cst_54 {dimension_numbers = #tpu.dot_dimension_numbers<[0], [0], [1], [1], [0, 1, 1, 1], [], []>} : vector<4x256xbf16>, vector<4x256xbf16>, vector<256x256xf32> -> vector<256x256xf32>
    %cst_55 = arith.constant dense<0xFF800000> : vector<256xf32>
    %206 = vector.multi_reduction <maximumf>, %205, %cst_55 [1] : vector<256x256xf32> to vector<256xf32>
    %207 = vector.shape_cast %206 : vector<256xf32> to vector<256x1xf32>
    %208 = vector.broadcast %207 : vector<256x1xf32> to vector<256x256xf32>
    %209 = arith.subf %205, %208 : vector<256x256xf32>
    %210 = math.exp %209 : vector<256x256xf32>
    %211 = arith.truncf %210 : vector<256x256xf32> to vector<256x256xbf16>
    %212 = tpu.concatenate %16, %7 in 0 : vector<4x256xf32>, vector<1x256xf32> -> vector<5x256xf32>
    %213 = arith.truncf %212 : vector<5x256xf32> to vector<5x256xbf16>
    %cst_56 = arith.constant dense<0.000000e+00> : vector<5x256xf32>
    %214 = tpu.matmul %213, %211, %cst_56 {dimension_numbers = #tpu.dot_dimension_numbers<[1], [1], [0], [0], [0, 0, 1, 0], [], []>} : vector<5x256xbf16>, vector<256x256xbf16>, vector<5x256xf32> -> vector<5x256xf32>
    %215 = vector.extract_strided_slice %214 {offsets = [0, 0], sizes = [4, 256], strides = [1, 1]} : vector<5x256xf32> to vector<4x256xf32>
    %216 = vector.extract_strided_slice %214 {offsets = [4, 0], sizes = [1, 256], strides = [1, 1]} : vector<5x256xf32> to vector<1x256xf32>
    %217 = vector.broadcast %216 : vector<1x256xf32> to vector<4x256xf32>
    %218 = arith.divf %215, %217 : vector<4x256xf32>
    %cst_57 = arith.constant dense<0.000000e+00> : vector<32x256xf32>
    %219 = tpu.matmul %3, %218, %cst_57 {dimension_numbers = #tpu.dot_dimension_numbers<[1], [0], [0], [1], [0, 0, 1, 1], [], []>} : vector<32x4xf32>, vector<4x256xf32>, vector<32x256xf32> -> vector<32x256xf32>
    %cst_58 = arith.constant 0.999994993 : f32
    %220 = vector.broadcast %cst_58 : f32 to vector<32x256xf32>
    %221 = arith.mulf %220, %219 : vector<32x256xf32>
    %cst_59 = arith.constant 0.000000e+00 : f32
    %222 = vector.broadcast %cst_59 : f32 to vector<32x256xf32>
    %223 = arith.maximumf %221, %222 : vector<32x256xf32>
    %c0_60 = arith.constant 0 : index
    %c0_61 = arith.constant 0 : index
    %c0_62 = arith.constant 0 : index
    %224 = vector.load %arg2[%c0_60, %c0_61, %c0_62] : memref<2x32x2xf32, #tpu.memory_space<vmem>>, vector<1x32x2xf32>
    %225 = vector.shape_cast %224 : vector<1x32x2xf32> to vector<32x2xf32>
    %226 = vector.extract_strided_slice %225 {offsets = [0, 0], sizes = [32, 1], strides = [1, 1]} : vector<32x2xf32> to vector<32x1xf32>
    %227 = vector.extract_strided_slice %225 {offsets = [0, 1], sizes = [32, 1], strides = [1, 1]} : vector<32x2xf32> to vector<32x1xf32>
    %c0_63 = arith.constant 0 : index
    %c0_64 = arith.constant 0 : index
    %c0_65 = arith.constant 0 : index
    %228 = vector.load %arg3[%c0_63, %c0_64, %c0_65] : memref<2x1x32xf32, #tpu.memory_space<vmem>>, vector<1x1x32xf32>
    %229 = vector.shape_cast %228 : vector<1x1x32xf32> to vector<1x32xf32>
    %230 = vector.broadcast %227 : vector<32x1xf32> to vector<32x32xf32>
    %231 = vector.broadcast %229 : vector<1x32xf32> to vector<32x32xf32>
    %232 = arith.mulf %230, %231 : vector<32x32xf32>
    %cst_66 = arith.constant dense<0xFF800000> : vector<32xf32>
    %233 = vector.multi_reduction <maximumf>, %232, %cst_66 [1] : vector<32x32xf32> to vector<32xf32>
    %234 = vector.shape_cast %233 : vector<32xf32> to vector<32x1xf32>
    %235 = vector.broadcast %234 : vector<32x1xf32> to vector<32x32xf32>
    %236 = arith.subf %232, %235 : vector<32x32xf32>
    %237 = math.exp %236 : vector<32x32xf32>
    %cst_67 = arith.constant dense<0.000000e+00> : vector<32xf32>
    %238 = vector.multi_reduction <add>, %237, %cst_67 [1] : vector<32x32xf32> to vector<32xf32>
    %239 = vector.shape_cast %238 : vector<32xf32> to vector<32x1xf32>
    %240 = vector.broadcast %239 : vector<32x1xf32> to vector<32x32xf32>
    %241 = arith.divf %237, %240 : vector<32x32xf32>
    %cst_68 = arith.constant dense<0.000000e+00> : vector<32x256xf32>
    %242 = tpu.matmul %241, %9, %cst_68 {dimension_numbers = #tpu.dot_dimension_numbers<[1], [0], [0], [1], [0, 0, 1, 1], [], []>} : vector<32x32xf32>, vector<32x256xf32>, vector<32x256xf32> -> vector<32x256xf32>
    %243 = vector.broadcast %226 : vector<32x1xf32> to vector<32x256xf32>
    %244 = arith.mulf %243, %9 : vector<32x256xf32>
    %245 = arith.addf %244, %9 : vector<32x256xf32>
    %246 = vector.broadcast %203 : vector<1x256xf32> to vector<32x256xf32>
    %247 = arith.mulf %246, %245 : vector<32x256xf32>
    %248 = arith.addf %247, %245 : vector<32x256xf32>
    %249 = arith.mulf %242, %9 : vector<32x256xf32>
    %250 = arith.mulf %223, %249 : vector<32x256xf32>
    %251 = arith.addf %250, %249 : vector<32x256xf32>
    %252 = vector.broadcast %4 : f32 to vector<32x256xf32>
    %253 = arith.mulf %252, %9 : vector<32x256xf32>
    %254 = vector.broadcast %5 : f32 to vector<32x256xf32>
    %255 = arith.mulf %254, %248 : vector<32x256xf32>
    %256 = arith.addf %253, %255 : vector<32x256xf32>
    %257 = vector.broadcast %6 : f32 to vector<32x256xf32>
    %258 = arith.mulf %257, %251 : vector<32x256xf32>
    %259 = arith.addf %256, %258 : vector<32x256xf32>
    %c0_69 = arith.constant 0 : index
    %c0_70 = arith.constant 0 : index
    %c0_71 = arith.constant 0 : index
    %260 = vector.load %arg10[%c0_69, %c0_70, %c0_71] : memref<2x32x256xf32, #tpu.memory_space<vmem>>, vector<1x32x256xf32>
    %261 = vector.shape_cast %260 : vector<1x32x256xf32> to vector<32x256xf32>
    %262 = vector.shape_cast %259 : vector<32x256xf32> to vector<1x32x256xf32>
    tpu.vector_store %arg10[%c0_69, %c0_70, %c0_71], %262 {strides = array<i32>} : memref<2x32x256xf32, #tpu.memory_space<vmem>>, vector<1x32x256xf32>,
    %c1_72 = arith.constant 1 : index
    %c0_73 = arith.constant 0 : index
    %c0_74 = arith.constant 0 : index
    %263 = vector.load %arg1[%c1_72, %c0_73, %c0_74] : memref<2x32x256xf32, #tpu.memory_space<vmem>>, vector<1x32x256xf32>
    %264 = vector.shape_cast %263 : vector<1x32x256xf32> to vector<32x256xf32>
    %cst_75 = arith.constant dense<0.000000e+00> : vector<8x256xf32>
    %265 = tpu.matmul %0, %264, %cst_75 {dimension_numbers = #tpu.dot_dimension_numbers<[1], [0], [0], [1], [0, 0, 1, 1], [], []>} : vector<8x32xf32>, vector<32x256xf32>, vector<8x256xf32> -> vector<8x256xf32>
    %cst_76 = arith.constant 0.999994993 : f32
    %266 = vector.broadcast %cst_76 : f32 to vector<8x256xf32>
    %267 = arith.mulf %266, %265 : vector<8x256xf32>
    %cst_77 = arith.constant 0.000000e+00 : f32
    %268 = vector.broadcast %cst_77 : f32 to vector<8x256xf32>
    %269 = arith.maximumf %267, %268 : vector<8x256xf32>
    %270 = vector.extract_strided_slice %269 {offsets = [0, 0], sizes = [4, 256], strides = [1, 1]} : vector<8x256xf32> to vector<4x256xf32>
    %271 = vector.extract_strided_slice %269 {offsets = [4, 0], sizes = [4, 256], strides = [1, 1]} : vector<8x256xf32> to vector<4x256xf32>
    %cst_78 = arith.constant dense<0.000000e+00> : vector<108x256xf32>
    %272 = tpu.matmul %1, %270, %cst_78 {dimension_numbers = #tpu.dot_dimension_numbers<[1], [0], [0], [1], [0, 0, 1, 1], [], []>} : vector<108x4xf32>, vector<4x256xf32>, vector<108x256xf32> -> vector<108x256xf32>
    %273 = vector.extract_strided_slice %2 {offsets = [0, 0], sizes = [4, 1], strides = [1, 1]} : vector<16x1xf32> to vector<4x1xf32>
    %274 = vector.broadcast %273 : vector<4x1xf32> to vector<4x256xf32>
    %275 = arith.mulf %274, %270 : vector<4x256xf32>
    %cst_79 = arith.constant dense<0.000000e+00> : vector<256xf32>
    %276 = vector.multi_reduction <add>, %275, %cst_79 [0] : vector<4x256xf32> to vector<256xf32>
    %277 = vector.shape_cast %276 : vector<256xf32> to vector<1x256xf32>
    %278 = vector.extract_strided_slice %272 {offsets = [0, 0], sizes = [4, 256], strides = [1, 1]} : vector<108x256xf32> to vector<4x256xf32>
    %c17_i32_80 = arith.constant 17 : i32
    %279 = tpu.dynamic_rotate %278 by %c17_i32_80 dim 1 : vector<4x256xf32>, i32 -> vector<4x256xf32>
    %c0_81 = arith.constant 0 : index
    %c0_82 = arith.constant 0 : index
    %280 = vector.load %arg8[%c0_81, %c0_82] : memref<27x256xf32, #tpu.memory_space<vmem>>, vector<1x256xf32>
    %281 = vector.broadcast %280 : vector<1x256xf32> to vector<4x256xf32>
    %282 = arith.mulf %279, %281 : vector<4x256xf32>
    %283 = vector.extract_strided_slice %272 {offsets = [4, 0], sizes = [4, 256], strides = [1, 1]} : vector<108x256xf32> to vector<4x256xf32>
    %c16_i32_83 = arith.constant 16 : i32
    %284 = tpu.dynamic_rotate %283 by %c16_i32_83 dim 1 : vector<4x256xf32>, i32 -> vector<4x256xf32>
    %c1_84 = arith.constant 1 : index
    %c0_85 = arith.constant 0 : index
    %285 = vector.load %arg8[%c1_84, %c0_85] : memref<27x256xf32, #tpu.memory_space<vmem>>, vector<1x256xf32>
    %286 = vector.broadcast %285 : vector<1x256xf32> to vector<4x256xf32>
    %287 = arith.mulf %284, %286 : vector<4x256xf32>
    %288 = arith.addf %282, %287 : vector<4x256xf32>
    %289 = vector.extract_strided_slice %272 {offsets = [8, 0], sizes = [4, 256], strides = [1, 1]} : vector<108x256xf32> to vector<4x256xf32>
    %c15_i32_86 = arith.constant 15 : i32
    %290 = tpu.dynamic_rotate %289 by %c15_i32_86 dim 1 : vector<4x256xf32>, i32 -> vector<4x256xf32>
    %c2_87 = arith.constant 2 : index
    %c0_88 = arith.constant 0 : index
    %291 = vector.load %arg8[%c2_87, %c0_88] : memref<27x256xf32, #tpu.memory_space<vmem>>, vector<1x256xf32>
    %292 = vector.broadcast %291 : vector<1x256xf32> to vector<4x256xf32>
    %293 = arith.mulf %290, %292 : vector<4x256xf32>
    %294 = arith.addf %288, %293 : vector<4x256xf32>
    %295 = vector.extract_strided_slice %272 {offsets = [12, 0], sizes = [4, 256], strides = [1, 1]} : vector<108x256xf32> to vector<4x256xf32>
    %c1_i32_89 = arith.constant 1 : i32
    %296 = tpu.dynamic_rotate %295 by %c1_i32_89 dim 1 : vector<4x256xf32>, i32 -> vector<4x256xf32>
    %c3_90 = arith.constant 3 : index
    %c0_91 = arith.constant 0 : index
    %297 = vector.load %arg8[%c3_90, %c0_91] : memref<27x256xf32, #tpu.memory_space<vmem>>, vector<1x256xf32>
    %298 = vector.broadcast %297 : vector<1x256xf32> to vector<4x256xf32>
    %299 = arith.mulf %296, %298 : vector<4x256xf32>
    %300 = arith.addf %294, %299 : vector<4x256xf32>
    %301 = vector.extract_strided_slice %272 {offsets = [16, 0], sizes = [4, 256], strides = [1, 1]} : vector<108x256xf32> to vector<4x256xf32>
    %302 = arith.addf %300, %301 : vector<4x256xf32>
    %303 = vector.extract_strided_slice %272 {offsets = [20, 0], sizes = [4, 256], strides = [1, 1]} : vector<108x256xf32> to vector<4x256xf32>
    %c255_i32_92 = arith.constant 255 : i32
    %304 = tpu.dynamic_rotate %303 by %c255_i32_92 dim 1 : vector<4x256xf32>, i32 -> vector<4x256xf32>
    %c5_93 = arith.constant 5 : index
    %c0_94 = arith.constant 0 : index
    %305 = vector.load %arg8[%c5_93, %c0_94] : memref<27x256xf32, #tpu.memory_space<vmem>>, vector<1x256xf32>
    %306 = vector.broadcast %305 : vector<1x256xf32> to vector<4x256xf32>
    %307 = arith.mulf %304, %306 : vector<4x256xf32>
    %308 = arith.addf %302, %307 : vector<4x256xf32>
    %309 = vector.extract_strided_slice %272 {offsets = [24, 0], sizes = [4, 256], strides = [1, 1]} : vector<108x256xf32> to vector<4x256xf32>
    %c241_i32_95 = arith.constant 241 : i32
    %310 = tpu.dynamic_rotate %309 by %c241_i32_95 dim 1 : vector<4x256xf32>, i32 -> vector<4x256xf32>
    %c6_96 = arith.constant 6 : index
    %c0_97 = arith.constant 0 : index
    %311 = vector.load %arg8[%c6_96, %c0_97] : memref<27x256xf32, #tpu.memory_space<vmem>>, vector<1x256xf32>
    %312 = vector.broadcast %311 : vector<1x256xf32> to vector<4x256xf32>
    %313 = arith.mulf %310, %312 : vector<4x256xf32>
    %314 = arith.addf %308, %313 : vector<4x256xf32>
    %315 = vector.extract_strided_slice %272 {offsets = [28, 0], sizes = [4, 256], strides = [1, 1]} : vector<108x256xf32> to vector<4x256xf32>
    %c240_i32_98 = arith.constant 240 : i32
    %316 = tpu.dynamic_rotate %315 by %c240_i32_98 dim 1 : vector<4x256xf32>, i32 -> vector<4x256xf32>
    %c7_99 = arith.constant 7 : index
    %c0_100 = arith.constant 0 : index
    %317 = vector.load %arg8[%c7_99, %c0_100] : memref<27x256xf32, #tpu.memory_space<vmem>>, vector<1x256xf32>
    %318 = vector.broadcast %317 : vector<1x256xf32> to vector<4x256xf32>
    %319 = arith.mulf %316, %318 : vector<4x256xf32>
    %320 = arith.addf %314, %319 : vector<4x256xf32>
    %321 = vector.extract_strided_slice %272 {offsets = [32, 0], sizes = [4, 256], strides = [1, 1]} : vector<108x256xf32> to vector<4x256xf32>
    %c239_i32_101 = arith.constant 239 : i32
    %322 = tpu.dynamic_rotate %321 by %c239_i32_101 dim 1 : vector<4x256xf32>, i32 -> vector<4x256xf32>
    %c8_102 = arith.constant 8 : index
    %c0_103 = arith.constant 0 : index
    %323 = vector.load %arg8[%c8_102, %c0_103] : memref<27x256xf32, #tpu.memory_space<vmem>>, vector<1x256xf32>
    %324 = vector.broadcast %323 : vector<1x256xf32> to vector<4x256xf32>
    %325 = arith.mulf %322, %324 : vector<4x256xf32>
    %326 = arith.addf %320, %325 : vector<4x256xf32>
    %cst_104 = arith.constant 0.999994993 : f32
    %327 = vector.broadcast %cst_104 : f32 to vector<4x256xf32>
    %328 = arith.mulf %327, %326 : vector<4x256xf32>
    %cst_105 = arith.constant 0.000000e+00 : f32
    %329 = vector.broadcast %cst_105 : f32 to vector<4x256xf32>
    %330 = arith.maximumf %328, %329 : vector<4x256xf32>
    %331 = vector.extract_strided_slice %2 {offsets = [4, 0], sizes = [4, 1], strides = [1, 1]} : vector<16x1xf32> to vector<4x1xf32>
    %332 = vector.broadcast %331 : vector<4x1xf32> to vector<4x256xf32>
    %333 = arith.mulf %332, %330 : vector<4x256xf32>
    %cst_106 = arith.constant dense<0.000000e+00> : vector<256xf32>
    %334 = vector.multi_reduction <add>, %333, %cst_106 [0] : vector<4x256xf32> to vector<256xf32>
    %335 = vector.shape_cast %334 : vector<256xf32> to vector<1x256xf32>
    %336 = arith.addf %277, %335 : vector<1x256xf32>
    %337 = vector.extract_strided_slice %272 {offsets = [36, 0], sizes = [4, 256], strides = [1, 1]} : vector<108x256xf32> to vector<4x256xf32>
    %c34_i32_107 = arith.constant 34 : i32
    %338 = tpu.dynamic_rotate %337 by %c34_i32_107 dim 1 : vector<4x256xf32>, i32 -> vector<4x256xf32>
    %c9_108 = arith.constant 9 : index
    %c0_109 = arith.constant 0 : index
    %339 = vector.load %arg8[%c9_108, %c0_109] : memref<27x256xf32, #tpu.memory_space<vmem>>, vector<1x256xf32>
    %340 = vector.broadcast %339 : vector<1x256xf32> to vector<4x256xf32>
    %341 = arith.mulf %338, %340 : vector<4x256xf32>
    %342 = vector.extract_strided_slice %272 {offsets = [40, 0], sizes = [4, 256], strides = [1, 1]} : vector<108x256xf32> to vector<4x256xf32>
    %c32_i32_110 = arith.constant 32 : i32
    %343 = tpu.dynamic_rotate %342 by %c32_i32_110 dim 1 : vector<4x256xf32>, i32 -> vector<4x256xf32>
    %c10_111 = arith.constant 10 : index
    %c0_112 = arith.constant 0 : index
    %344 = vector.load %arg8[%c10_111, %c0_112] : memref<27x256xf32, #tpu.memory_space<vmem>>, vector<1x256xf32>
    %345 = vector.broadcast %344 : vector<1x256xf32> to vector<4x256xf32>
    %346 = arith.mulf %343, %345 : vector<4x256xf32>
    %347 = arith.addf %341, %346 : vector<4x256xf32>
    %348 = vector.extract_strided_slice %272 {offsets = [44, 0], sizes = [4, 256], strides = [1, 1]} : vector<108x256xf32> to vector<4x256xf32>
    %c30_i32_113 = arith.constant 30 : i32
    %349 = tpu.dynamic_rotate %348 by %c30_i32_113 dim 1 : vector<4x256xf32>, i32 -> vector<4x256xf32>
    %c11_114 = arith.constant 11 : index
    %c0_115 = arith.constant 0 : index
    %350 = vector.load %arg8[%c11_114, %c0_115] : memref<27x256xf32, #tpu.memory_space<vmem>>, vector<1x256xf32>
    %351 = vector.broadcast %350 : vector<1x256xf32> to vector<4x256xf32>
    %352 = arith.mulf %349, %351 : vector<4x256xf32>
    %353 = arith.addf %347, %352 : vector<4x256xf32>
    %354 = vector.extract_strided_slice %272 {offsets = [48, 0], sizes = [4, 256], strides = [1, 1]} : vector<108x256xf32> to vector<4x256xf32>
    %c2_i32_116 = arith.constant 2 : i32
    %355 = tpu.dynamic_rotate %354 by %c2_i32_116 dim 1 : vector<4x256xf32>, i32 -> vector<4x256xf32>
    %c12_117 = arith.constant 12 : index
    %c0_118 = arith.constant 0 : index
    %356 = vector.load %arg8[%c12_117, %c0_118] : memref<27x256xf32, #tpu.memory_space<vmem>>, vector<1x256xf32>
    %357 = vector.broadcast %356 : vector<1x256xf32> to vector<4x256xf32>
    %358 = arith.mulf %355, %357 : vector<4x256xf32>
    %359 = arith.addf %353, %358 : vector<4x256xf32>
    %360 = vector.extract_strided_slice %272 {offsets = [52, 0], sizes = [4, 256], strides = [1, 1]} : vector<108x256xf32> to vector<4x256xf32>
    %361 = arith.addf %359, %360 : vector<4x256xf32>
    %362 = vector.extract_strided_slice %272 {offsets = [56, 0], sizes = [4, 256], strides = [1, 1]} : vector<108x256xf32> to vector<4x256xf32>
    %c254_i32_119 = arith.constant 254 : i32
    %363 = tpu.dynamic_rotate %362 by %c254_i32_119 dim 1 : vector<4x256xf32>, i32 -> vector<4x256xf32>
    %c14_120 = arith.constant 14 : index
    %c0_121 = arith.constant 0 : index
    %364 = vector.load %arg8[%c14_120, %c0_121] : memref<27x256xf32, #tpu.memory_space<vmem>>, vector<1x256xf32>
    %365 = vector.broadcast %364 : vector<1x256xf32> to vector<4x256xf32>
    %366 = arith.mulf %363, %365 : vector<4x256xf32>
    %367 = arith.addf %361, %366 : vector<4x256xf32>
    %368 = vector.extract_strided_slice %272 {offsets = [60, 0], sizes = [4, 256], strides = [1, 1]} : vector<108x256xf32> to vector<4x256xf32>
    %c226_i32_122 = arith.constant 226 : i32
    %369 = tpu.dynamic_rotate %368 by %c226_i32_122 dim 1 : vector<4x256xf32>, i32 -> vector<4x256xf32>
    %c15_123 = arith.constant 15 : index
    %c0_124 = arith.constant 0 : index
    %370 = vector.load %arg8[%c15_123, %c0_124] : memref<27x256xf32, #tpu.memory_space<vmem>>, vector<1x256xf32>
    %371 = vector.broadcast %370 : vector<1x256xf32> to vector<4x256xf32>
    %372 = arith.mulf %369, %371 : vector<4x256xf32>
    %373 = arith.addf %367, %372 : vector<4x256xf32>
    %374 = vector.extract_strided_slice %272 {offsets = [64, 0], sizes = [4, 256], strides = [1, 1]} : vector<108x256xf32> to vector<4x256xf32>
    %c224_i32_125 = arith.constant 224 : i32
    %375 = tpu.dynamic_rotate %374 by %c224_i32_125 dim 1 : vector<4x256xf32>, i32 -> vector<4x256xf32>
    %c16_126 = arith.constant 16 : index
    %c0_127 = arith.constant 0 : index
    %376 = vector.load %arg8[%c16_126, %c0_127] : memref<27x256xf32, #tpu.memory_space<vmem>>, vector<1x256xf32>
    %377 = vector.broadcast %376 : vector<1x256xf32> to vector<4x256xf32>
    %378 = arith.mulf %375, %377 : vector<4x256xf32>
    %379 = arith.addf %373, %378 : vector<4x256xf32>
    %380 = vector.extract_strided_slice %272 {offsets = [68, 0], sizes = [4, 256], strides = [1, 1]} : vector<108x256xf32> to vector<4x256xf32>
    %c222_i32_128 = arith.constant 222 : i32
    %381 = tpu.dynamic_rotate %380 by %c222_i32_128 dim 1 : vector<4x256xf32>, i32 -> vector<4x256xf32>
    %c17_129 = arith.constant 17 : index
    %c0_130 = arith.constant 0 : index
    %382 = vector.load %arg8[%c17_129, %c0_130] : memref<27x256xf32, #tpu.memory_space<vmem>>, vector<1x256xf32>
    %383 = vector.broadcast %382 : vector<1x256xf32> to vector<4x256xf32>
    %384 = arith.mulf %381, %383 : vector<4x256xf32>
    %385 = arith.addf %379, %384 : vector<4x256xf32>
    %cst_131 = arith.constant 0.999994993 : f32
    %386 = vector.broadcast %cst_131 : f32 to vector<4x256xf32>
    %387 = arith.mulf %386, %385 : vector<4x256xf32>
    %cst_132 = arith.constant 0.000000e+00 : f32
    %388 = vector.broadcast %cst_132 : f32 to vector<4x256xf32>
    %389 = arith.maximumf %387, %388 : vector<4x256xf32>
    %390 = vector.extract_strided_slice %2 {offsets = [8, 0], sizes = [4, 1], strides = [1, 1]} : vector<16x1xf32> to vector<4x1xf32>
    %391 = vector.broadcast %390 : vector<4x1xf32> to vector<4x256xf32>
    %392 = arith.mulf %391, %389 : vector<4x256xf32>
    %cst_133 = arith.constant dense<0.000000e+00> : vector<256xf32>
    %393 = vector.multi_reduction <add>, %392, %cst_133 [0] : vector<4x256xf32> to vector<256xf32>
    %394 = vector.shape_cast %393 : vector<256xf32> to vector<1x256xf32>
    %395 = arith.addf %336, %394 : vector<1x256xf32>
    %396 = vector.extract_strided_slice %272 {offsets = [72, 0], sizes = [4, 256], strides = [1, 1]} : vector<108x256xf32> to vector<4x256xf32>
    %c51_i32_134 = arith.constant 51 : i32
    %397 = tpu.dynamic_rotate %396 by %c51_i32_134 dim 1 : vector<4x256xf32>, i32 -> vector<4x256xf32>
    %c18_135 = arith.constant 18 : index
    %c0_136 = arith.constant 0 : index
    %398 = vector.load %arg8[%c18_135, %c0_136] : memref<27x256xf32, #tpu.memory_space<vmem>>, vector<1x256xf32>
    %399 = vector.broadcast %398 : vector<1x256xf32> to vector<4x256xf32>
    %400 = arith.mulf %397, %399 : vector<4x256xf32>
    %401 = vector.extract_strided_slice %272 {offsets = [76, 0], sizes = [4, 256], strides = [1, 1]} : vector<108x256xf32> to vector<4x256xf32>
    %c48_i32_137 = arith.constant 48 : i32
    %402 = tpu.dynamic_rotate %401 by %c48_i32_137 dim 1 : vector<4x256xf32>, i32 -> vector<4x256xf32>
    %c19_138 = arith.constant 19 : index
    %c0_139 = arith.constant 0 : index
    %403 = vector.load %arg8[%c19_138, %c0_139] : memref<27x256xf32, #tpu.memory_space<vmem>>, vector<1x256xf32>
    %404 = vector.broadcast %403 : vector<1x256xf32> to vector<4x256xf32>
    %405 = arith.mulf %402, %404 : vector<4x256xf32>
    %406 = arith.addf %400, %405 : vector<4x256xf32>
    %407 = vector.extract_strided_slice %272 {offsets = [80, 0], sizes = [4, 256], strides = [1, 1]} : vector<108x256xf32> to vector<4x256xf32>
    %c45_i32_140 = arith.constant 45 : i32
    %408 = tpu.dynamic_rotate %407 by %c45_i32_140 dim 1 : vector<4x256xf32>, i32 -> vector<4x256xf32>
    %c20_141 = arith.constant 20 : index
    %c0_142 = arith.constant 0 : index
    %409 = vector.load %arg8[%c20_141, %c0_142] : memref<27x256xf32, #tpu.memory_space<vmem>>, vector<1x256xf32>
    %410 = vector.broadcast %409 : vector<1x256xf32> to vector<4x256xf32>
    %411 = arith.mulf %408, %410 : vector<4x256xf32>
    %412 = arith.addf %406, %411 : vector<4x256xf32>
    %413 = vector.extract_strided_slice %272 {offsets = [84, 0], sizes = [4, 256], strides = [1, 1]} : vector<108x256xf32> to vector<4x256xf32>
    %c3_i32_143 = arith.constant 3 : i32
    %414 = tpu.dynamic_rotate %413 by %c3_i32_143 dim 1 : vector<4x256xf32>, i32 -> vector<4x256xf32>
    %c21_144 = arith.constant 21 : index
    %c0_145 = arith.constant 0 : index
    %415 = vector.load %arg8[%c21_144, %c0_145] : memref<27x256xf32, #tpu.memory_space<vmem>>, vector<1x256xf32>
    %416 = vector.broadcast %415 : vector<1x256xf32> to vector<4x256xf32>
    %417 = arith.mulf %414, %416 : vector<4x256xf32>
    %418 = arith.addf %412, %417 : vector<4x256xf32>
    %419 = vector.extract_strided_slice %272 {offsets = [88, 0], sizes = [4, 256], strides = [1, 1]} : vector<108x256xf32> to vector<4x256xf32>
    %420 = arith.addf %418, %419 : vector<4x256xf32>
    %421 = vector.extract_strided_slice %272 {offsets = [92, 0], sizes = [4, 256], strides = [1, 1]} : vector<108x256xf32> to vector<4x256xf32>
    %c253_i32_146 = arith.constant 253 : i32
    %422 = tpu.dynamic_rotate %421 by %c253_i32_146 dim 1 : vector<4x256xf32>, i32 -> vector<4x256xf32>
    %c23_147 = arith.constant 23 : index
    %c0_148 = arith.constant 0 : index
    %423 = vector.load %arg8[%c23_147, %c0_148] : memref<27x256xf32, #tpu.memory_space<vmem>>, vector<1x256xf32>
    %424 = vector.broadcast %423 : vector<1x256xf32> to vector<4x256xf32>
    %425 = arith.mulf %422, %424 : vector<4x256xf32>
    %426 = arith.addf %420, %425 : vector<4x256xf32>
    %427 = vector.extract_strided_slice %272 {offsets = [96, 0], sizes = [4, 256], strides = [1, 1]} : vector<108x256xf32> to vector<4x256xf32>
    %c211_i32_149 = arith.constant 211 : i32
    %428 = tpu.dynamic_rotate %427 by %c211_i32_149 dim 1 : vector<4x256xf32>, i32 -> vector<4x256xf32>
    %c24_150 = arith.constant 24 : index
    %c0_151 = arith.constant 0 : index
    %429 = vector.load %arg8[%c24_150, %c0_151] : memref<27x256xf32, #tpu.memory_space<vmem>>, vector<1x256xf32>
    %430 = vector.broadcast %429 : vector<1x256xf32> to vector<4x256xf32>
    %431 = arith.mulf %428, %430 : vector<4x256xf32>
    %432 = arith.addf %426, %431 : vector<4x256xf32>
    %433 = vector.extract_strided_slice %272 {offsets = [100, 0], sizes = [4, 256], strides = [1, 1]} : vector<108x256xf32> to vector<4x256xf32>
    %c208_i32_152 = arith.constant 208 : i32
    %434 = tpu.dynamic_rotate %433 by %c208_i32_152 dim 1 : vector<4x256xf32>, i32 -> vector<4x256xf32>
    %c25_153 = arith.constant 25 : index
    %c0_154 = arith.constant 0 : index
    %435 = vector.load %arg8[%c25_153, %c0_154] : memref<27x256xf32, #tpu.memory_space<vmem>>, vector<1x256xf32>
    %436 = vector.broadcast %435 : vector<1x256xf32> to vector<4x256xf32>
    %437 = arith.mulf %434, %436 : vector<4x256xf32>
    %438 = arith.addf %432, %437 : vector<4x256xf32>
    %439 = vector.extract_strided_slice %272 {offsets = [104, 0], sizes = [4, 256], strides = [1, 1]} : vector<108x256xf32> to vector<4x256xf32>
    %c205_i32_155 = arith.constant 205 : i32
    %440 = tpu.dynamic_rotate %439 by %c205_i32_155 dim 1 : vector<4x256xf32>, i32 -> vector<4x256xf32>
    %c26_156 = arith.constant 26 : index
    %c0_157 = arith.constant 0 : index
    %441 = vector.load %arg8[%c26_156, %c0_157] : memref<27x256xf32, #tpu.memory_space<vmem>>, vector<1x256xf32>
    %442 = vector.broadcast %441 : vector<1x256xf32> to vector<4x256xf32>
    %443 = arith.mulf %440, %442 : vector<4x256xf32>
    %444 = arith.addf %438, %443 : vector<4x256xf32>
    %cst_158 = arith.constant 0.999994993 : f32
    %445 = vector.broadcast %cst_158 : f32 to vector<4x256xf32>
    %446 = arith.mulf %445, %444 : vector<4x256xf32>
    %cst_159 = arith.constant 0.000000e+00 : f32
    %447 = vector.broadcast %cst_159 : f32 to vector<4x256xf32>
    %448 = arith.maximumf %446, %447 : vector<4x256xf32>
    %449 = vector.extract_strided_slice %2 {offsets = [12, 0], sizes = [4, 1], strides = [1, 1]} : vector<16x1xf32> to vector<4x1xf32>
    %450 = vector.broadcast %449 : vector<4x1xf32> to vector<4x256xf32>
    %451 = arith.mulf %450, %448 : vector<4x256xf32>
    %cst_160 = arith.constant dense<0.000000e+00> : vector<256xf32>
    %452 = vector.multi_reduction <add>, %451, %cst_160 [0] : vector<4x256xf32> to vector<256xf32>
    %453 = vector.shape_cast %452 : vector<256xf32> to vector<1x256xf32>
    %454 = arith.addf %395, %453 : vector<1x256xf32>
    %cst_161 = arith.constant 0.999994993 : f32
    %455 = vector.broadcast %cst_161 : f32 to vector<1x256xf32>
    %456 = arith.mulf %455, %454 : vector<1x256xf32>
    %cst_162 = arith.constant 0.000000e+00 : f32
    %457 = vector.broadcast %cst_162 : f32 to vector<1x256xf32>
    %458 = arith.maximumf %456, %457 : vector<1x256xf32>
    %459 = arith.truncf %271 : vector<4x256xf32> to vector<4x256xbf16>
    %cst_163 = arith.constant dense<0.000000e+00> : vector<256x256xf32>
    %460 = tpu.matmul %459, %459, %cst_163 {dimension_numbers = #tpu.dot_dimension_numbers<[0], [0], [1], [1], [0, 1, 1, 1], [], []>} : vector<4x256xbf16>, vector<4x256xbf16>, vector<256x256xf32> -> vector<256x256xf32>
    %cst_164 = arith.constant dense<0xFF800000> : vector<256xf32>
    %461 = vector.multi_reduction <maximumf>, %460, %cst_164 [1] : vector<256x256xf32> to vector<256xf32>
    %462 = vector.shape_cast %461 : vector<256xf32> to vector<256x1xf32>
    %463 = vector.broadcast %462 : vector<256x1xf32> to vector<256x256xf32>
    %464 = arith.subf %460, %463 : vector<256x256xf32>
    %465 = math.exp %464 : vector<256x256xf32>
    %466 = arith.truncf %465 : vector<256x256xf32> to vector<256x256xbf16>
    %467 = tpu.concatenate %271, %7 in 0 : vector<4x256xf32>, vector<1x256xf32> -> vector<5x256xf32>
    %468 = arith.truncf %467 : vector<5x256xf32> to vector<5x256xbf16>
    %cst_165 = arith.constant dense<0.000000e+00> : vector<5x256xf32>
    %469 = tpu.matmul %468, %466, %cst_165 {dimension_numbers = #tpu.dot_dimension_numbers<[1], [1], [0], [0], [0, 0, 1, 0], [], []>} : vector<5x256xbf16>, vector<256x256xbf16>, vector<5x256xf32> -> vector<5x256xf32>
    %470 = vector.extract_strided_slice %469 {offsets = [0, 0], sizes = [4, 256], strides = [1, 1]} : vector<5x256xf32> to vector<4x256xf32>
    %471 = vector.extract_strided_slice %469 {offsets = [4, 0], sizes = [1, 256], strides = [1, 1]} : vector<5x256xf32> to vector<1x256xf32>
    %472 = vector.broadcast %471 : vector<1x256xf32> to vector<4x256xf32>
    %473 = arith.divf %470, %472 : vector<4x256xf32>
    %cst_166 = arith.constant dense<0.000000e+00> : vector<32x256xf32>
    %474 = tpu.matmul %3, %473, %cst_166 {dimension_numbers = #tpu.dot_dimension_numbers<[1], [0], [0], [1], [0, 0, 1, 1], [], []>} : vector<32x4xf32>, vector<4x256xf32>, vector<32x256xf32> -> vector<32x256xf32>
    %cst_167 = arith.constant 0.999994993 : f32
    %475 = vector.broadcast %cst_167 : f32 to vector<32x256xf32>
    %476 = arith.mulf %475, %474 : vector<32x256xf32>
    %cst_168 = arith.constant 0.000000e+00 : f32
    %477 = vector.broadcast %cst_168 : f32 to vector<32x256xf32>
    %478 = arith.maximumf %476, %477 : vector<32x256xf32>
    %c1_169 = arith.constant 1 : index
    %c0_170 = arith.constant 0 : index
    %c0_171 = arith.constant 0 : index
    %479 = vector.load %arg2[%c1_169, %c0_170, %c0_171] : memref<2x32x2xf32, #tpu.memory_space<vmem>>, vector<1x32x2xf32>
    %480 = vector.shape_cast %479 : vector<1x32x2xf32> to vector<32x2xf32>
    %481 = vector.extract_strided_slice %480 {offsets = [0, 0], sizes = [32, 1], strides = [1, 1]} : vector<32x2xf32> to vector<32x1xf32>
    %482 = vector.extract_strided_slice %480 {offsets = [0, 1], sizes = [32, 1], strides = [1, 1]} : vector<32x2xf32> to vector<32x1xf32>
    %c1_172 = arith.constant 1 : index
    %c0_173 = arith.constant 0 : index
    %c0_174 = arith.constant 0 : index
    %483 = vector.load %arg3[%c1_172, %c0_173, %c0_174] : memref<2x1x32xf32, #tpu.memory_space<vmem>>, vector<1x1x32xf32>
    %484 = vector.shape_cast %483 : vector<1x1x32xf32> to vector<1x32xf32>
    %485 = vector.broadcast %482 : vector<32x1xf32> to vector<32x32xf32>
    %486 = vector.broadcast %484 : vector<1x32xf32> to vector<32x32xf32>
    %487 = arith.mulf %485, %486 : vector<32x32xf32>
    %cst_175 = arith.constant dense<0xFF800000> : vector<32xf32>
    %488 = vector.multi_reduction <maximumf>, %487, %cst_175 [1] : vector<32x32xf32> to vector<32xf32>
    %489 = vector.shape_cast %488 : vector<32xf32> to vector<32x1xf32>
    %490 = vector.broadcast %489 : vector<32x1xf32> to vector<32x32xf32>
    %491 = arith.subf %487, %490 : vector<32x32xf32>
    %492 = math.exp %491 : vector<32x32xf32>
    %cst_176 = arith.constant dense<0.000000e+00> : vector<32xf32>
    %493 = vector.multi_reduction <add>, %492, %cst_176 [1] : vector<32x32xf32> to vector<32xf32>
    %494 = vector.shape_cast %493 : vector<32xf32> to vector<32x1xf32>
    %495 = vector.broadcast %494 : vector<32x1xf32> to vector<32x32xf32>
    %496 = arith.divf %492, %495 : vector<32x32xf32>
    %cst_177 = arith.constant dense<0.000000e+00> : vector<32x256xf32>
    %497 = tpu.matmul %496, %264, %cst_177 {dimension_numbers = #tpu.dot_dimension_numbers<[1], [0], [0], [1], [0, 0, 1, 1], [], []>} : vector<32x32xf32>, vector<32x256xf32>, vector<32x256xf32> -> vector<32x256xf32>
    %498 = vector.broadcast %481 : vector<32x1xf32> to vector<32x256xf32>
    %499 = arith.mulf %498, %264 : vector<32x256xf32>
    %500 = arith.addf %499, %264 : vector<32x256xf32>
    %501 = vector.broadcast %458 : vector<1x256xf32> to vector<32x256xf32>
    %502 = arith.mulf %501, %500 : vector<32x256xf32>
    %503 = arith.addf %502, %500 : vector<32x256xf32>
    %504 = arith.mulf %497, %264 : vector<32x256xf32>
    %505 = arith.mulf %478, %504 : vector<32x256xf32>
    %506 = arith.addf %505, %504 : vector<32x256xf32>
    %507 = vector.broadcast %4 : f32 to vector<32x256xf32>
    %508 = arith.mulf %507, %264 : vector<32x256xf32>
    %509 = vector.broadcast %5 : f32 to vector<32x256xf32>
    %510 = arith.mulf %509, %503 : vector<32x256xf32>
    %511 = arith.addf %508, %510 : vector<32x256xf32>
    %512 = vector.broadcast %6 : f32 to vector<32x256xf32>
    %513 = arith.mulf %512, %506 : vector<32x256xf32>
    %514 = arith.addf %511, %513 : vector<32x256xf32>
    %c1_178 = arith.constant 1 : index
    %c0_179 = arith.constant 0 : index
    %c0_180 = arith.constant 0 : index
    %515 = vector.load %arg10[%c1_178, %c0_179, %c0_180] : memref<2x32x256xf32, #tpu.memory_space<vmem>>, vector<1x32x256xf32>
    %516 = vector.shape_cast %515 : vector<1x32x256xf32> to vector<32x256xf32>
    %517 = vector.shape_cast %514 : vector<32x256xf32> to vector<1x32x256xf32>
    tpu.vector_store %arg10[%c1_178, %c0_179, %c0_180], %517 {strides = array<i32>} : memref<2x32x256xf32, #tpu.memory_space<vmem>>, vector<1x32x256xf32>,
    return
  }
  func.func @transform_0(%arg0: i32) -> (i32, i32, i32) {
    %c0_i32 = arith.constant 0 : i32
    %c0_i32_0 = arith.constant 0 : i32
    %c0_i32_1 = arith.constant 0 : i32
    return %arg0, %c0_i32, %c0_i32_0 : i32, i32, i32
  }
  func.func @transform_1(%arg0: i32) -> (i32, i32, i32) {
    %c0_i32 = arith.constant 0 : i32
    %c0_i32_0 = arith.constant 0 : i32
    %c0_i32_1 = arith.constant 0 : i32
    return %arg0, %c0_i32, %c0_i32_0 : i32, i32, i32
  }
  func.func @transform_2(%arg0: i32) -> (i32, i32, i32) {
    %c0_i32 = arith.constant 0 : i32
    %c0_i32_0 = arith.constant 0 : i32
    %c0_i32_1 = arith.constant 0 : i32
    return %arg0, %c0_i32, %c0_i32_0 : i32, i32, i32
  }
  func.func @transform_3(%arg0: i32) -> (i32, i32) {
    %c0_i32 = arith.constant 0 : i32
    %c0_i32_0 = arith.constant 0 : i32
    %c0_i32_1 = arith.constant 0 : i32
    return %c0_i32, %c0_i32_0 : i32, i32
  }
  func.func @transform_4(%arg0: i32) -> (i32, i32) {
    %c0_i32 = arith.constant 0 : i32
    %c0_i32_0 = arith.constant 0 : i32
    %c0_i32_1 = arith.constant 0 : i32
    return %c0_i32, %c0_i32_0 : i32, i32
  }
  func.func @transform_5(%arg0: i32) -> (i32, i32) {
    %c0_i32 = arith.constant 0 : i32
    %c0_i32_0 = arith.constant 0 : i32
    %c0_i32_1 = arith.constant 0 : i32
    return %c0_i32, %c0_i32_0 : i32, i32
  }
  func.func @transform_6(%arg0: i32) -> (i32, i32) {
    %c0_i32 = arith.constant 0 : i32
    %c0_i32_0 = arith.constant 0 : i32
    %c0_i32_1 = arith.constant 0 : i32
    return %c0_i32, %c0_i32_0 : i32, i32
  }
  func.func @transform_7(%arg0: i32) -> (i32, i32) {
    %c0_i32 = arith.constant 0 : i32
    %c0_i32_0 = arith.constant 0 : i32
    %c0_i32_1 = arith.constant 0 : i32
    return %c0_i32, %c0_i32_0 : i32, i32
  }
  func.func @transform_8(%arg0: i32) -> i32 {
    %c0_i32 = arith.constant 0 : i32
    %c0_i32_0 = arith.constant 0 : i32
    return %c0_i32 : i32
  }
  func.func @transform_9(%arg0: i32) -> (i32, i32, i32) {
    %c0_i32 = arith.constant 0 : i32
    %c0_i32_0 = arith.constant 0 : i32
    %c0_i32_1 = arith.constant 0 : i32
    return %arg0, %c0_i32, %c0_i32_0 : i32, i32, i32
  }
}

</mosaic_0001>

<llo_original>
// kernel: tpu_custom_call.1
$region0: #{tpu_custom_call.1}
  #allocation0 [shape = 'u32[]', space=smem, size = 0x4, offset = 0x4, fixed_abs, tag = 'smem constant byte address 0x4 - core index']
  #allocation1 [shape = 'u32[144,128]{1,0:T(1,128)}', space=vmem, size = 0x12000, scoped, tag = 'internal scratch']
  %s0 = inlined_call_operand.hbm [shape: f32[8,128], index: 0, kind: input, shape index: {}]
  %s1 = inlined_call_operand.hbm [shape: f32[8,128], index: 1, kind: output, shape index: {}]
  %s2 = sld [smem:[#allocation0]]
  $region18: #{tpu_custom_call.1} parent=0
    _
  %s4 = ssub.s32 1, %s2
  %s5 = scalar_select 0, %s4, %s2
  $region1: #{tpu_custom_call.1} parent=0
    #allocation2 [shape = 'u8[4096]{0}', space=vmem, size = 0x1000, scoped, tag = 'input window, operand 0, single buffered']
    #allocation3 [shape = 's32[1]{0}', space=sflag, size = 0x4, scoped, tag = 'scoped memory for tpu_custom_call.1']
    #allocation4 [shape = 's32[1]{0}', space=sflag, size = 0x4, scoped, tag = 'scoped memory for tpu_custom_call.1']
    #allocation5 [shape = 'u8[4096]{0}', space=vmem, size = 0x1000, scoped, tag = 'output window, operand 0, single buffered']
    %6 = vsyncpa [#allocation3], 0
    %7 = vsyncpa [#allocation4], 0
    // Predicated region
    $region2: #{tpu_custom_call.1} parent=1 // pred_check
      _
    $region3: #{tpu_custom_call.1} parent=1 // pred_check_branch
      %9 = sbr.rel (0) target = $region5
    $region4: #{tpu_custom_call.1} parent=1 // pred_region
      %s11 = ssub.s32 128, 128
      %12 = vsyncadd [#allocation3], %s11
      %s14 = sshll.u32 [#allocation2], 4
      %s15 = int_to_ptr.vmem [resolvable:$true] %s14
      %17 = dma.hbm_to_vmem [thread:$0]  %s0, 128, %s15, [#allocation3]
    $region5: #{tpu_custom_call.1} parent=1 // pred_fallthru
      _
    // Predicated region
    $region6: #{tpu_custom_call.1} parent=1 // pred_check
      _
    $region7: #{tpu_custom_call.1} parent=1 // pred_check_branch
      %19 = sbr.rel (0) target = $region9
    $region8: #{tpu_custom_call.1} parent=1 // pred_region
      %20 = dma.done [#allocation3], 128
    $region9: #{tpu_custom_call.1} parent=1 // pred_fallthru
      _
    %v21 = vld [vmem:[#allocation2] sm:$0xff]
    %22 = vrot.lane.b32.xlu0 %v21, 1
    %v23 = vpop.permute.xlu0 %22
    %24 = vst [vmem:[#allocation5] sm:$0xff] %v23
    // Predicated region
    $region10: #{tpu_custom_call.1} parent=1 // pred_check
      _
    $region11: #{tpu_custom_call.1} parent=1 // pred_check_branch
      %26 = sbr.rel (0) target = $region13
    $region12: #{tpu_custom_call.1} parent=1 // pred_region
      %s28 = ssub.s32 128, 128
      %29 = vsyncadd [#allocation4], %s28
      %s31 = sshll.u32 [#allocation5], 4
      %s32 = int_to_ptr.vmem [resolvable:$true] %s31
      %34 = dma.vmem_to_hbm [thread:$0]  %s32, 128, %s1, [#allocation4]
    $region13: #{tpu_custom_call.1} parent=1 // pred_fallthru
      _
    // Predicated region
    $region14: #{tpu_custom_call.1} parent=1 // pred_check
      _
    $region15: #{tpu_custom_call.1} parent=1 // pred_check_branch
      %36 = sbr.rel (0) target = $region17
    $region16: #{tpu_custom_call.1} parent=1 // pred_region
      %37 = dma.done [#allocation4], 128
    $region17: #{tpu_custom_call.1} parent=1 // pred_fallthru
      _
    %38 = vsyncpa [#allocation3], 1
    %39 = vsyncpa [#allocation4], 1

// kernel: gla_forward.1
$region0: #{gla_forward.1}
  #allocation0 [shape = 'u32[]', space=smem, size = 0x4, offset = 0x4, fixed_abs, tag = 'smem constant byte address 0x4 - core index']
  #allocation1 [shape = 'u32[144,128]{1,0:T(1,128)}', space=vmem, size = 0x12000, scoped, tag = 'internal scratch']
  %s0 = inlined_call_operand.vmem [shape: f32[2,32,256], index: 0, kind: input, shape index: {}]
  %s1 = inlined_call_operand.vmem [shape: f32[2,32,2], index: 1, kind: input, shape index: {}]
  %s2 = inlined_call_operand.vmem [shape: f32[2,1,32], index: 2, kind: input, shape index: {}]
  %s3 = inlined_call_operand.vmem [shape: f32[8,32], index: 3, kind: input, shape index: {}]
  %s4 = inlined_call_operand.vmem [shape: f32[108,4], index: 4, kind: input, shape index: {}]
  %s5 = inlined_call_operand.vmem [shape: f32[16,1], index: 5, kind: input, shape index: {}]
  %s6 = inlined_call_operand.vmem [shape: f32[32,4], index: 6, kind: input, shape index: {}]
  %s7 = inlined_call_operand.vmem [shape: f32[27,256], index: 7, kind: input, shape index: {}]
  %s8 = inlined_call_operand.vmem [shape: f32[3], index: 8, kind: input, shape index: {}]
  %s9 = inlined_call_operand.vmem [shape: f32[2,32,256], index: 9, kind: output, shape index: {}]
  %s10 = sld [smem:[#allocation0]]
  $region50: #{gla_forward.1} parent=0
    _
  %s12 = ssub.s32 1, %s10
  %s13 = scalar_select 0, %s12, %s10
  $region1: #{gla_forward.1} parent=0
    #allocation2 [shape = 'u8[512]{0}', space=smem, size = 0x200, scoped, tag = 'input window, operand 8, single buffered']
    #allocation3 [shape = 's32[1]{0}', space=sflag, size = 0x4, scoped, tag = 'scoped memory for gla_forward.1']
    %14 = vsyncpa [#allocation3], 0
    // Predicated region
    $region2: #{gla_forward.1} parent=1 // pred_check
      _
    $region3: #{gla_forward.1} parent=1 // pred_check_branch
      %16 = sbr.rel (0) target = $region5
    $region4: #{gla_forward.1} parent=1 // pred_region
      _
    $region5: #{gla_forward.1} parent=1 // pred_fallthru
      _
    // Predicated region
    $region6: #{gla_forward.1} parent=1 // pred_check
      _
    $region7: #{gla_forward.1} parent=1 // pred_check_branch
      %18 = sbr.rel (0) target = $region9
    $region8: #{gla_forward.1} parent=1 // pred_region
      _
    $region9: #{gla_forward.1} parent=1 // pred_fallthru
      _
    // Predicated region
    $region10: #{gla_forward.1} parent=1 // pred_check
      _
    $region11: #{gla_forward.1} parent=1 // pred_check_branch
      %20 = sbr.rel (0) target = $region13
    $region12: #{gla_forward.1} parent=1 // pred_region
      _
    $region13: #{gla_forward.1} parent=1 // pred_fallthru
      _
    // Predicated region
    $region14: #{gla_forward.1} parent=1 // pred_check
      _
    $region15: #{gla_forward.1} parent=1 // pred_check_branch
      %22 = sbr.rel (0) target = $region17
    $region16: #{gla_forward.1} parent=1 // pred_region
      _
    $region17: #{gla_forward.1} parent=1 // pred_fallthru
      _
    // Predicated region
    $region18: #{gla_forward.1} parent=1 // pred_check
      _
    $region19: #{gla_forward.1} parent=1 // pred_check_branch
      %24 = sbr.rel (0) target = $region21
    $region20: #{gla_forward.1} parent=1 // pred_region
      _
    $region21: #{gla_forward.1} parent=1 // pred_fallthru
      _
    // Predicated region
    $region22: #{gla_forward.1} parent=1 // pred_check
      _
    $region23: #{gla_forward.1} parent=1 // pred_check_branch
      %26 = sbr.rel (0) target = $region25
    $region24: #{gla_forward.1} parent=1 // pred_region
      _
    $region25: #{gla_forward.1} parent=1 // pred_fallthru
      _
    // Predicated region
    $region26: #{gla_forward.1} parent=1 // pred_check
      _
    $region27: #{gla_forward.1} parent=1 // pred_check_branch
      %28 = sbr.rel (0) target = $region29
    $region28: #{gla_forward.1} parent=1 // pred_region
      _
    $region29: #{gla_forward.1} parent=1 // pred_fallthru
      _
    // Predicated region
    $region30: #{gla_forward.1} parent=1 // pred_check
      _
    $region31: #{gla_forward.1} parent=1 // pred_check_branch
      %30 = sbr.rel (0) target = $region33
    $region32: #{gla_forward.1} parent=1 // pred_region
      _
    $region33: #{gla_forward.1} parent=1 // pred_fallthru
      _
    // Predicated region
    $region34: #{gla_forward.1} parent=1 // pred_check
      _
    $region35: #{gla_forward.1} parent=1 // pred_check_branch
      %32 = sbr.rel (0) target = $region37
    $region36: #{gla_forward.1} parent=1 // pred_region
      %s34 = ssub.s32 16, 16
      %35 = vsyncadd [#allocation3], %s34
      %s37 = sshll.u32 %s8, 4
      %s38 = int_to_ptr.vmem [resolvable:$true] %s37
      %40 = dma.vmem_to_smem %s38, 16, [#allocation2], [#allocation3]
    $region37: #{gla_forward.1} parent=1 // pred_fallthru
      _
    // Predicated region
    $region38: #{gla_forward.1} parent=1 // pred_check
      _
    $region39: #{gla_forward.1} parent=1 // pred_check_branch
      %42 = sbr.rel (0) target = $region41
    $region40: #{gla_forward.1} parent=1 // pred_region
      %43 = dma.done [#allocation3], 16
    $region41: #{gla_forward.1} parent=1 // pred_fallthru
      _
    %44 = sfence
    %v46 = vld [vmem:[%s3] sm:$0xff]
    %v47 = vld [vmem:[%s4] sm:$0xff]
    %v48 = vld [vmem:[%s4 + $0x8] sm:$0xff]
    %v49 = vld [vmem:[%s4 + $0x10] sm:$0xff]
    %v50 = vld [vmem:[%s4 + $0x18] sm:$0xff]
    %v51 = vld [vmem:[%s4 + $0x20] sm:$0xff]
    %v52 = vld [vmem:[%s4 + $0x28] sm:$0xff]
    %v53 = vld [vmem:[%s4 + $0x30] sm:$0xff]
    %v54 = vld [vmem:[%s4 + $0x38] sm:$0xff]
    %v55 = vld [vmem:[%s4 + $0x40] sm:$0xff]
    %v56 = vld [vmem:[%s4 + $0x48] sm:$0xff]
    %v57 = vld [vmem:[%s4 + $0x50] sm:$0xff]
    %v58 = vld [vmem:[%s4 + $0x58] sm:$0xff]
    %v59 = vld [vmem:[%s4 + $0x60] sm:$0xff]
    %v60 = vld [vmem:[%s4 + $0x68] sm:$0xf]
    %v61 = vld [vmem:[%s5] sm:$0xff]
    %v62 = vld [vmem:[%s5 + $0x8] sm:$0xff]
    %v63 = vld [vmem:[%s6] sm:$0xff]
    %v64 = vld [vmem:[%s6 + $0x8] sm:$0xff]
    %v65 = vld [vmem:[%s6 + $0x10] sm:$0xff]
    %v66 = vld [vmem:[%s6 + $0x18] sm:$0xff]
    %s67 = sld [smem:[#allocation2]]
    %s68 = sld [smem:[#allocation2 + $0x1]]
    %s69 = sld [smem:[#allocation2 + $0x2]]
    %v70 = vld [vmem:[%s0] sm:$0xff]
    %v71 = vld [vmem:[%s0 + $0x8] sm:$0xff]
    %v72 = vld [vmem:[%s0 + $0x10] sm:$0xff]
    %v73 = vld [vmem:[%s0 + $0x18] sm:$0xff]
    %v74 = vld [vmem:[%s0 + $0x20] sm:$0xff]
    %v75 = vld [vmem:[%s0 + $0x28] sm:$0xff]
    %v76 = vld [vmem:[%s0 + $0x30] sm:$0xff]
    %v77 = vld [vmem:[%s0 + $0x38] sm:$0xff]
    %vm78 = vcmask 261120
    %v80 = vsel %vm78, %v46, 0
    %82 = vmatprep.subr.mxu0 %v71
    %83 = vmatpush1.msra.mxu0 %v70
    %84 = vmatprep.subr.mxu0 %v73
    %85 = vmatpush1.msra.mxu0 %v72
    %86 = vmatprep.subr.mxu0 %v75
    %87 = vmatpush1.msra.mxu0 %v74
    %88 = vmatprep.subr.mxu0 %v77
    %89 = vmatpush1.msra.mxu0 %v76
    %90 = vmatprep.subr.mxu0 0.0
    %91 = vmatpush1.msra.mxu0 0.0
    %92 = vmatprep.subr.mxu0 0.0
    %93 = vmatpush1.msra.mxu0 0.0
    %94 = vmatprep.subr.mxu0 0.0
    %95 = vmatpush1.msra.mxu0 0.0
    %96 = vmatprep.subr.mxu0 0.0
    %97 = vmatpush1.msra.mxu0 0.0
    %98 = vmatprep.subr.mxu0 0.0
    %99 = vmatpush1.msra.mxu0 0.0
    %100 = vmatprep.subr.mxu0 0.0
    %101 = vmatpush1.msra.mxu0 0.0
    %102 = vmatprep.subr.mxu0 0.0
    %103 = vmatpush1.msra.mxu0 0.0
    %104 = vmatprep.subr.mxu0 0.0
    %105 = vmatpush1.msra.mxu0 0.0
    %106 = vmatprep.subr.mxu0 0.0
    %107 = vmatpush1.msra.mxu0 0.0
    %108 = vmatprep.subr.mxu0 0.0
    %109 = vmatpush1.msra.mxu0 0.0
    %110 = vmatprep.subr.mxu0 0.0
    %111 = vmatpush1.msra.mxu0 0.0
    %112 = vmatprep.subr.mxu0 0.0
    %113 = vmatpush1.msra.mxu0 0.0
    %114 = vmatprep.subr.mxu0 0.0
    %115 = vmatpush1.msra.mxu0 0.0
    %116 = vmatprep.subr.mxu0 0.0
    %117 = vmatpush1.msra.mxu0 0.0
    %118 = vmatprep.subr.mxu0 0.0
    %119 = vmatpush1.msra.mxu0 0.0
    %120 = vmatprep.subr.mxu0 0.0
    %121 = vmatpush1.msra.mxu0 0.0
    %122 = vmatprep.subr.mxu0 0.0
    %123 = vmatpush1.msra.mxu0 0.0
    %124 = vmatprep.subr.mxu0 0.0
    %125 = vmatpush1.msra.mxu0 0.0
    %126 = vmatprep.subr.mxu0 0.0
    %127 = vmatpush1.msra.mxu0 0.0
    %128 = vmatprep.subr.mxu0 0.0
    %129 = vmatpush1.msra.mxu0 0.0
    %130 = vmatprep.subr.mxu0 0.0
    %131 = vmatpush1.msra.mxu0 0.0
    %132 = vmatprep.subr.mxu0 0.0
    %133 = vmatpush1.msra.mxu0 0.0
    %134 = vmatprep.subr.mxu0 0.0
    %135 = vmatpush1.msra.mxu0 0.0
    %136 = vmatprep.subr.mxu0 0.0
    %137 = vmatpush1.msra.mxu0 0.0
    %138 = vmatprep.subr.mxu0 0.0
    %139 = vmatpush1.msra.mxu0 0.0
    %140 = vmatprep.subr.mxu0 0.0
    %141 = vmatpush1.msra.mxu0 0.0
    %142 = vmatprep.subr.mxu0 0.0
    %143 = vmatpush1.msra.mxu0 0.0
    %144 = vmatprep.subr.mxu0 0.0
    %145 = vmatpush1.msra.mxu0 0.0
    %146 = vmatprep.mubr.f32.mxu0 0.0
    %147 = vmatmul.mubr.f32.gmra.mrb[0].mxu0 %v80
    %v148 = vpop.f32.mrb[0].mxu0
    %v149 = vadd.f32 0.0, %v148
    %v150 = vpop.f32.mrb[0].mxu0
    %v151 = vadd.f32 0.0, %v150
    %152 = vdwg.mxu0
    %v153 = vmul.f32 %v149, 0.999995
    %v154 = vmul.f32 %v151, 0.999995
    %v155 = vmax.f32 %v153, 0.0
    %v156 = vmax.f32 %v154, 0.0
    %vm157 = vcmask 31744
    %v159 = vsel %vm157, %v47, 0
    %v162 = vsel %vm157, %v48, 0
    %v165 = vsel %vm157, %v49, 0
    %v168 = vsel %vm157, %v50, 0
    %v171 = vsel %vm157, %v51, 0
    %v174 = vsel %vm157, %v52, 0
    %v177 = vsel %vm157, %v53, 0
    %v180 = vsel %vm157, %v54, 0
    %v183 = vsel %vm157, %v55, 0
    %v186 = vsel %vm157, %v56, 0
    %v189 = vsel %vm157, %v57, 0
    %v192 = vsel %vm157, %v58, 0
    %v195 = vsel %vm157, %v59, 0
    %v198 = vsel %vm157, %v60, 0
    %vm200 = vcmask 1043456
    %v202 = vsel %vm200, %v155, 0
    %v205 = vsel %vm200, %v156, 0
    %207 = vmatprep.subr.mxu0 %v205
    %208 = vmatpush1.msra.mxu0 %v202
    %209 = vmatprep.subr.mxu0 0.0
    %210 = vmatpush1.msra.mxu0 0.0
    %211 = vmatprep.subr.mxu0 0.0
    %212 = vmatpush1.msra.mxu0 0.0
    %213 = vmatprep.subr.mxu0 0.0
    %214 = vmatpush1.msra.mxu0 0.0
    %215 = vmatprep.subr.mxu0 0.0
    %216 = vmatpush1.msra.mxu0 0.0
    %217 = vmatprep.subr.mxu0 0.0
    %218 = vmatpush1.msra.mxu0 0.0
    %219 = vmatprep.subr.mxu0 0.0
    %220 = vmatpush1.msra.mxu0 0.0
    %221 = vmatprep.subr.mxu0 0.0
    %222 = vmatpush1.msra.mxu0 0.0
    %223 = vmatprep.subr.mxu0 0.0
    %224 = vmatpush1.msra.mxu0 0.0
    %225 = vmatprep.subr.mxu0 0.0
    %226 = vmatpush1.msra.mxu0 0.0
    %227 = vmatprep.subr.mxu0 0.0
    %228 = vmatpush1.msra.mxu0 0.0
    %229 = vmatprep.subr.mxu0 0.0
    %230 = vmatpush1.msra.mxu0 0.0
    %231 = vmatprep.subr.mxu0 0.0
    %232 = vmatpush1.msra.mxu0 0.0
    %233 = vmatprep.subr.mxu0 0.0
    %234 = vmatpush1.msra.mxu0 0.0
    %235 = vmatprep.subr.mxu0 0.0
    %236 = vmatpush1.msra.mxu0 0.0
    %237 = vmatprep.subr.mxu0 0.0
    %238 = vmatpush1.msra.mxu0 0.0
    %239 = vmatprep.subr.mxu0 0.0
    %240 = vmatpush1.msra.mxu0 0.0
    %241 = vmatprep.subr.mxu0 0.0
    %242 = vmatpush1.msra.mxu0 0.0
    %243 = vmatprep.subr.mxu0 0.0
    %244 = vmatpush1.msra.mxu0 0.0
    %245 = vmatprep.subr.mxu0 0.0
    %246 = vmatpush1.msra.mxu0 0.0
    %247 = vmatprep.subr.mxu0 0.0
    %248 = vmatpush1.msra.mxu0 0.0
    %249 = vmatprep.subr.mxu0 0.0
    %250 = vmatpush1.msra.mxu0 0.0
    %251 = vmatprep.subr.mxu0 0.0
    %252 = vmatpush1.msra.mxu0 0.0
    %253 = vmatprep.subr.mxu0 0.0
    %254 = vmatpush1.msra.mxu0 0.0
    %255 = vmatprep.subr.mxu0 0.0
    %256 = vmatpush1.msra.mxu0 0.0
    %257 = vmatprep.subr.mxu0 0.0
    %258 = vmatpush1.msra.mxu0 0.0
    %259 = vmatprep.subr.mxu0 0.0
    %260 = vmatpush1.msra.mxu0 0.0
    %261 = vmatprep.subr.mxu0 0.0
    %262 = vmatpush1.msra.mxu0 0.0
    %263 = vmatprep.subr.mxu0 0.0
    %264 = vmatpush1.msra.mxu0 0.0
    %265 = vmatprep.subr.mxu0 0.0
    %266 = vmatpush1.msra.mxu0 0.0
    %267 = vmatprep.subr.mxu0 0.0
    %268 = vmatpush1.msra.mxu0 0.0
    %269 = vmatprep.subr.mxu0 0.0
    %270 = vmatpush1.msra.mxu0 0.0
    %271 = vmatprep.mubr.f32.mxu0 0.0
    %272 = vmatmul.mubr.f32.gmra.mrb[0].mxu0 %v159
    %v273 = vpop.f32.mrb[0].mxu0
    %v274 = vadd.f32 0.0, %v273
    %v275 = vpop.f32.mrb[0].mxu0
    %v276 = vadd.f32 0.0, %v275
    %277 = vmatprep.mubr.f32.mxu0 0.0
    %278 = vmatmul.mubr.f32.gmra.mrb[0].mxu0 %v162
    %v279 = vpop.f32.mrb[0].mxu0
    %v280 = vadd.f32 0.0, %v279
    %v281 = vpop.f32.mrb[0].mxu0
    %v282 = vadd.f32 0.0, %v281
    %283 = vmatprep.mubr.f32.mxu0 0.0
    %284 = vmatmul.mubr.f32.gmra.mrb[0].mxu0 %v165
    %v285 = vpop.f32.mrb[0].mxu0
    %v286 = vadd.f32 0.0, %v285
    %v287 = vpop.f32.mrb[0].mxu0
    %v288 = vadd.f32 0.0, %v287
    %289 = vmatprep.mubr.f32.mxu0 0.0
    %290 = vmatmul.mubr.f32.gmra.mrb[0].mxu0 %v168
    %v291 = vpop.f32.mrb[0].mxu0
    %v292 = vadd.f32 0.0, %v291
    %v293 = vpop.f32.mrb[0].mxu0
    %v294 = vadd.f32 0.0, %v293
    %295 = vmatprep.mubr.f32.mxu0 0.0
    %296 = vmatmul.mubr.f32.gmra.mrb[0].mxu0 %v171
    %v297 = vpop.f32.mrb[0].mxu0
    %v298 = vadd.f32 0.0, %v297
    %v299 = vpop.f32.mrb[0].mxu0
    %v300 = vadd.f32 0.0, %v299
    %301 = vmatprep.mubr.f32.mxu0 0.0
    %302 = vmatmul.mubr.f32.gmra.mrb[0].mxu0 %v174
    %v303 = vpop.f32.mrb[0].mxu0
    %v304 = vadd.f32 0.0, %v303
    %v305 = vpop.f32.mrb[0].mxu0
    %v306 = vadd.f32 0.0, %v305
    %307 = vmatprep.mubr.f32.mxu0 0.0
    %308 = vmatmul.mubr.f32.gmra.mrb[0].mxu0 %v177
    %v309 = vpop.f32.mrb[0].mxu0
    %v310 = vadd.f32 0.0, %v309
    %v311 = vpop.f32.mrb[0].mxu0
    %v312 = vadd.f32 0.0, %v311
    %313 = vmatprep.mubr.f32.mxu0 0.0
    %314 = vmatmul.mubr.f32.gmra.mrb[0].mxu0 %v180
    %v315 = vpop.f32.mrb[0].mxu0
    %v316 = vadd.f32 0.0, %v315
    %v317 = vpop.f32.mrb[0].mxu0
    %v318 = vadd.f32 0.0, %v317
    %319 = vmatprep.mubr.f32.mxu0 0.0
    %320 = vmatmul.mubr.f32.gmra.mrb[0].mxu0 %v183
    %v321 = vpop.f32.mrb[0].mxu0
    %v322 = vadd.f32 0.0, %v321
    %v323 = vpop.f32.mrb[0].mxu0
    %v324 = vadd.f32 0.0, %v323
    %325 = vmatprep.mubr.f32.mxu0 0.0
    %326 = vmatmul.mubr.f32.gmra.mrb[0].mxu0 %v186
    %v327 = vpop.f32.mrb[0].mxu0
    %v328 = vadd.f32 0.0, %v327
    %v329 = vpop.f32.mrb[0].mxu0
    %v330 = vadd.f32 0.0, %v329
    %331 = vmatprep.mubr.f32.mxu0 0.0
    %332 = vmatmul.mubr.f32.gmra.mrb[0].mxu0 %v189
    %v333 = vpop.f32.mrb[0].mxu0
    %v334 = vadd.f32 0.0, %v333
    %v335 = vpop.f32.mrb[0].mxu0
    %v336 = vadd.f32 0.0, %v335
    %337 = vmatprep.mubr.f32.mxu0 0.0
    %338 = vmatmul.mubr.f32.gmra.mrb[0].mxu0 %v192
    %v339 = vpop.f32.mrb[0].mxu0
    %v340 = vadd.f32 0.0, %v339
    %v341 = vpop.f32.mrb[0].mxu0
    %v342 = vadd.f32 0.0, %v341
    %343 = vmatprep.mubr.f32.mxu0 0.0
    %344 = vmatmul.mubr.f32.gmra.mrb[0].mxu0 %v195
    %v345 = vpop.f32.mrb[0].mxu0
    %v346 = vadd.f32 0.0, %v345
    %v347 = vpop.f32.mrb[0].mxu0
    %v348 = vadd.f32 0.0, %v347
    %349 = vmatprep.mubr.f32.mxu0 0.0
    %350 = vmatmul.mubr.f32.gmra.mrb[0].mxu0 %v198
    %v351 = vpop.f32.mrb[0].mxu0
    %v352 = vadd.f32 0.0, %v351
    %v353 = vpop.f32.mrb[0].mxu0
    %v354 = vadd.f32 0.0, %v353
    %355 = vdwg.mxu0
    %357 = vset.pattern.permute.xlu0 0
    %358 = vperm.xlu0 %357, %v61
    %v359 = vpop.permute.xlu0 %358
    %v361 = vmul.f32 %v359, %v155
    %v362 = vmul.f32 %v359, %v156
    %v363 = vsel %vm200, %v361, 0.0
    %v364 = vrot.slane %v363, 4
    %v365 = vadd.f32 %v363, %v364
    %v366 = vrot.slane %v365, 2
    %v367 = vadd.f32 %v365, %v366
    %v368 = vrot.slane %v367, 1
    %v369 = vadd.f32 %v367, %v368
    %v370 = vsel %vm200, %v362, 0.0
    %v371 = vrot.slane %v370, 4
    %v372 = vadd.f32 %v370, %v371
    %v373 = vrot.slane %v372, 2
    %v374 = vadd.f32 %v372, %v373
    %v375 = vrot.slane %v374, 1
    %v376 = vadd.f32 %v374, %v375
    %377 = vrot.lane.b32.xlu0 %v274, 17
    %v378 = vpop.permute.xlu0 %377
    %379 = vrot.lane.b32.xlu0 %v276, 17
    %v380 = vpop.permute.xlu0 %379
    %v381 = vlaneseq
    %v382 = vand.u32 %v381, 127
    %vm383 = vcmp.lt.s32.totalorder %v382, 17
    %v384 = vsel %vm383, %v378, %v380
    %v385 = vsel %vm383, %v380, %v378
    %v386 = vld [vmem:[%s7] ss:$8 sm:$0x3]
    %v388 = vlaneseq
    %v389 = vshrl.u32 %v388, 7
    %v390 = vsub.s32 0, %v389
    %v391 = vrot.slane %v386, %v390
    %v392 = vlaneseq
    %v393 = vshrl.u32 %v392, 7
    %v394 = vsub.s32 1, %v393
    %v395 = vrot.slane %v386, %v394
    %v398 = vmul.f32 %v385, %v391
    %v399 = vmul.f32 %v384, %v395
    %v402 = vrot.slane %v274, 4
    %v403 = vrot.slane %v276, 4
    %406 = vrot.lane.b32.xlu0 %v402, 16
    %v407 = vpop.permute.xlu0 %406
    %408 = vrot.lane.b32.xlu0 %v403, 16
    %v409 = vpop.permute.xlu0 %408
    %vm410 = vcmp.lt.s32.totalorder %v382, 16
    %v411 = vsel %vm410, %v407, %v409
    %v412 = vsel %vm410, %v409, %v407
    %s413 = scalar_lea.vmem %s7, 1
    %v414 = vld [vmem:[%s413] ss:$8 sm:$0x3]
    %v416 = vlaneseq
    %v417 = vshrl.u32 %v416, 7
    %v418 = vsub.s32 0, %v417
    %v419 = vrot.slane %v414, %v418
    %v420 = vlaneseq
    %v421 = vshrl.u32 %v420, 7
    %v422 = vsub.s32 1, %v421
    %v423 = vrot.slane %v414, %v422
    %v426 = vmul.f32 %v412, %v419
    %v427 = vmul.f32 %v411, %v423
    %v428 = vadd.f32 %v398, %v426
    %v429 = vadd.f32 %v399, %v427
    %430 = vrot.lane.b32.xlu0 %v280, 15
    %v431 = vpop.permute.xlu0 %430
    %432 = vrot.lane.b32.xlu0 %v282, 15
    %v433 = vpop.permute.xlu0 %432
    %vm434 = vcmp.lt.s32.totalorder %v382, 15
    %v435 = vsel %vm434, %v431, %v433
    %v436 = vsel %vm434, %v433, %v431
    %s437 = scalar_lea.vmem %s7, 2
    %v438 = vld [vmem:[%s437] ss:$8 sm:$0x3]
    %v440 = vlaneseq
    %v441 = vshrl.u32 %v440, 7
    %v442 = vsub.s32 0, %v441
    %v443 = vrot.slane %v438, %v442
    %v444 = vlaneseq
    %v445 = vshrl.u32 %v444, 7
    %v446 = vsub.s32 1, %v445
    %v447 = vrot.slane %v438, %v446
    %v450 = vmul.f32 %v436, %v443
    %v451 = vmul.f32 %v435, %v447
    %v452 = vadd.f32 %v428, %v450
    %v453 = vadd.f32 %v429, %v451
    %v456 = vrot.slane %v280, 4
    %v457 = vrot.slane %v282, 4
    %460 = vrot.lane.b32.xlu0 %v456, 1
    %v461 = vpop.permute.xlu0 %460
    %462 = vrot.lane.b32.xlu0 %v457, 1
    %v463 = vpop.permute.xlu0 %462
    %vm464 = vcmp.lt.s32.totalorder %v382, 1
    %v465 = vsel %vm464, %v461, %v463
    %v466 = vsel %vm464, %v463, %v461
    %s467 = scalar_lea.vmem %s7, 3
    %v468 = vld [vmem:[%s467] ss:$8 sm:$0x3]
    %v470 = vlaneseq
    %v471 = vshrl.u32 %v470, 7
    %v472 = vsub.s32 0, %v471
    %v473 = vrot.slane %v468, %v472
    %v474 = vlaneseq
    %v475 = vshrl.u32 %v474, 7
    %v476 = vsub.s32 1, %v475
    %v477 = vrot.slane %v468, %v476
    %v480 = vmul.f32 %v466, %v473
    %v481 = vmul.f32 %v465, %v477
    %v482 = vadd.f32 %v452, %v480
    %v483 = vadd.f32 %v453, %v481
    %v484 = vadd.f32 %v482, %v286
    %v485 = vadd.f32 %v483, %v288
    %v488 = vrot.slane %v286, 4
    %v489 = vrot.slane %v288, 4
    %492 = vrot.lane.b32.xlu0 %v488, 127
    %v493 = vpop.permute.xlu0 %492
    %494 = vrot.lane.b32.xlu0 %v489, 127
    %v495 = vpop.permute.xlu0 %494
    %vm496 = vcmp.lt.s32.totalorder %v382, 127
    %v497 = vsel %vm496, %v493, %v495
    %v498 = vsel %vm496, %v495, %v493
    %s499 = scalar_lea.vmem %s7, 5
    %v500 = vld [vmem:[%s499] ss:$8 sm:$0x3]
    %v502 = vlaneseq
    %v503 = vshrl.u32 %v502, 7
    %v504 = vsub.s32 0, %v503
    %v505 = vrot.slane %v500, %v504
    %v506 = vlaneseq
    %v507 = vshrl.u32 %v506, 7
    %v508 = vsub.s32 1, %v507
    %v509 = vrot.slane %v500, %v508
    %v512 = vmul.f32 %v497, %v505
    %v513 = vmul.f32 %v498, %v509
    %v514 = vadd.f32 %v484, %v512
    %v515 = vadd.f32 %v485, %v513
    %516 = vrot.lane.b32.xlu0 %v292, 113
    %v517 = vpop.permute.xlu0 %516
    %518 = vrot.lane.b32.xlu0 %v294, 113
    %v519 = vpop.permute.xlu0 %518
    %vm520 = vcmp.lt.s32.totalorder %v382, 113
    %v521 = vsel %vm520, %v517, %v519
    %v522 = vsel %vm520, %v519, %v517
    %s523 = scalar_lea.vmem %s7, 6
    %v524 = vld [vmem:[%s523] ss:$8 sm:$0x3]
    %v526 = vlaneseq
    %v527 = vshrl.u32 %v526, 7
    %v528 = vsub.s32 0, %v527
    %v529 = vrot.slane %v524, %v528
    %v530 = vlaneseq
    %v531 = vshrl.u32 %v530, 7
    %v532 = vsub.s32 1, %v531
    %v533 = vrot.slane %v524, %v532
    %v536 = vmul.f32 %v521, %v529
    %v537 = vmul.f32 %v522, %v533
    %v538 = vadd.f32 %v514, %v536
    %v539 = vadd.f32 %v515, %v537
    %v542 = vrot.slane %v292, 4
    %v543 = vrot.slane %v294, 4
    %546 = vrot.lane.b32.xlu0 %v542, 112
    %v547 = vpop.permute.xlu0 %546
    %548 = vrot.lane.b32.xlu0 %v543, 112
    %v549 = vpop.permute.xlu0 %548
    %vm550 = vcmp.lt.s32.totalorder %v382, 112
    %v551 = vsel %vm550, %v547, %v549
    %v552 = vsel %vm550, %v549, %v547
    %s553 = scalar_lea.vmem %s7, 7
    %v554 = vld [vmem:[%s553] ss:$8 sm:$0x3]
    %v556 = vlaneseq
    %v557 = vshrl.u32 %v556, 7
    %v558 = vsub.s32 0, %v557
    %v559 = vrot.slane %v554, %v558
    %v560 = vlaneseq
    %v561 = vshrl.u32 %v560, 7
    %v562 = vsub.s32 1, %v561
    %v563 = vrot.slane %v554, %v562
    %v566 = vmul.f32 %v551, %v559
    %v567 = vmul.f32 %v552, %v563
    %v568 = vadd.f32 %v538, %v566
    %v569 = vadd.f32 %v539, %v567
    %570 = vrot.lane.b32.xlu0 %v298, 111
    %v571 = vpop.permute.xlu0 %570
    %572 = vrot.lane.b32.xlu0 %v300, 111
    %v573 = vpop.permute.xlu0 %572
    %vm574 = vcmp.lt.s32.totalorder %v382, 111
    %v575 = vsel %vm574, %v571, %v573
    %v576 = vsel %vm574, %v573, %v571
    %s577 = scalar_lea.vmem %s7, 16
    %v578 = vld [vmem:[%s577] ss:$8 sm:$0x3]
    %v580 = vlaneseq
    %v581 = vshrl.u32 %v580, 7
    %v582 = vsub.s32 0, %v581
    %v583 = vrot.slane %v578, %v582
    %v584 = vlaneseq
    %v585 = vshrl.u32 %v584, 7
    %v586 = vsub.s32 1, %v585
    %v587 = vrot.slane %v578, %v586
    %v590 = vmul.f32 %v575, %v583
    %v591 = vmul.f32 %v576, %v587
    %v592 = vadd.f32 %v568, %v590
    %v593 = vadd.f32 %v569, %v591
    %v594 = vmul.f32 %v592, 0.999995
    %v595 = vmul.f32 %v593, 0.999995
    %v596 = vmax.f32 %v594, 0.0
    %v597 = vmax.f32 %v595, 0.0
    %v600 = vrot.slane %v596, 4
    %v601 = vrot.slane %v597, 4
    %v604 = vmul.f32 %v359, %v600
    %v605 = vmul.f32 %v359, %v601
    %v608 = vrot.slane %v604, 4
    %v609 = vrot.slane %v605, 4
    %v612 = vsel %vm200, %v608, 0.0
    %v613 = vrot.slane %v612, 4
    %v614 = vadd.f32 %v612, %v613
    %v615 = vrot.slane %v614, 2
    %v616 = vadd.f32 %v614, %v615
    %v617 = vrot.slane %v616, 1
    %v618 = vadd.f32 %v616, %v617
    %v619 = vsel %vm200, %v609, 0.0
    %v620 = vrot.slane %v619, 4
    %v621 = vadd.f32 %v619, %v620
    %v622 = vrot.slane %v621, 2
    %v623 = vadd.f32 %v621, %v622
    %v624 = vrot.slane %v623, 1
    %v625 = vadd.f32 %v623, %v624
    %v626 = vadd.f32 %v369, %v618
    %v627 = vadd.f32 %v376, %v625
    %v630 = vrot.slane %v298, 4
    %v631 = vrot.slane %v300, 4
    %634 = vrot.lane.b32.xlu0 %v630, 34
    %v635 = vpop.permute.xlu0 %634
    %636 = vrot.lane.b32.xlu0 %v631, 34
    %v637 = vpop.permute.xlu0 %636
    %vm638 = vcmp.lt.s32.totalorder %v382, 34
    %v639 = vsel %vm638, %v635, %v637
    %v640 = vsel %vm638, %v637, %v635
    %s641 = scalar_lea.vmem %s7, 17
    %v642 = vld [vmem:[%s641] ss:$8 sm:$0x3]
    %v644 = vlaneseq
    %v645 = vshrl.u32 %v644, 7
    %v646 = vsub.s32 0, %v645
    %v647 = vrot.slane %v642, %v646
    %v648 = vlaneseq
    %v649 = vshrl.u32 %v648, 7
    %v650 = vsub.s32 1, %v649
    %v651 = vrot.slane %v642, %v650
    %v654 = vmul.f32 %v640, %v647
    %v655 = vmul.f32 %v639, %v651
    %656 = vrot.lane.b32.xlu0 %v304, 32
    %v657 = vpop.permute.xlu0 %656
    %658 = vrot.lane.b32.xlu0 %v306, 32
    %v659 = vpop.permute.xlu0 %658
    %vm660 = vcmp.lt.s32.totalorder %v382, 32
    %v661 = vsel %vm660, %v657, %v659
    %v662 = vsel %vm660, %v659, %v657
    %s663 = scalar_lea.vmem %s7, 18
    %v664 = vld [vmem:[%s663] ss:$8 sm:$0x3]
    %v666 = vlaneseq
    %v667 = vshrl.u32 %v666, 7
    %v668 = vsub.s32 0, %v667
    %v669 = vrot.slane %v664, %v668
    %v670 = vlaneseq
    %v671 = vshrl.u32 %v670, 7
    %v672 = vsub.s32 1, %v671
    %v673 = vrot.slane %v664, %v672
    %v676 = vmul.f32 %v662, %v669
    %v677 = vmul.f32 %v661, %v673
    %v678 = vadd.f32 %v654, %v676
    %v679 = vadd.f32 %v655, %v677
    %v682 = vrot.slane %v304, 4
    %v683 = vrot.slane %v306, 4
    %686 = vrot.lane.b32.xlu0 %v682, 30
    %v687 = vpop.permute.xlu0 %686
    %688 = vrot.lane.b32.xlu0 %v683, 30
    %v689 = vpop.permute.xlu0 %688
    %vm690 = vcmp.lt.s32.totalorder %v382, 30
    %v691 = vsel %vm690, %v687, %v689
    %v692 = vsel %vm690, %v689, %v687
    %s693 = scalar_lea.vmem %s7, 19
    %v694 = vld [vmem:[%s693] ss:$8 sm:$0x3]
    %v696 = vlaneseq
    %v697 = vshrl.u32 %v696, 7
    %v698 = vsub.s32 0, %v697
    %v699 = vrot.slane %v694, %v698
    %v700 = vlaneseq
    %v701 = vshrl.u32 %v700, 7
    %v702 = vsub.s32 1, %v701
    %v703 = vrot.slane %v694, %v702
    %v706 = vmul.f32 %v692, %v699
    %v707 = vmul.f32 %v691, %v703
    %v708 = vadd.f32 %v678, %v706
    %v709 = vadd.f32 %v679, %v707
    %710 = vrot.lane.b32.xlu0 %v310, 2
    %v711 = vpop.permute.xlu0 %710
    %712 = vrot.lane.b32.xlu0 %v312, 2
    %v713 = vpop.permute.xlu0 %712
    %vm714 = vcmp.lt.s32.totalorder %v382, 2
    %v715 = vsel %vm714, %v711, %v713
    %v716 = vsel %vm714, %v713, %v711
    %s717 = scalar_lea.vmem %s7, 20
    %v718 = vld [vmem:[%s717] ss:$8 sm:$0x3]
    %v720 = vlaneseq
    %v721 = vshrl.u32 %v720, 7
    %v722 = vsub.s32 0, %v721
    %v723 = vrot.slane %v718, %v722
    %v724 = vlaneseq
    %v725 = vshrl.u32 %v724, 7
    %v726 = vsub.s32 1, %v725
    %v727 = vrot.slane %v718, %v726
    %v730 = vmul.f32 %v716, %v723
    %v731 = vmul.f32 %v715, %v727
    %v732 = vadd.f32 %v708, %v730
    %v733 = vadd.f32 %v709, %v731
    %v736 = vrot.slane %v310, 4
    %v737 = vrot.slane %v312, 4
    %v740 = vadd.f32 %v732, %v736
    %v741 = vadd.f32 %v733, %v737
    %742 = vrot.lane.b32.xlu0 %v316, 126
    %v743 = vpop.permute.xlu0 %742
    %744 = vrot.lane.b32.xlu0 %v318, 126
    %v745 = vpop.permute.xlu0 %744
    %vm746 = vcmp.lt.s32.totalorder %v382, 126
    %v747 = vsel %vm746, %v743, %v745
    %v748 = vsel %vm746, %v745, %v743
    %s749 = scalar_lea.vmem %s7, 22
    %v750 = vld [vmem:[%s749] ss:$8 sm:$0x3]
    %v752 = vlaneseq
    %v753 = vshrl.u32 %v752, 7
    %v754 = vsub.s32 0, %v753
    %v755 = vrot.slane %v750, %v754
    %v756 = vlaneseq
    %v757 = vshrl.u32 %v756, 7
    %v758 = vsub.s32 1, %v757
    %v759 = vrot.slane %v750, %v758
    %v762 = vmul.f32 %v747, %v755
    %v763 = vmul.f32 %v748, %v759
    %v764 = vadd.f32 %v740, %v762
    %v765 = vadd.f32 %v741, %v763
    %v768 = vrot.slane %v316, 4
    %v769 = vrot.slane %v318, 4
    %772 = vrot.lane.b32.xlu0 %v768, 98
    %v773 = vpop.permute.xlu0 %772
    %774 = vrot.lane.b32.xlu0 %v769, 98
    %v775 = vpop.permute.xlu0 %774
    %vm776 = vcmp.lt.s32.totalorder %v382, 98
    %v777 = vsel %vm776, %v773, %v775
    %v778 = vsel %vm776, %v775, %v773
    %s779 = scalar_lea.vmem %s7, 23
    %v780 = vld [vmem:[%s779] ss:$8 sm:$0x3]
    %v782 = vlaneseq
    %v783 = vshrl.u32 %v782, 7
    %v784 = vsub.s32 0, %v783
    %v785 = vrot.slane %v780, %v784
    %v786 = vlaneseq
    %v787 = vshrl.u32 %v786, 7
    %v788 = vsub.s32 1, %v787
    %v789 = vrot.slane %v780, %v788
    %v792 = vmul.f32 %v777, %v785
    %v793 = vmul.f32 %v778, %v789
    %v794 = vadd.f32 %v764, %v792
    %v795 = vadd.f32 %v765, %v793
    %796 = vrot.lane.b32.xlu0 %v322, 96
    %v797 = vpop.permute.xlu0 %796
    %798 = vrot.lane.b32.xlu0 %v324, 96
    %v799 = vpop.permute.xlu0 %798
    %vm800 = vcmp.lt.s32.totalorder %v382, 96
    %v801 = vsel %vm800, %v797, %v799
    %v802 = vsel %vm800, %v799, %v797
    %s803 = scalar_lea.vmem %s7, 32
    %v804 = vld [vmem:[%s803] ss:$8 sm:$0x3]
    %v806 = vlaneseq
    %v807 = vshrl.u32 %v806, 7
    %v808 = vsub.s32 0, %v807
    %v809 = vrot.slane %v804, %v808
    %v810 = vlaneseq
    %v811 = vshrl.u32 %v810, 7
    %v812 = vsub.s32 1, %v811
    %v813 = vrot.slane %v804, %v812
    %v816 = vmul.f32 %v801, %v809
    %v817 = vmul.f32 %v802, %v813
    %v818 = vadd.f32 %v794, %v816
    %v819 = vadd.f32 %v795, %v817
    %v822 = vrot.slane %v322, 4
    %v823 = vrot.slane %v324, 4
    %826 = vrot.lane.b32.xlu0 %v822, 94
    %v827 = vpop.permute.xlu0 %826
    %828 = vrot.lane.b32.xlu0 %v823, 94
    %v829 = vpop.permute.xlu0 %828
    %vm830 = vcmp.lt.s32.totalorder %v382, 94
    %v831 = vsel %vm830, %v827, %v829
    %v832 = vsel %vm830, %v829, %v827
    %s833 = scalar_lea.vmem %s7, 33
    %v834 = vld [vmem:[%s833] ss:$8 sm:$0x3]
    %v836 = vlaneseq
    %v837 = vshrl.u32 %v836, 7
    %v838 = vsub.s32 0, %v837
    %v839 = vrot.slane %v834, %v838
    %v840 = vlaneseq
    %v841 = vshrl.u32 %v840, 7
    %v842 = vsub.s32 1, %v841
    %v843 = vrot.slane %v834, %v842
    %v846 = vmul.f32 %v831, %v839
    %v847 = vmul.f32 %v832, %v843
    %v848 = vadd.f32 %v818, %v846
    %v849 = vadd.f32 %v819, %v847
    %v850 = vmul.f32 %v848, 0.999995
    %v851 = vmul.f32 %v849, 0.999995
    %v852 = vmax.f32 %v850, 0.0
    %v853 = vmax.f32 %v851, 0.0
    %855 = vset.pattern.permute.xlu0 0
    %856 = vperm.xlu0 %855, %v62
    %v857 = vpop.permute.xlu0 %856
    %v859 = vmul.f32 %v857, %v852
    %v860 = vmul.f32 %v857, %v853
    %v861 = vsel %vm200, %v859, 0.0
    %v862 = vrot.slane %v861, 4
    %v863 = vadd.f32 %v861, %v862
    %v864 = vrot.slane %v863, 2
    %v865 = vadd.f32 %v863, %v864
    %v866 = vrot.slane %v865, 1
    %v867 = vadd.f32 %v865, %v866
    %v868 = vsel %vm200, %v860, 0.0
    %v869 = vrot.slane %v868, 4
    %v870 = vadd.f32 %v868, %v869
    %v871 = vrot.slane %v870, 2
    %v872 = vadd.f32 %v870, %v871
    %v873 = vrot.slane %v872, 1
    %v874 = vadd.f32 %v872, %v873
    %v875 = vadd.f32 %v626, %v867
    %v876 = vadd.f32 %v627, %v874
    %877 = vrot.lane.b32.xlu0 %v328, 51
    %v878 = vpop.permute.xlu0 %877
    %879 = vrot.lane.b32.xlu0 %v330, 51
    %v880 = vpop.permute.xlu0 %879
    %vm881 = vcmp.lt.s32.totalorder %v382, 51
    %v882 = vsel %vm881, %v878, %v880
    %v883 = vsel %vm881, %v880, %v878
    %s884 = scalar_lea.vmem %s7, 34
    %v885 = vld [vmem:[%s884] ss:$8 sm:$0x3]
    %v887 = vlaneseq
    %v888 = vshrl.u32 %v887, 7
    %v889 = vsub.s32 0, %v888
    %v890 = vrot.slane %v885, %v889
    %v891 = vlaneseq
    %v892 = vshrl.u32 %v891, 7
    %v893 = vsub.s32 1, %v892
    %v894 = vrot.slane %v885, %v893
    %v897 = vmul.f32 %v883, %v890
    %v898 = vmul.f32 %v882, %v894
    %v901 = vrot.slane %v328, 4
    %v902 = vrot.slane %v330, 4
    %905 = vrot.lane.b32.xlu0 %v901, 48
    %v906 = vpop.permute.xlu0 %905
    %907 = vrot.lane.b32.xlu0 %v902, 48
    %v908 = vpop.permute.xlu0 %907
    %vm909 = vcmp.lt.s32.totalorder %v382, 48
    %v910 = vsel %vm909, %v906, %v908
    %v911 = vsel %vm909, %v908, %v906
    %s912 = scalar_lea.vmem %s7, 35
    %v913 = vld [vmem:[%s912] ss:$8 sm:$0x3]
    %v915 = vlaneseq
    %v916 = vshrl.u32 %v915, 7
    %v917 = vsub.s32 0, %v916
    %v918 = vrot.slane %v913, %v917
    %v919 = vlaneseq
    %v920 = vshrl.u32 %v919, 7
    %v921 = vsub.s32 1, %v920
    %v922 = vrot.slane %v913, %v921
    %v925 = vmul.f32 %v911, %v918
    %v926 = vmul.f32 %v910, %v922
    %v927 = vadd.f32 %v897, %v925
    %v928 = vadd.f32 %v898, %v926
    %929 = vrot.lane.b32.xlu0 %v334, 45
    %v930 = vpop.permute.xlu0 %929
    %931 = vrot.lane.b32.xlu0 %v336, 45
    %v932 = vpop.permute.xlu0 %931
    %vm933 = vcmp.lt.s32.totalorder %v382, 45
    %v934 = vsel %vm933, %v930, %v932
    %v935 = vsel %vm933, %v932, %v930
    %s936 = scalar_lea.vmem %s7, 36
    %v937 = vld [vmem:[%s936] ss:$8 sm:$0x3]
    %v939 = vlaneseq
    %v940 = vshrl.u32 %v939, 7
    %v941 = vsub.s32 0, %v940
    %v942 = vrot.slane %v937, %v941
    %v943 = vlaneseq
    %v944 = vshrl.u32 %v943, 7
    %v945 = vsub.s32 1, %v944
    %v946 = vrot.slane %v937, %v945
    %v949 = vmul.f32 %v935, %v942
    %v950 = vmul.f32 %v934, %v946
    %v951 = vadd.f32 %v927, %v949
    %v952 = vadd.f32 %v928, %v950
    %v955 = vrot.slane %v334, 4
    %v956 = vrot.slane %v336, 4
    %959 = vrot.lane.b32.xlu0 %v955, 3
    %v960 = vpop.permute.xlu0 %959
    %961 = vrot.lane.b32.xlu0 %v956, 3
    %v962 = vpop.permute.xlu0 %961
    %vm963 = vcmp.lt.s32.totalorder %v382, 3
    %v964 = vsel %vm963, %v960, %v962
    %v965 = vsel %vm963, %v962, %v960
    %s966 = scalar_lea.vmem %s7, 37
    %v967 = vld [vmem:[%s966] ss:$8 sm:$0x3]
    %v969 = vlaneseq
    %v970 = vshrl.u32 %v969, 7
    %v971 = vsub.s32 0, %v970
    %v972 = vrot.slane %v967, %v971
    %v973 = vlaneseq
    %v974 = vshrl.u32 %v973, 7
    %v975 = vsub.s32 1, %v974
    %v976 = vrot.slane %v967, %v975
    %v979 = vmul.f32 %v965, %v972
    %v980 = vmul.f32 %v964, %v976
    %v981 = vadd.f32 %v951, %v979
    %v982 = vadd.f32 %v952, %v980
    %v983 = vadd.f32 %v981, %v340
    %v984 = vadd.f32 %v982, %v342
    %v987 = vrot.slane %v340, 4
    %v988 = vrot.slane %v342, 4
    %991 = vrot.lane.b32.xlu0 %v987, 125
    %v992 = vpop.permute.xlu0 %991
    %993 = vrot.lane.b32.xlu0 %v988, 125
    %v994 = vpop.permute.xlu0 %993
    %vm995 = vcmp.lt.s32.totalorder %v382, 125
    %v996 = vsel %vm995, %v992, %v994
    %v997 = vsel %vm995, %v994, %v992
    %s998 = scalar_lea.vmem %s7, 39
    %v999 = vld [vmem:[%s998] ss:$8 sm:$0x3]
    %v1001 = vlaneseq
    %v1002 = vshrl.u32 %v1001, 7
    %v1003 = vsub.s32 0, %v1002
    %v1004 = vrot.slane %v999, %v1003
    %v1005 = vlaneseq
    %v1006 = vshrl.u32 %v1005, 7
    %v1007 = vsub.s32 1, %v1006
    %v1008 = vrot.slane %v999, %v1007
    %v1011 = vmul.f32 %v996, %v1004
    %v1012 = vmul.f32 %v997, %v1008
    %v1013 = vadd.f32 %v983, %v1011
    %v1014 = vadd.f32 %v984, %v1012
    %1015 = vrot.lane.b32.xlu0 %v346, 83
    %v1016 = vpop.permute.xlu0 %1015
    %1017 = vrot.lane.b32.xlu0 %v348, 83
    %v1018 = vpop.permute.xlu0 %1017
    %vm1019 = vcmp.lt.s32.totalorder %v382, 83
    %v1020 = vsel %vm1019, %v1016, %v1018
    %v1021 = vsel %vm1019, %v1018, %v1016
    %s1022 = scalar_lea.vmem %s7, 48
    %v1023 = vld [vmem:[%s1022] ss:$8 sm:$0x3]
    %v1025 = vlaneseq
    %v1026 = vshrl.u32 %v1025, 7
    %v1027 = vsub.s32 0, %v1026
    %v1028 = vrot.slane %v1023, %v1027
    %v1029 = vlaneseq
    %v1030 = vshrl.u32 %v1029, 7
    %v1031 = vsub.s32 1, %v1030
    %v1032 = vrot.slane %v1023, %v1031
    %v1035 = vmul.f32 %v1020, %v1028
    %v1036 = vmul.f32 %v1021, %v1032
    %v1037 = vadd.f32 %v1013, %v1035
    %v1038 = vadd.f32 %v1014, %v1036
    %v1041 = vrot.slane %v346, 4
    %v1042 = vrot.slane %v348, 4
    %1045 = vrot.lane.b32.xlu0 %v1041, 80
    %v1046 = vpop.permute.xlu0 %1045
    %1047 = vrot.lane.b32.xlu0 %v1042, 80
    %v1048 = vpop.permute.xlu0 %1047
    %vm1049 = vcmp.lt.s32.totalorder %v382, 80
    %v1050 = vsel %vm1049, %v1046, %v1048
    %v1051 = vsel %vm1049, %v1048, %v1046
    %s1052 = scalar_lea.vmem %s7, 49
    %v1053 = vld [vmem:[%s1052] ss:$8 sm:$0x3]
    %v1055 = vlaneseq
    %v1056 = vshrl.u32 %v1055, 7
    %v1057 = vsub.s32 0, %v1056
    %v1058 = vrot.slane %v1053, %v1057
    %v1059 = vlaneseq
    %v1060 = vshrl.u32 %v1059, 7
    %v1061 = vsub.s32 1, %v1060
    %v1062 = vrot.slane %v1053, %v1061
    %v1065 = vmul.f32 %v1050, %v1058
    %v1066 = vmul.f32 %v1051, %v1062
    %v1067 = vadd.f32 %v1037, %v1065
    %v1068 = vadd.f32 %v1038, %v1066
    %1069 = vrot.lane.b32.xlu0 %v352, 77
    %v1070 = vpop.permute.xlu0 %1069
    %1071 = vrot.lane.b32.xlu0 %v354, 77
    %v1072 = vpop.permute.xlu0 %1071
    %vm1073 = vcmp.lt.s32.totalorder %v382, 77
    %v1074 = vsel %vm1073, %v1070, %v1072
    %v1075 = vsel %vm1073, %v1072, %v1070
    %s1076 = scalar_lea.vmem %s7, 50
    %v1077 = vld [vmem:[%s1076] ss:$8 sm:$0x3]
    %v1079 = vlaneseq
    %v1080 = vshrl.u32 %v1079, 7
    %v1081 = vsub.s32 0, %v1080
    %v1082 = vrot.slane %v1077, %v1081
    %v1083 = vlaneseq
    %v1084 = vshrl.u32 %v1083, 7
    %v1085 = vsub.s32 1, %v1084
    %v1086 = vrot.slane %v1077, %v1085
    %v1089 = vmul.f32 %v1074, %v1082
    %v1090 = vmul.f32 %v1075, %v1086
    %v1091 = vadd.f32 %v1067, %v1089
    %v1092 = vadd.f32 %v1068, %v1090
    %v1093 = vmul.f32 %v1091, 0.999995
    %v1094 = vmul.f32 %v1092, 0.999995
    %v1095 = vmax.f32 %v1093, 0.0
    %v1096 = vmax.f32 %v1094, 0.0
    %v1099 = vrot.slane %v1095, 4
    %v1100 = vrot.slane %v1096, 4
    %v1103 = vmul.f32 %v857, %v1099
    %v1104 = vmul.f32 %v857, %v1100
    %v1107 = vrot.slane %v1103, 4
    %v1108 = vrot.slane %v1104, 4
    %v1111 = vsel %vm200, %v1107, 0.0
    %v1112 = vrot.slane %v1111, 4
    %v1113 = vadd.f32 %v1111, %v1112
    %v1114 = vrot.slane %v1113, 2
    %v1115 = vadd.f32 %v1113, %v1114
    %v1116 = vrot.slane %v1115, 1
    %v1117 = vadd.f32 %v1115, %v1116
    %v1118 = vsel %vm200, %v1108, 0.0
    %v1119 = vrot.slane %v1118, 4
    %v1120 = vadd.f32 %v1118, %v1119
    %v1121 = vrot.slane %v1120, 2
    %v1122 = vadd.f32 %v1120, %v1121
    %v1123 = vrot.slane %v1122, 1
    %v1124 = vadd.f32 %v1122, %v1123
    %v1125 = vadd.f32 %v875, %v1117
    %v1126 = vadd.f32 %v876, %v1124
    %v1127 = vmul.f32 %v1125, 0.999995
    %v1128 = vmul.f32 %v1126, 0.999995
    %v1129 = vmax.f32 %v1127, 0.0
    %v1130 = vmax.f32 %v1128, 0.0
    %v1131 = vpack.c.bf16 %v155, %v155
    %v1132 = vpack.c.bf16 %v156, %v156
    %v1135 = vrot.slane %v1131, 2
    %v1136 = vrot.slane %v1132, 2
    %1139 = vxpose.xlu0.c.b16.start [1/8] %v1135, 128
    %1140 = vxpose.xlu0.c.b16.cont [2/8] 0, 128
    %1141 = vxpose.xlu0.c.b16.cont [3/8] 0, 128
    %1142 = vxpose.xlu0.c.b16.cont [4/8] 0, 128
    %1143 = vxpose.xlu0.c.b16.cont [5/8] 0, 128
    %1144 = vxpose.xlu0.c.b16.cont [6/8] 0, 128
    %1145 = vxpose.xlu0.c.b16.cont [7/8] 0, 128
    %1146 = vxpose.xlu0.c.b16.end [8/8] 0, 128
    %v1147 = vpop.trf.xlu0
    %v1148 = vpop.trf.xlu0
    %v1149 = vpop.trf.xlu0
    %v1150 = vpop.trf.xlu0
    %v1151 = vpop.trf.xlu0
    %v1152 = vpop.trf.xlu0
    %v1153 = vpop.trf.xlu0
    %v1154 = vpop.trf.xlu0
    %1155 = vxpose.xlu0.c.b16.start [1/8] %v1136, 128
    %1156 = vxpose.xlu0.c.b16.cont [2/8] 0, 128
    %1157 = vxpose.xlu0.c.b16.cont [3/8] 0, 128
    %1158 = vxpose.xlu0.c.b16.cont [4/8] 0, 128
    %1159 = vxpose.xlu0.c.b16.cont [5/8] 0, 128
    %1160 = vxpose.xlu0.c.b16.cont [6/8] 0, 128
    %1161 = vxpose.xlu0.c.b16.cont [7/8] 0, 128
    %1162 = vxpose.xlu0.c.b16.end [8/8] 0, 128
    %v1163 = vpop.trf.xlu0
    %v1164 = vpop.trf.xlu0
    %v1165 = vpop.trf.xlu0
    %v1166 = vpop.trf.xlu0
    %v1167 = vpop.trf.xlu0
    %v1168 = vpop.trf.xlu0
    %v1169 = vpop.trf.xlu0
    %v1170 = vpop.trf.xlu0
    %v1172 = vsel %vm157, %v1147, 0
    %v1175 = vsel %vm157, %v1148, 0
    %v1178 = vsel %vm157, %v1149, 0
    %v1181 = vsel %vm157, %v1150, 0
    %v1184 = vsel %vm157, %v1151, 0
    %v1187 = vsel %vm157, %v1152, 0
    %v1190 = vsel %vm157, %v1153, 0
    %v1193 = vsel %vm157, %v1154, 0
    %v1196 = vsel %vm157, %v1163, 0
    %v1199 = vsel %vm157, %v1164, 0
    %v1202 = vsel %vm157, %v1165, 0
    %v1205 = vsel %vm157, %v1166, 0
    %v1208 = vsel %vm157, %v1167, 0
    %v1211 = vsel %vm157, %v1168, 0
    %v1214 = vsel %vm157, %v1169, 0
    %v1217 = vsel %vm157, %v1170, 0
    %vm1219 = vcmask 1041408
    %v1221 = vsel %vm1219, %v1135, 0
    %v1224 = vsel %vm1219, %v1136, 0
    %1226 = vmatprep.subr.bf16.mxu0 %v1224
    %1227 = vmatpush1.bf16.msra.mxu0 %v1221
    %1228 = vmatprep.subr.bf16.mxu0 0
    %1229 = vmatpush1.bf16.msra.mxu0 0
    %1230 = vmatprep.subr.bf16.mxu0 0
    %1231 = vmatpush1.bf16.msra.mxu0 0
    %1232 = vmatprep.subr.bf16.mxu0 0
    %1233 = vmatpush1.bf16.msra.mxu0 0
    %1234 = vmatprep.subr.bf16.mxu0 0
    %1235 = vmatpush1.bf16.msra.mxu0 0
    %1236 = vmatprep.subr.bf16.mxu0 0
    %1237 = vmatpush1.bf16.msra.mxu0 0
    %1238 = vmatprep.subr.bf16.mxu0 0
    %1239 = vmatpush1.bf16.msra.mxu0 0
    %1240 = vmatprep.subr.bf16.mxu0 0
    %1241 = vmatpush1.bf16.msra.mxu0 0
    %1242 = vmatprep.subr.bf16.mxu0 0
    %1243 = vmatpush1.bf16.msra.mxu0 0
    %1244 = vmatprep.subr.bf16.mxu0 0
    %1245 = vmatpush1.bf16.msra.mxu0 0
    %1246 = vmatprep.subr.bf16.mxu0 0
    %1247 = vmatpush1.bf16.msra.mxu0 0
    %1248 = vmatprep.subr.bf16.mxu0 0
    %1249 = vmatpush1.bf16.msra.mxu0 0
    %1250 = vmatprep.subr.bf16.mxu0 0
    %1251 = vmatpush1.bf16.msra.mxu0 0
    %1252 = vmatprep.subr.bf16.mxu0 0
    %1253 = vmatpush1.bf16.msra.mxu0 0
    %1254 = vmatprep.subr.bf16.mxu0 0
    %1255 = vmatpush1.bf16.msra.mxu0 0
    %1256 = vmatprep.subr.bf16.mxu0 0
    %1257 = vmatpush1.bf16.msra.mxu0 0
    %1258 = vmatprep.mubr.bf16.mxu0 0
    %1259 = vmatmul.mubr.bf16.gmra.mrb[0].mxu0 %v1172
    %v1260 = vpop.f32.mrb[0].mxu0
    %v1261 = vadd.f32 0.0, %v1260
    %v1262 = vpop.f32.mrb[0].mxu0
    %v1263 = vadd.f32 0.0, %v1262
    %v1264 = vpop.f32.mrb[0].mxu0
    %v1265 = vadd.f32 0.0, %v1264
    %v1266 = vpop.f32.mrb[0].mxu0
    %v1267 = vadd.f32 0.0, %v1266
    %1268 = vmatprep.mubr.bf16.mxu0 0
    %1269 = vmatmul.mubr.bf16.gmra.mrb[0].mxu0 %v1175
    %v1270 = vpop.f32.mrb[0].mxu0
    %v1271 = vadd.f32 0.0, %v1270
    %v1272 = vpop.f32.mrb[0].mxu0
    %v1273 = vadd.f32 0.0, %v1272
    %v1274 = vpop.f32.mrb[0].mxu0
    %v1275 = vadd.f32 0.0, %v1274
    %v1276 = vpop.f32.mrb[0].mxu0
    %v1277 = vadd.f32 0.0, %v1276
    %1278 = vmatprep.mubr.bf16.mxu0 0
    %1279 = vmatmul.mubr.bf16.gmra.mrb[0].mxu0 %v1178
    %v1280 = vpop.f32.mrb[0].mxu0
    %v1281 = vadd.f32 0.0, %v1280
    %v1282 = vpop.f32.mrb[0].mxu0
    %v1283 = vadd.f32 0.0, %v1282
    %v1284 = vpop.f32.mrb[0].mxu0
    %v1285 = vadd.f32 0.0, %v1284
    %v1286 = vpop.f32.mrb[0].mxu0
    %v1287 = vadd.f32 0.0, %v1286
    %1288 = vmatprep.mubr.bf16.mxu0 0
    %1289 = vmatmul.mubr.bf16.gmra.mrb[0].mxu0 %v1181
    %v1290 = vpop.f32.mrb[0].mxu0
    %v1291 = vadd.f32 0.0, %v1290
    %v1292 = vpop.f32.mrb[0].mxu0
    %v1293 = vadd.f32 0.0, %v1292
    %v1294 = vpop.f32.mrb[0].mxu0
    %v1295 = vadd.f32 0.0, %v1294
    %v1296 = vpop.f32.mrb[0].mxu0
    %v1297 = vadd.f32 0.0, %v1296
    %1298 = vmatprep.mubr.bf16.mxu0 0
    %1299 = vmatmul.mubr.bf16.gmra.mrb[0].mxu0 %v1184
    %v1300 = vpop.f32.mrb[0].mxu0
    %v1301 = vadd.f32 0.0, %v1300
    %v1302 = vpop.f32.mrb[0].mxu0
    %v1303 = vadd.f32 0.0, %v1302
    %v1304 = vpop.f32.mrb[0].mxu0
    %v1305 = vadd.f32 0.0, %v1304
    %v1306 = vpop.f32.mrb[0].mxu0
    %v1307 = vadd.f32 0.0, %v1306
    %1308 = vmatprep.mubr.bf16.mxu0 0
    %1309 = vmatmul.mubr.bf16.gmra.mrb[0].mxu0 %v1187
    %v1310 = vpop.f32.mrb[0].mxu0
    %v1311 = vadd.f32 0.0, %v1310
    %v1312 = vpop.f32.mrb[0].mxu0
    %v1313 = vadd.f32 0.0, %v1312
    %v1314 = vpop.f32.mrb[0].mxu0
    %v1315 = vadd.f32 0.0, %v1314
    %v1316 = vpop.f32.mrb[0].mxu0
    %v1317 = vadd.f32 0.0, %v1316
    %1318 = vmatprep.mubr.bf16.mxu0 0
    %1319 = vmatmul.mubr.bf16.gmra.mrb[0].mxu0 %v1190
    %v1320 = vpop.f32.mrb[0].mxu0
    %v1321 = vadd.f32 0.0, %v1320
    %v1322 = vpop.f32.mrb[0].mxu0
    %v1323 = vadd.f32 0.0, %v1322
    %v1324 = vpop.f32.mrb[0].mxu0
    %v1325 = vadd.f32 0.0, %v1324
    %v1326 = vpop.f32.mrb[0].mxu0
    %v1327 = vadd.f32 0.0, %v1326
    %1328 = vmatprep.mubr.bf16.mxu0 0
    %1329 = vmatmul.mubr.bf16.gmra.mrb[0].mxu0 %v1193
    %v1330 = vpop.f32.mrb[0].mxu0
    %v1331 = vadd.f32 0.0, %v1330
    %v1332 = vpop.f32.mrb[0].mxu0
    %v1333 = vadd.f32 0.0, %v1332
    %v1334 = vpop.f32.mrb[0].mxu0
    %v1335 = vadd.f32 0.0, %v1334
    %v1336 = vpop.f32.mrb[0].mxu0
    %v1337 = vadd.f32 0.0, %v1336
    %1338 = vmatprep.mubr.bf16.mxu0 0
    %1339 = vmatmul.mubr.bf16.gmra.mrb[0].mxu0 %v1196
    %v1340 = vpop.f32.mrb[0].mxu0
    %v1341 = vadd.f32 0.0, %v1340
    %v1342 = vpop.f32.mrb[0].mxu0
    %v1343 = vadd.f32 0.0, %v1342
    %v1344 = vpop.f32.mrb[0].mxu0
    %v1345 = vadd.f32 0.0, %v1344
    %v1346 = vpop.f32.mrb[0].mxu0
    %v1347 = vadd.f32 0.0, %v1346
    %1348 = vmatprep.mubr.bf16.mxu0 0
    %1349 = vmatmul.mubr.bf16.gmra.mrb[0].mxu0 %v1199
    %v1350 = vpop.f32.mrb[0].mxu0
    %v1351 = vadd.f32 0.0, %v1350
    %v1352 = vpop.f32.mrb[0].mxu0
    %v1353 = vadd.f32 0.0, %v1352
    %v1354 = vpop.f32.mrb[0].mxu0
    %v1355 = vadd.f32 0.0, %v1354
    %v1356 = vpop.f32.mrb[0].mxu0
    %v1357 = vadd.f32 0.0, %v1356
    %1358 = vmatprep.mubr.bf16.mxu0 0
    %1359 = vmatmul.mubr.bf16.gmra.mrb[0].mxu0 %v1202
    %v1360 = vpop.f32.mrb[0].mxu0
    %v1361 = vadd.f32 0.0, %v1360
    %v1362 = vpop.f32.mrb[0].mxu0
    %v1363 = vadd.f32 0.0, %v1362
    %v1364 = vpop.f32.mrb[0].mxu0
    %v1365 = vadd.f32 0.0, %v1364
    %v1366 = vpop.f32.mrb[0].mxu0
    %v1367 = vadd.f32 0.0, %v1366
    %1368 = vmatprep.mubr.bf16.mxu0 0
    %1369 = vmatmul.mubr.bf16.gmra.mrb[0].mxu0 %v1205
    %v1370 = vpop.f32.mrb[0].mxu0
    %v1371 = vadd.f32 0.0, %v1370
    %v1372 = vpop.f32.mrb[0].mxu0
    %v1373 = vadd.f32 0.0, %v1372
    %v1374 = vpop.f32.mrb[0].mxu0
    %v1375 = vadd.f32 0.0, %v1374
    %v1376 = vpop.f32.mrb[0].mxu0
    %v1377 = vadd.f32 0.0, %v1376
    %1378 = vmatprep.mubr.bf16.mxu0 0
    %1379 = vmatmul.mubr.bf16.gmra.mrb[0].mxu0 %v1208
    %v1380 = vpop.f32.mrb[0].mxu0
    %v1381 = vadd.f32 0.0, %v1380
    %v1382 = vpop.f32.mrb[0].mxu0
    %v1383 = vadd.f32 0.0, %v1382
    %v1384 = vpop.f32.mrb[0].mxu0
    %v1385 = vadd.f32 0.0, %v1384
    %v1386 = vpop.f32.mrb[0].mxu0
    %v1387 = vadd.f32 0.0, %v1386
    %1388 = vmatprep.mubr.bf16.mxu0 0
    %1389 = vmatmul.mubr.bf16.gmra.mrb[0].mxu0 %v1211
    %v1390 = vpop.f32.mrb[0].mxu0
    %v1391 = vadd.f32 0.0, %v1390
    %v1392 = vpop.f32.mrb[0].mxu0
    %v1393 = vadd.f32 0.0, %v1392
    %v1394 = vpop.f32.mrb[0].mxu0
    %v1395 = vadd.f32 0.0, %v1394
    %v1396 = vpop.f32.mrb[0].mxu0
    %v1397 = vadd.f32 0.0, %v1396
    %1398 = vmatprep.mubr.bf16.mxu0 0
    %1399 = vmatmul.mubr.bf16.gmra.mrb[0].mxu0 %v1214
    %v1400 = vpop.f32.mrb[0].mxu0
    %v1401 = vadd.f32 0.0, %v1400
    %v1402 = vpop.f32.mrb[0].mxu0
    %v1403 = vadd.f32 0.0, %v1402
    %v1404 = vpop.f32.mrb[0].mxu0
    %v1405 = vadd.f32 0.0, %v1404
    %v1406 = vpop.f32.mrb[0].mxu0
    %v1407 = vadd.f32 0.0, %v1406
    %1408 = vmatprep.mubr.bf16.mxu0 0
    %1409 = vmatmul.mubr.bf16.gmra.mrb[0].mxu0 %v1217
    %v1410 = vpop.f32.mrb[0].mxu0
    %v1411 = vadd.f32 0.0, %v1410
    %v1412 = vpop.f32.mrb[0].mxu0
    %v1413 = vadd.f32 0.0, %v1412
    %v1414 = vpop.f32.mrb[0].mxu0
    %v1415 = vadd.f32 0.0, %v1414
    %v1416 = vpop.f32.mrb[0].mxu0
    %v1417 = vadd.f32 0.0, %v1416
    %1418 = vdwg.mxu0
    %v1419 = vmax.f32 %v1261, %v1263
    %1420 = vmax.xlane.f32.xlu0 %v1419
    %v1421 = vpop.xlane.xlu0 %1420
    %v1422 = vmax.f32 %v1265, %v1267
    %1423 = vmax.xlane.f32.xlu0 %v1422
    %v1424 = vpop.xlane.xlu0 %1423
    %v1425 = vmax.f32 %v1271, %v1273
    %1426 = vmax.xlane.f32.xlu0 %v1425
    %v1427 = vpop.xlane.xlu0 %1426
    %v1428 = vmax.f32 %v1275, %v1277
    %1429 = vmax.xlane.f32.xlu0 %v1428
    %v1430 = vpop.xlane.xlu0 %1429
    %v1431 = vmax.f32 %v1281, %v1283
    %1432 = vmax.xlane.f32.xlu0 %v1431
    %v1433 = vpop.xlane.xlu0 %1432
    %v1434 = vmax.f32 %v1285, %v1287
    %1435 = vmax.xlane.f32.xlu0 %v1434
    %v1436 = vpop.xlane.xlu0 %1435
    %v1437 = vmax.f32 %v1291, %v1293
    %1438 = vmax.xlane.f32.xlu0 %v1437
    %v1439 = vpop.xlane.xlu0 %1438
    %v1440 = vmax.f32 %v1295, %v1297
    %1441 = vmax.xlane.f32.xlu0 %v1440
    %v1442 = vpop.xlane.xlu0 %1441
    %v1443 = vmax.f32 %v1301, %v1303
    %1444 = vmax.xlane.f32.xlu0 %v1443
    %v1445 = vpop.xlane.xlu0 %1444
    %v1446 = vmax.f32 %v1305, %v1307
    %1447 = vmax.xlane.f32.xlu0 %v1446
    %v1448 = vpop.xlane.xlu0 %1447
    %v1449 = vmax.f32 %v1311, %v1313
    %1450 = vmax.xlane.f32.xlu0 %v1449
    %v1451 = vpop.xlane.xlu0 %1450
    %v1452 = vmax.f32 %v1315, %v1317
    %1453 = vmax.xlane.f32.xlu0 %v1452
    %v1454 = vpop.xlane.xlu0 %1453
    %v1455 = vmax.f32 %v1321, %v1323
    %1456 = vmax.xlane.f32.xlu0 %v1455
    %v1457 = vpop.xlane.xlu0 %1456
    %v1458 = vmax.f32 %v1325, %v1327
    %1459 = vmax.xlane.f32.xlu0 %v1458
    %v1460 = vpop.xlane.xlu0 %1459
    %v1461 = vmax.f32 %v1331, %v1333
    %1462 = vmax.xlane.f32.xlu0 %v1461
    %v1463 = vpop.xlane.xlu0 %1462
    %v1464 = vmax.f32 %v1335, %v1337
    %1465 = vmax.xlane.f32.xlu0 %v1464
    %v1466 = vpop.xlane.xlu0 %1465
    %v1467 = vmax.f32 %v1341, %v1343
    %1468 = vmax.xlane.f32.xlu0 %v1467
    %v1469 = vpop.xlane.xlu0 %1468
    %v1470 = vmax.f32 %v1345, %v1347
    %1471 = vmax.xlane.f32.xlu0 %v1470
    %v1472 = vpop.xlane.xlu0 %1471
    %v1473 = vmax.f32 %v1351, %v1353
    %1474 = vmax.xlane.f32.xlu0 %v1473
    %v1475 = vpop.xlane.xlu0 %1474
    %v1476 = vmax.f32 %v1355, %v1357
    %1477 = vmax.xlane.f32.xlu0 %v1476
    %v1478 = vpop.xlane.xlu0 %1477
    %v1479 = vmax.f32 %v1361, %v1363
    %1480 = vmax.xlane.f32.xlu0 %v1479
    %v1481 = vpop.xlane.xlu0 %1480
    %v1482 = vmax.f32 %v1365, %v1367
    %1483 = vmax.xlane.f32.xlu0 %v1482
    %v1484 = vpop.xlane.xlu0 %1483
    %v1485 = vmax.f32 %v1371, %v1373
    %1486 = vmax.xlane.f32.xlu0 %v1485
    %v1487 = vpop.xlane.xlu0 %1486
    %v1488 = vmax.f32 %v1375, %v1377
    %1489 = vmax.xlane.f32.xlu0 %v1488
    %v1490 = vpop.xlane.xlu0 %1489
    %v1491 = vmax.f32 %v1381, %v1383
    %1492 = vmax.xlane.f32.xlu0 %v1491
    %v1493 = vpop.xlane.xlu0 %1492
    %v1494 = vmax.f32 %v1385, %v1387
    %1495 = vmax.xlane.f32.xlu0 %v1494
    %v1496 = vpop.xlane.xlu0 %1495
    %v1497 = vmax.f32 %v1391, %v1393
    %1498 = vmax.xlane.f32.xlu0 %v1497
    %v1499 = vpop.xlane.xlu0 %1498
    %v1500 = vmax.f32 %v1395, %v1397
    %1501 = vmax.xlane.f32.xlu0 %v1500
    %v1502 = vpop.xlane.xlu0 %1501
    %v1503 = vmax.f32 %v1401, %v1403
    %1504 = vmax.xlane.f32.xlu0 %v1503
    %v1505 = vpop.xlane.xlu0 %1504
    %v1506 = vmax.f32 %v1405, %v1407
    %1507 = vmax.xlane.f32.xlu0 %v1506
    %v1508 = vpop.xlane.xlu0 %1507
    %v1509 = vmax.f32 %v1411, %v1413
    %1510 = vmax.xlane.f32.xlu0 %v1509
    %v1511 = vpop.xlane.xlu0 %1510
    %v1512 = vmax.f32 %v1415, %v1417
    %1513 = vmax.xlane.f32.xlu0 %v1512
    %v1514 = vpop.xlane.xlu0 %1513
    %v1515 = vsub.f32 %v1261, %v1421
    %v1516 = vsub.f32 %v1263, %v1421
    %v1517 = vsub.f32 %v1265, %v1424
    %v1518 = vsub.f32 %v1267, %v1424
    %v1519 = vsub.f32 %v1271, %v1427
    %v1520 = vsub.f32 %v1273, %v1427
    %v1521 = vsub.f32 %v1275, %v1430
    %v1522 = vsub.f32 %v1277, %v1430
    %v1523 = vsub.f32 %v1281, %v1433
    %v1524 = vsub.f32 %v1283, %v1433
    %v1525 = vsub.f32 %v1285, %v1436
    %v1526 = vsub.f32 %v1287, %v1436
    %v1527 = vsub.f32 %v1291, %v1439
    %v1528 = vsub.f32 %v1293, %v1439
    %v1529 = vsub.f32 %v1295, %v1442
    %v1530 = vsub.f32 %v1297, %v1442
    %v1531 = vsub.f32 %v1301, %v1445
    %v1532 = vsub.f32 %v1303, %v1445
    %v1533 = vsub.f32 %v1305, %v1448
    %v1534 = vsub.f32 %v1307, %v1448
    %v1535 = vsub.f32 %v1311, %v1451
    %v1536 = vsub.f32 %v1313, %v1451
    %v1537 = vsub.f32 %v1315, %v1454
    %v1538 = vsub.f32 %v1317, %v1454
    %v1539 = vsub.f32 %v1321, %v1457
    %v1540 = vsub.f32 %v1323, %v1457
    %v1541 = vsub.f32 %v1325, %v1460
    %v1542 = vsub.f32 %v1327, %v1460
    %v1543 = vsub.f32 %v1331, %v1463
    %v1544 = vsub.f32 %v1333, %v1463
    %v1545 = vsub.f32 %v1335, %v1466
    %v1546 = vsub.f32 %v1337, %v1466
    %v1547 = vsub.f32 %v1341, %v1469
    %v1548 = vsub.f32 %v1343, %v1469
    %v1549 = vsub.f32 %v1345, %v1472
    %v1550 = vsub.f32 %v1347, %v1472
    %v1551 = vsub.f32 %v1351, %v1475
    %v1552 = vsub.f32 %v1353, %v1475
    %v1553 = vsub.f32 %v1355, %v1478
    %v1554 = vsub.f32 %v1357, %v1478
    %v1555 = vsub.f32 %v1361, %v1481
    %v1556 = vsub.f32 %v1363, %v1481
    %v1557 = vsub.f32 %v1365, %v1484
    %v1558 = vsub.f32 %v1367, %v1484
    %v1559 = vsub.f32 %v1371, %v1487
    %v1560 = vsub.f32 %v1373, %v1487
    %v1561 = vsub.f32 %v1375, %v1490
    %v1562 = vsub.f32 %v1377, %v1490
    %v1563 = vsub.f32 %v1381, %v1493
    %v1564 = vsub.f32 %v1383, %v1493
    %v1565 = vsub.f32 %v1385, %v1496
    %v1566 = vsub.f32 %v1387, %v1496
    %v1567 = vsub.f32 %v1391, %v1499
    %v1568 = vsub.f32 %v1393, %v1499
    %v1569 = vsub.f32 %v1395, %v1502
    %v1570 = vsub.f32 %v1397, %v1502
    %v1571 = vsub.f32 %v1401, %v1505
    %v1572 = vsub.f32 %v1403, %v1505
    %v1573 = vsub.f32 %v1405, %v1508
    %v1574 = vsub.f32 %v1407, %v1508
    %v1575 = vsub.f32 %v1411, %v1511
    %v1576 = vsub.f32 %v1413, %v1511
    %v1577 = vsub.f32 %v1415, %v1514
    %v1578 = vsub.f32 %v1417, %v1514
    %v1579 = vmul.f32 %v1515, 1.442695
    %v1580 = vpow.pop %v1579
    %v1581 = vmul.f32 %v1516, 1.442695
    %v1582 = vpow.pop %v1581
    %v1583 = vmul.f32 %v1517, 1.442695
    %v1584 = vpow.pop %v1583
    %v1585 = vmul.f32 %v1518, 1.442695
    %v1586 = vpow.pop %v1585
    %v1587 = vmul.f32 %v1519, 1.442695
    %v1588 = vpow.pop %v1587
    %v1589 = vmul.f32 %v1520, 1.442695
    %v1590 = vpow.pop %v1589
    %v1591 = vmul.f32 %v1521, 1.442695
    %v1592 = vpow.pop %v1591
    %v1593 = vmul.f32 %v1522, 1.442695
    %v1594 = vpow.pop %v1593
    %v1595 = vmul.f32 %v1523, 1.442695
    %v1596 = vpow.pop %v1595
    %v1597 = vmul.f32 %v1524, 1.442695
    %v1598 = vpow.pop %v1597
    %v1599 = vmul.f32 %v1525, 1.442695
    %v1600 = vpow.pop %v1599
    %v1601 = vmul.f32 %v1526, 1.442695
    %v1602 = vpow.pop %v1601
    %v1603 = vmul.f32 %v1527, 1.442695
    %v1604 = vpow.pop %v1603
    %v1605 = vmul.f32 %v1528, 1.442695
    %v1606 = vpow.pop %v1605
    %v1607 = vmul.f32 %v1529, 1.442695
    %v1608 = vpow.pop %v1607
    %v1609 = vmul.f32 %v1530, 1.442695
    %v1610 = vpow.pop %v1609
    %v1611 = vmul.f32 %v1531, 1.442695
    %v1612 = vpow.pop %v1611
    %v1613 = vmul.f32 %v1532, 1.442695
    %v1614 = vpow.pop %v1613
    %v1615 = vmul.f32 %v1533, 1.442695
    %v1616 = vpow.pop %v1615
    %v1617 = vmul.f32 %v1534, 1.442695
    %v1618 = vpow.pop %v1617
    %v1619 = vmul.f32 %v1535, 1.442695
    %v1620 = vpow.pop %v1619
    %v1621 = vmul.f32 %v1536, 1.442695
    %v1622 = vpow.pop %v1621
    %v1623 = vmul.f32 %v1537, 1.442695
    %v1624 = vpow.pop %v1623
    %v1625 = vmul.f32 %v1538, 1.442695
    %v1626 = vpow.pop %v1625
    %v1627 = vmul.f32 %v1539, 1.442695
    %v1628 = vpow.pop %v1627
    %v1629 = vmul.f32 %v1540, 1.442695
    %v1630 = vpow.pop %v1629
    %v1631 = vmul.f32 %v1541, 1.442695
    %v1632 = vpow.pop %v1631
    %v1633 = vmul.f32 %v1542, 1.442695
    %v1634 = vpow.pop %v1633
    %v1635 = vmul.f32 %v1543, 1.442695
    %v1636 = vpow.pop %v1635
    %v1637 = vmul.f32 %v1544, 1.442695
    %v1638 = vpow.pop %v1637
    %v1639 = vmul.f32 %v1545, 1.442695
    %v1640 = vpow.pop %v1639
    %v1641 = vmul.f32 %v1546, 1.442695
    %v1642 = vpow.pop %v1641
    %v1643 = vmul.f32 %v1547, 1.442695
    %v1644 = vpow.pop %v1643
    %v1645 = vmul.f32 %v1548, 1.442695
    %v1646 = vpow.pop %v1645
    %v1647 = vmul.f32 %v1549, 1.442695
    %v1648 = vpow.pop %v1647
    %v1649 = vmul.f32 %v1550, 1.442695
    %v1650 = vpow.pop %v1649
    %v1651 = vmul.f32 %v1551, 1.442695
    %v1652 = vpow.pop %v1651
    %v1653 = vmul.f32 %v1552, 1.442695
    %v1654 = vpow.pop %v1653
    %v1655 = vmul.f32 %v1553, 1.442695
    %v1656 = vpow.pop %v1655
    %v1657 = vmul.f32 %v1554, 1.442695
    %v1658 = vpow.pop %v1657
    %v1659 = vmul.f32 %v1555, 1.442695
    %v1660 = vpow.pop %v1659
    %v1661 = vmul.f32 %v1556, 1.442695
    %v1662 = vpow.pop %v1661
    %v1663 = vmul.f32 %v1557, 1.442695
    %v1664 = vpow.pop %v1663
    %v1665 = vmul.f32 %v1558, 1.442695
    %v1666 = vpow.pop %v1665
    %v1667 = vmul.f32 %v1559, 1.442695
    %v1668 = vpow.pop %v1667
    %v1669 = vmul.f32 %v1560, 1.442695
    %v1670 = vpow.pop %v1669
    %v1671 = vmul.f32 %v1561, 1.442695
    %v1672 = vpow.pop %v1671
    %v1673 = vmul.f32 %v1562, 1.442695
    %v1674 = vpow.pop %v1673
    %v1675 = vmul.f32 %v1563, 1.442695
    %v1676 = vpow.pop %v1675
    %v1677 = vmul.f32 %v1564, 1.442695
    %v1678 = vpow.pop %v1677
    %v1679 = vmul.f32 %v1565, 1.442695
    %v1680 = vpow.pop %v1679
    %v1681 = vmul.f32 %v1566, 1.442695
    %v1682 = vpow.pop %v1681
    %v1683 = vmul.f32 %v1567, 1.442695
    %v1684 = vpow.pop %v1683
    %v1685 = vmul.f32 %v1568, 1.442695
    %v1686 = vpow.pop %v1685
    %v1687 = vmul.f32 %v1569, 1.442695
    %v1688 = vpow.pop %v1687
    %v1689 = vmul.f32 %v1570, 1.442695
    %v1690 = vpow.pop %v1689
    %v1691 = vmul.f32 %v1571, 1.442695
    %v1692 = vpow.pop %v1691
    %v1693 = vmul.f32 %v1572, 1.442695
    %v1694 = vpow.pop %v1693
    %v1695 = vmul.f32 %v1573, 1.442695
    %v1696 = vpow.pop %v1695
    %v1697 = vmul.f32 %v1574, 1.442695
    %v1698 = vpow.pop %v1697
    %v1699 = vmul.f32 %v1575, 1.442695
    %v1700 = vpow.pop %v1699
    %v1701 = vmul.f32 %v1576, 1.442695
    %v1702 = vpow.pop %v1701
    %v1703 = vmul.f32 %v1577, 1.442695
    %v1704 = vpow.pop %v1703
    %v1705 = vmul.f32 %v1578, 1.442695
    %v1706 = vpow.pop %v1705
    %v1707 = vpack.c.bf16 %v1584, %v1580
    %v1708 = vpack.c.bf16 %v1586, %v1582
    %v1709 = vpack.c.bf16 %v1592, %v1588
    %v1710 = vpack.c.bf16 %v1594, %v1590
    %v1711 = vpack.c.bf16 %v1600, %v1596
    %v1712 = vpack.c.bf16 %v1602, %v1598
    %v1713 = vpack.c.bf16 %v1608, %v1604
    %v1714 = vpack.c.bf16 %v1610, %v1606
    %v1715 = vpack.c.bf16 %v1616, %v1612
    %v1716 = vpack.c.bf16 %v1618, %v1614
    %v1717 = vpack.c.bf16 %v1624, %v1620
    %v1718 = vpack.c.bf16 %v1626, %v1622
    %v1719 = vpack.c.bf16 %v1632, %v1628
    %v1720 = vpack.c.bf16 %v1634, %v1630
    %v1721 = vpack.c.bf16 %v1640, %v1636
    %v1722 = vpack.c.bf16 %v1642, %v1638
    %v1723 = vpack.c.bf16 %v1648, %v1644
    %v1724 = vpack.c.bf16 %v1650, %v1646
    %v1725 = vpack.c.bf16 %v1656, %v1652
    %v1726 = vpack.c.bf16 %v1658, %v1654
    %v1727 = vpack.c.bf16 %v1664, %v1660
    %v1728 = vpack.c.bf16 %v1666, %v1662
    %v1729 = vpack.c.bf16 %v1672, %v1668
    %v1730 = vpack.c.bf16 %v1674, %v1670
    %v1731 = vpack.c.bf16 %v1680, %v1676
    %v1732 = vpack.c.bf16 %v1682, %v1678
    %v1733 = vpack.c.bf16 %v1688, %v1684
    %v1734 = vpack.c.bf16 %v1690, %v1686
    %v1735 = vpack.c.bf16 %v1696, %v1692
    %v1736 = vpack.c.bf16 %v1698, %v1694
    %v1737 = vpack.c.bf16 %v1704, %v1700
    %v1738 = vpack.c.bf16 %v1706, %v1702
    %v1739 = vrot.slane %v155, 4
    %v1740 = vrot.slane %v156, 4
    %v1743 = vsel %vm200, %v1739, 1.0
    %v1744 = vsel %vm200, %v1740, 1.0
    %v1745 = vpack.c.bf16 %v1743, %v1743
    %v1746 = vpack.c.bf16 %v1744, %v1744
    %1747 = vmatprep.subr.bf16.mxu0 %v1708
    %1748 = vmatpush1.bf16.xpose.msra.mxu0 %v1707
    %1749 = vmatprep.subr.bf16.mxu0 %v1710
    %1750 = vmatpush1.bf16.xpose.msra.mxu0 %v1709
    %1751 = vmatprep.subr.bf16.mxu0 %v1712
    %1752 = vmatpush1.bf16.xpose.msra.mxu0 %v1711
    %1753 = vmatprep.subr.bf16.mxu0 %v1714
    %1754 = vmatpush1.bf16.xpose.msra.mxu0 %v1713
    %1755 = vmatprep.subr.bf16.mxu0 %v1716
    %1756 = vmatpush1.bf16.xpose.msra.mxu0 %v1715
    %1757 = vmatprep.subr.bf16.mxu0 %v1718
    %1758 = vmatpush1.bf16.xpose.msra.mxu0 %v1717
    %1759 = vmatprep.subr.bf16.mxu0 %v1720
    %1760 = vmatpush1.bf16.xpose.msra.mxu0 %v1719
    %1761 = vmatprep.subr.bf16.mxu0 %v1722
    %1762 = vmatpush1.bf16.xpose.msra.mxu0 %v1721
    %1763 = vmatprep.subr.bf16.mxu0 %v1724
    %1764 = vmatpush1.bf16.xpose.msra.mxu0 %v1723
    %1765 = vmatprep.subr.bf16.mxu0 %v1726
    %1766 = vmatpush1.bf16.xpose.msra.mxu0 %v1725
    %1767 = vmatprep.subr.bf16.mxu0 %v1728
    %1768 = vmatpush1.bf16.xpose.msra.mxu0 %v1727
    %1769 = vmatprep.subr.bf16.mxu0 %v1730
    %1770 = vmatpush1.bf16.xpose.msra.mxu0 %v1729
    %1771 = vmatprep.subr.bf16.mxu0 %v1732
    %1772 = vmatpush1.bf16.xpose.msra.mxu0 %v1731
    %1773 = vmatprep.subr.bf16.mxu0 %v1734
    %1774 = vmatpush1.bf16.xpose.msra.mxu0 %v1733
    %1775 = vmatprep.subr.bf16.mxu0 %v1736
    %1776 = vmatpush1.bf16.xpose.msra.mxu0 %v1735
    %1777 = vmatprep.subr.bf16.mxu0 %v1738
    %1778 = vmatpush1.bf16.xpose.msra.mxu0 %v1737
    %1779 = vmatprep.mubr.bf16.mxu0 %v1746
    %1780 = vmatmul.mubr.bf16.gmra.mrb[0].mxu0 %v1745
    %v1781 = vpop.f32.mrb[0].mxu0
    %v1782 = vadd.f32 0.0, %v1781
    %v1783 = vpop.f32.mrb[0].mxu0
    %v1784 = vadd.f32 0.0, %v1783
    %v1785 = vpop.f32.mrb[0].mxu0
    %v1786 = vpop.f32.mrb[0].mxu0
    %1787 = vdwg.mxu0
    %v1788 = vlaneseq
    %v1789 = vshrl.u32 %v1788, 7
    %v1790 = vsub.s32 4, %v1789
    %v1791 = vrot.slane %v1782, %v1790
    %v1792 = vlaneseq
    %v1793 = vshrl.u32 %v1792, 7
    %v1794 = vsub.s32 4, %v1793
    %v1795 = vrot.slane %v1784, %v1794
    %v1796 = vrcp.pop %v1791
    %v1797 = vmul.f32 %v1782, %v1796
    %v1798 = vrcp.pop %v1795
    %v1799 = vmul.f32 %v1784, %v1798
    %v1801 = vsel %vm157, %v63, 0
    %v1804 = vsel %vm157, %v64, 0
    %v1807 = vsel %vm157, %v65, 0
    %v1810 = vsel %vm157, %v66, 0
    %v1813 = vsel %vm200, %v1797, 0
    %v1816 = vsel %vm200, %v1799, 0
    %1818 = vmatprep.subr.mxu0 %v1816
    %1819 = vmatpush1.msra.mxu0 %v1813
    %1820 = vmatprep.subr.mxu0 0.0
    %1821 = vmatpush1.msra.mxu0 0.0
    %1822 = vmatprep.subr.mxu0 0.0
    %1823 = vmatpush1.msra.mxu0 0.0
    %1824 = vmatprep.subr.mxu0 0.0
    %1825 = vmatpush1.msra.mxu0 0.0
    %1826 = vmatprep.subr.mxu0 0.0
    %1827 = vmatpush1.msra.mxu0 0.0
    %1828 = vmatprep.subr.mxu0 0.0
    %1829 = vmatpush1.msra.mxu0 0.0
    %1830 = vmatprep.subr.mxu0 0.0
    %1831 = vmatpush1.msra.mxu0 0.0
    %1832 = vmatprep.subr.mxu0 0.0
    %1833 = vmatpush1.msra.mxu0 0.0
    %1834 = vmatprep.subr.mxu0 0.0
    %1835 = vmatpush1.msra.mxu0 0.0
    %1836 = vmatprep.subr.mxu0 0.0
    %1837 = vmatpush1.msra.mxu0 0.0
    %1838 = vmatprep.subr.mxu0 0.0
    %1839 = vmatpush1.msra.mxu0 0.0
    %1840 = vmatprep.subr.mxu0 0.0
    %1841 = vmatpush1.msra.mxu0 0.0
    %1842 = vmatprep.subr.mxu0 0.0
    %1843 = vmatpush1.msra.mxu0 0.0
    %1844 = vmatprep.subr.mxu0 0.0
    %1845 = vmatpush1.msra.mxu0 0.0
    %1846 = vmatprep.subr.mxu0 0.0
    %1847 = vmatpush1.msra.mxu0 0.0
    %1848 = vmatprep.subr.mxu0 0.0
    %1849 = vmatpush1.msra.mxu0 0.0
    %1850 = vmatprep.subr.mxu0 0.0
    %1851 = vmatpush1.msra.mxu0 0.0
    %1852 = vmatprep.subr.mxu0 0.0
    %1853 = vmatpush1.msra.mxu0 0.0
    %1854 = vmatprep.subr.mxu0 0.0
    %1855 = vmatpush1.msra.mxu0 0.0
    %1856 = vmatprep.subr.mxu0 0.0
    %1857 = vmatpush1.msra.mxu0 0.0
    %1858 = vmatprep.subr.mxu0 0.0
    %1859 = vmatpush1.msra.mxu0 0.0
    %1860 = vmatprep.subr.mxu0 0.0
    %1861 = vmatpush1.msra.mxu0 0.0
    %1862 = vmatprep.subr.mxu0 0.0
    %1863 = vmatpush1.msra.mxu0 0.0
    %1864 = vmatprep.subr.mxu0 0.0
    %1865 = vmatpush1.msra.mxu0 0.0
    %1866 = vmatprep.subr.mxu0 0.0
    %1867 = vmatpush1.msra.mxu0 0.0
    %1868 = vmatprep.subr.mxu0 0.0
    %1869 = vmatpush1.msra.mxu0 0.0
    %1870 = vmatprep.subr.mxu0 0.0
    %1871 = vmatpush1.msra.mxu0 0.0
    %1872 = vmatprep.subr.mxu0 0.0
    %1873 = vmatpush1.msra.mxu0 0.0
    %1874 = vmatprep.subr.mxu0 0.0
    %1875 = vmatpush1.msra.mxu0 0.0
    %1876 = vmatprep.subr.mxu0 0.0
    %1877 = vmatpush1.msra.mxu0 0.0
    %1878 = vmatprep.subr.mxu0 0.0
    %1879 = vmatpush1.msra.mxu0 0.0
    %1880 = vmatprep.subr.mxu0 0.0
    %1881 = vmatpush1.msra.mxu0 0.0
    %1882 = vmatprep.mubr.f32.mxu0 0.0
    %1883 = vmatmul.mubr.f32.gmra.mrb[0].mxu0 %v1801
    %v1884 = vpop.f32.mrb[0].mxu0
    %v1885 = vadd.f32 0.0, %v1884
    %v1886 = vpop.f32.mrb[0].mxu0
    %v1887 = vadd.f32 0.0, %v1886
    %1888 = vmatprep.mubr.f32.mxu0 0.0
    %1889 = vmatmul.mubr.f32.gmra.mrb[0].mxu0 %v1804
    %v1890 = vpop.f32.mrb[0].mxu0
    %v1891 = vadd.f32 0.0, %v1890
    %v1892 = vpop.f32.mrb[0].mxu0
    %v1893 = vadd.f32 0.0, %v1892
    %1894 = vmatprep.mubr.f32.mxu0 0.0
    %1895 = vmatmul.mubr.f32.gmra.mrb[0].mxu0 %v1807
    %v1896 = vpop.f32.mrb[0].mxu0
    %v1897 = vadd.f32 0.0, %v1896
    %v1898 = vpop.f32.mrb[0].mxu0
    %v1899 = vadd.f32 0.0, %v1898
    %1900 = vmatprep.mubr.f32.mxu0 0.0
    %1901 = vmatmul.mubr.f32.gmra.mrb[0].mxu0 %v1810
    %v1902 = vpop.f32.mrb[0].mxu0
    %v1903 = vadd.f32 0.0, %v1902
    %v1904 = vpop.f32.mrb[0].mxu0
    %v1905 = vadd.f32 0.0, %v1904
    %1906 = vdwg.mxu0
    %v1907 = vmul.f32 %v1885, 0.999995
    %v1908 = vmul.f32 %v1887, 0.999995
    %v1909 = vmul.f32 %v1891, 0.999995
    %v1910 = vmul.f32 %v1893, 0.999995
    %v1911 = vmul.f32 %v1897, 0.999995
    %v1912 = vmul.f32 %v1899, 0.999995
    %v1913 = vmul.f32 %v1903, 0.999995
    %v1914 = vmul.f32 %v1905, 0.999995
    %v1915 = vmax.f32 %v1907, 0.0
    %v1916 = vmax.f32 %v1908, 0.0
    %v1917 = vmax.f32 %v1909, 0.0
    %v1918 = vmax.f32 %v1910, 0.0
    %v1919 = vmax.f32 %v1911, 0.0
    %v1920 = vmax.f32 %v1912, 0.0
    %v1921 = vmax.f32 %v1913, 0.0
    %v1922 = vmax.f32 %v1914, 0.0
    %v1923 = vld [vmem:[%s1] sm:$0xff]
    %v1924 = vld [vmem:[%s1 + $0x8] sm:$0xff]
    %v1925 = vld [vmem:[%s1 + $0x10] sm:$0xff]
    %v1926 = vld [vmem:[%s1 + $0x18] sm:$0xff]
    %v1927 = vld [vmem:[%s2] sm:$0x1]
    %1929 = vset.pattern.permute.xlu0 1
    %1930 = vperm.xlu0 %1929, %v1923
    %v1931 = vpop.permute.xlu0 %1930
    %1934 = vset.pattern.permute.xlu0 1
    %1935 = vperm.xlu0 %1934, %v1924
    %v1936 = vpop.permute.xlu0 %1935
    %1939 = vset.pattern.permute.xlu0 1
    %1940 = vperm.xlu0 %1939, %v1925
    %v1941 = vpop.permute.xlu0 %1940
    %1944 = vset.pattern.permute.xlu0 1
    %1945 = vperm.xlu0 %1944, %v1926
    %v1946 = vpop.permute.xlu0 %1945
    %v1949 = vlaneseq
    %v1950 = vshrl.u32 %v1949, 7
    %v1951 = vsub.s32 0, %v1950
    %v1952 = vrot.slane %v1927, %v1951
    %v1954 = vmul.f32 %v1931, %v1952
    %v1955 = vmul.f32 %v1936, %v1952
    %v1956 = vmul.f32 %v1941, %v1952
    %v1957 = vmul.f32 %v1946, %v1952
    %v1958 = vsel %vm78, %v1954, -inf
    %1959 = vmax.xlane.f32.xlu0 %v1958
    %v1960 = vpop.xlane.xlu0 %1959
    %v1961 = vsel %vm78, %v1955, -inf
    %1962 = vmax.xlane.f32.xlu0 %v1961
    %v1963 = vpop.xlane.xlu0 %1962
    %v1964 = vsel %vm78, %v1956, -inf
    %1965 = vmax.xlane.f32.xlu0 %v1964
    %v1966 = vpop.xlane.xlu0 %1965
    %v1967 = vsel %vm78, %v1957, -inf
    %1968 = vmax.xlane.f32.xlu0 %v1967
    %v1969 = vpop.xlane.xlu0 %1968
    %v1970 = vsub.f32 %v1954, %v1960
    %v1971 = vsub.f32 %v1955, %v1963
    %v1972 = vsub.f32 %v1956, %v1966
    %v1973 = vsub.f32 %v1957, %v1969
    %v1974 = vmul.f32 %v1970, 1.442695
    %v1975 = vpow.pop %v1974
    %v1976 = vmul.f32 %v1971, 1.442695
    %v1977 = vpow.pop %v1976
    %v1978 = vmul.f32 %v1972, 1.442695
    %v1979 = vpow.pop %v1978
    %v1980 = vmul.f32 %v1973, 1.442695
    %v1981 = vpow.pop %v1980
    %v1982 = vsel %vm78, %v1975, 0.0
    %1983 = vadd.xlane.f32.xlu0 %v1982
    %v1984 = vpop.xlane.xlu0 %1983
    %v1985 = vsel %vm78, %v1977, 0.0
    %1986 = vadd.xlane.f32.xlu0 %v1985
    %v1987 = vpop.xlane.xlu0 %1986
    %v1988 = vsel %vm78, %v1979, 0.0
    %1989 = vadd.xlane.f32.xlu0 %v1988
    %v1990 = vpop.xlane.xlu0 %1989
    %v1991 = vsel %vm78, %v1981, 0.0
    %1992 = vadd.xlane.f32.xlu0 %v1991
    %v1993 = vpop.xlane.xlu0 %1992
    %v1994 = vrcp.pop %v1984
    %v1995 = vmul.f32 %v1975, %v1994
    %v1996 = vrcp.pop %v1987
    %v1997 = vmul.f32 %v1977, %v1996
    %v1998 = vrcp.pop %v1990
    %v1999 = vmul.f32 %v1979, %v1998
    %v2000 = vrcp.pop %v1993
    %v2001 = vmul.f32 %v1981, %v2000
    %v2003 = vsel %vm78, %v1995, 0
    %v2006 = vsel %vm78, %v1997, 0
    %v2009 = vsel %vm78, %v1999, 0
    %v2012 = vsel %vm78, %v2001, 0
    %2014 = vmatprep.subr.mxu0 %v71
    %2015 = vmatpush1.msra.mxu0 %v70
    %2016 = vmatprep.subr.mxu0 %v73
    %2017 = vmatpush1.msra.mxu0 %v72
    %2018 = vmatprep.subr.mxu0 %v75
    %2019 = vmatpush1.msra.mxu0 %v74
    %2020 = vmatprep.subr.mxu0 %v77
    %2021 = vmatpush1.msra.mxu0 %v76
    %2022 = vmatprep.subr.mxu0 0.0
    %2023 = vmatpush1.msra.mxu0 0.0
    %2024 = vmatprep.subr.mxu0 0.0
    %2025 = vmatpush1.msra.mxu0 0.0
    %2026 = vmatprep.subr.mxu0 0.0
    %2027 = vmatpush1.msra.mxu0 0.0
    %2028 = vmatprep.subr.mxu0 0.0
    %2029 = vmatpush1.msra.mxu0 0.0
    %2030 = vmatprep.subr.mxu0 0.0
    %2031 = vmatpush1.msra.mxu0 0.0
    %2032 = vmatprep.subr.mxu0 0.0
    %2033 = vmatpush1.msra.mxu0 0.0
    %2034 = vmatprep.subr.mxu0 0.0
    %2035 = vmatpush1.msra.mxu0 0.0
    %2036 = vmatprep.subr.mxu0 0.0
    %2037 = vmatpush1.msra.mxu0 0.0
    %2038 = vmatprep.subr.mxu0 0.0
    %2039 = vmatpush1.msra.mxu0 0.0
    %2040 = vmatprep.subr.mxu0 0.0
    %2041 = vmatpush1.msra.mxu0 0.0
    %2042 = vmatprep.subr.mxu0 0.0
    %2043 = vmatpush1.msra.mxu0 0.0
    %2044 = vmatprep.subr.mxu0 0.0
    %2045 = vmatpush1.msra.mxu0 0.0
    %2046 = vmatprep.subr.mxu0 0.0
    %2047 = vmatpush1.msra.mxu0 0.0
    %2048 = vmatprep.subr.mxu0 0.0
    %2049 = vmatpush1.msra.mxu0 0.0
    %2050 = vmatprep.subr.mxu0 0.0
    %2051 = vmatpush1.msra.mxu0 0.0
    %2052 = vmatprep.subr.mxu0 0.0
    %2053 = vmatpush1.msra.mxu0 0.0
    %2054 = vmatprep.subr.mxu0 0.0
    %2055 = vmatpush1.msra.mxu0 0.0
    %2056 = vmatprep.subr.mxu0 0.0
    %2057 = vmatpush1.msra.mxu0 0.0
    %2058 = vmatprep.subr.mxu0 0.0
    %2059 = vmatpush1.msra.mxu0 0.0
    %2060 = vmatprep.subr.mxu0 0.0
    %2061 = vmatpush1.msra.mxu0 0.0
    %2062 = vmatprep.subr.mxu0 0.0
    %2063 = vmatpush1.msra.mxu0 0.0
    %2064 = vmatprep.subr.mxu0 0.0
    %2065 = vmatpush1.msra.mxu0 0.0
    %2066 = vmatprep.subr.mxu0 0.0
    %2067 = vmatpush1.msra.mxu0 0.0
    %2068 = vmatprep.subr.mxu0 0.0
    %2069 = vmatpush1.msra.mxu0 0.0
    %2070 = vmatprep.subr.mxu0 0.0
    %2071 = vmatpush1.msra.mxu0 0.0
    %2072 = vmatprep.subr.mxu0 0.0
    %2073 = vmatpush1.msra.mxu0 0.0
    %2074 = vmatprep.subr.mxu0 0.0
    %2075 = vmatpush1.msra.mxu0 0.0
    %2076 = vmatprep.subr.mxu0 0.0
    %2077 = vmatpush1.msra.mxu0 0.0
    %2078 = vmatprep.mubr.f32.mxu0 0.0
    %2079 = vmatmul.mubr.f32.gmra.mrb[0].mxu0 %v2003
    %v2080 = vpop.f32.mrb[0].mxu0
    %v2081 = vadd.f32 0.0, %v2080
    %v2082 = vpop.f32.mrb[0].mxu0
    %v2083 = vadd.f32 0.0, %v2082
    %2084 = vmatprep.mubr.f32.mxu0 0.0
    %2085 = vmatmul.mubr.f32.gmra.mrb[0].mxu0 %v2006
    %v2086 = vpop.f32.mrb[0].mxu0
    %v2087 = vadd.f32 0.0, %v2086
    %v2088 = vpop.f32.mrb[0].mxu0
    %v2089 = vadd.f32 0.0, %v2088
    %2090 = vmatprep.mubr.f32.mxu0 0.0
    %2091 = vmatmul.mubr.f32.gmra.mrb[0].mxu0 %v2009
    %v2092 = vpop.f32.mrb[0].mxu0
    %v2093 = vadd.f32 0.0, %v2092
    %v2094 = vpop.f32.mrb[0].mxu0
    %v2095 = vadd.f32 0.0, %v2094
    %2096 = vmatprep.mubr.f32.mxu0 0.0
    %2097 = vmatmul.mubr.f32.gmra.mrb[0].mxu0 %v2012
    %v2098 = vpop.f32.mrb[0].mxu0
    %v2099 = vadd.f32 0.0, %v2098
    %v2100 = vpop.f32.mrb[0].mxu0
    %v2101 = vadd.f32 0.0, %v2100
    %2102 = vdwg.mxu0
    %2103 = vset.pattern.permute.xlu0 0
    %2104 = vperm.xlu0 %2103, %v1923
    %v2105 = vpop.permute.xlu0 %2104
    %2107 = vset.pattern.permute.xlu0 0
    %2108 = vperm.xlu0 %2107, %v1924
    %v2109 = vpop.permute.xlu0 %2108
    %2111 = vset.pattern.permute.xlu0 0
    %2112 = vperm.xlu0 %2111, %v1925
    %v2113 = vpop.permute.xlu0 %2112
    %2115 = vset.pattern.permute.xlu0 0
    %2116 = vperm.xlu0 %2115, %v1926
    %v2117 = vpop.permute.xlu0 %2116
    %v2119 = vmul.f32 %v2105, %v70
    %v2120 = vmul.f32 %v2105, %v71
    %v2121 = vmul.f32 %v2109, %v72
    %v2122 = vmul.f32 %v2109, %v73
    %v2123 = vmul.f32 %v2113, %v74
    %v2124 = vmul.f32 %v2113, %v75
    %v2125 = vmul.f32 %v2117, %v76
    %v2126 = vmul.f32 %v2117, %v77
    %v2127 = vadd.f32 %v2119, %v70
    %v2128 = vadd.f32 %v2120, %v71
    %v2129 = vadd.f32 %v2121, %v72
    %v2130 = vadd.f32 %v2122, %v73
    %v2131 = vadd.f32 %v2123, %v74
    %v2132 = vadd.f32 %v2124, %v75
    %v2133 = vadd.f32 %v2125, %v76
    %v2134 = vadd.f32 %v2126, %v77
    %v2135 = vmul.f32 %v1129, %v2127
    %v2136 = vmul.f32 %v1130, %v2128
    %v2137 = vmul.f32 %v1129, %v2129
    %v2138 = vmul.f32 %v1130, %v2130
    %v2139 = vmul.f32 %v1129, %v2131
    %v2140 = vmul.f32 %v1130, %v2132
    %v2141 = vmul.f32 %v1129, %v2133
    %v2142 = vmul.f32 %v1130, %v2134
    %v2143 = vadd.f32 %v2135, %v2127
    %v2144 = vadd.f32 %v2136, %v2128
    %v2145 = vadd.f32 %v2137, %v2129
    %v2146 = vadd.f32 %v2138, %v2130
    %v2147 = vadd.f32 %v2139, %v2131
    %v2148 = vadd.f32 %v2140, %v2132
    %v2149 = vadd.f32 %v2141, %v2133
    %v2150 = vadd.f32 %v2142, %v2134
    %v2151 = vmul.f32 %v2081, %v70
    %v2152 = vmul.f32 %v2083, %v71
    %v2153 = vmul.f32 %v2087, %v72
    %v2154 = vmul.f32 %v2089, %v73
    %v2155 = vmul.f32 %v2093, %v74
    %v2156 = vmul.f32 %v2095, %v75
    %v2157 = vmul.f32 %v2099, %v76
    %v2158 = vmul.f32 %v2101, %v77
    %v2159 = vmul.f32 %v1915, %v2151
    %v2160 = vmul.f32 %v1916, %v2152
    %v2161 = vmul.f32 %v1917, %v2153
    %v2162 = vmul.f32 %v1918, %v2154
    %v2163 = vmul.f32 %v1919, %v2155
    %v2164 = vmul.f32 %v1920, %v2156
    %v2165 = vmul.f32 %v1921, %v2157
    %v2166 = vmul.f32 %v1922, %v2158
    %v2167 = vadd.f32 %v2159, %v2151
    %v2168 = vadd.f32 %v2160, %v2152
    %v2169 = vadd.f32 %v2161, %v2153
    %v2170 = vadd.f32 %v2162, %v2154
    %v2171 = vadd.f32 %v2163, %v2155
    %v2172 = vadd.f32 %v2164, %v2156
    %v2173 = vadd.f32 %v2165, %v2157
    %v2174 = vadd.f32 %v2166, %v2158
    %v2175 = vstv %s67
    %v2176 = vmul.f32 %v2175, %v70
    %v2177 = vmul.f32 %v2175, %v71
    %v2178 = vmul.f32 %v2175, %v72
    %v2179 = vmul.f32 %v2175, %v73
    %v2180 = vmul.f32 %v2175, %v74
    %v2181 = vmul.f32 %v2175, %v75
    %v2182 = vmul.f32 %v2175, %v76
    %v2183 = vmul.f32 %v2175, %v77
    %v2184 = vstv %s68
    %v2185 = vmul.f32 %v2184, %v2143
    %v2186 = vmul.f32 %v2184, %v2144
    %v2187 = vmul.f32 %v2184, %v2145
    %v2188 = vmul.f32 %v2184, %v2146
    %v2189 = vmul.f32 %v2184, %v2147
    %v2190 = vmul.f32 %v2184, %v2148
    %v2191 = vmul.f32 %v2184, %v2149
    %v2192 = vmul.f32 %v2184, %v2150
    %v2193 = vadd.f32 %v2176, %v2185
    %v2194 = vadd.f32 %v2177, %v2186
    %v2195 = vadd.f32 %v2178, %v2187
    %v2196 = vadd.f32 %v2179, %v2188
    %v2197 = vadd.f32 %v2180, %v2189
    %v2198 = vadd.f32 %v2181, %v2190
    %v2199 = vadd.f32 %v2182, %v2191
    %v2200 = vadd.f32 %v2183, %v2192
    %v2201 = vstv %s69
    %v2202 = vmul.f32 %v2201, %v2167
    %v2203 = vmul.f32 %v2201, %v2168
    %v2204 = vmul.f32 %v2201, %v2169
    %v2205 = vmul.f32 %v2201, %v2170
    %v2206 = vmul.f32 %v2201, %v2171
    %v2207 = vmul.f32 %v2201, %v2172
    %v2208 = vmul.f32 %v2201, %v2173
    %v2209 = vmul.f32 %v2201, %v2174
    %v2210 = vadd.f32 %v2193, %v2202
    %v2211 = vadd.f32 %v2194, %v2203
    %v2212 = vadd.f32 %v2195, %v2204
    %v2213 = vadd.f32 %v2196, %v2205
    %v2214 = vadd.f32 %v2197, %v2206
    %v2215 = vadd.f32 %v2198, %v2207
    %v2216 = vadd.f32 %v2199, %v2208
    %v2217 = vadd.f32 %v2200, %v2209
    %2218 = vst [vmem:[%s9] sm:$0xff] %v2210
    %2219 = vst [vmem:[%s9 + $0x8] sm:$0xff] %v2211
    %2220 = vst [vmem:[%s9 + $0x10] sm:$0xff] %v2212
    %2221 = vst [vmem:[%s9 + $0x18] sm:$0xff] %v2213
    %2222 = vst [vmem:[%s9 + $0x20] sm:$0xff] %v2214
    %2223 = vst [vmem:[%s9 + $0x28] sm:$0xff] %v2215
    %2224 = vst [vmem:[%s9 + $0x30] sm:$0xff] %v2216
    %2225 = vst [vmem:[%s9 + $0x38] sm:$0xff] %v2217
    %s2226 = scalar_lea.vmem %s0, 64
    %v2227 = vld [vmem:[%s2226] sm:$0xff]
    %v2228 = vld [vmem:[%s2226 + $0x8] sm:$0xff]
    %v2229 = vld [vmem:[%s2226 + $0x10] sm:$0xff]
    %v2230 = vld [vmem:[%s2226 + $0x18] sm:$0xff]
    %v2231 = vld [vmem:[%s2226 + $0x20] sm:$0xff]
    %v2232 = vld [vmem:[%s2226 + $0x28] sm:$0xff]
    %v2233 = vld [vmem:[%s2226 + $0x30] sm:$0xff]
    %v2234 = vld [vmem:[%s2226 + $0x38] sm:$0xff]
    %2235 = vmatprep.subr.mxu0 %v2228
    %2236 = vmatpush1.msra.mxu0 %v2227
    %2237 = vmatprep.subr.mxu0 %v2230
    %2238 = vmatpush1.msra.mxu0 %v2229
    %2239 = vmatprep.subr.mxu0 %v2232
    %2240 = vmatpush1.msra.mxu0 %v2231
    %2241 = vmatprep.subr.mxu0 %v2234
    %2242 = vmatpush1.msra.mxu0 %v2233
    %2243 = vmatprep.subr.mxu0 0.0
    %2244 = vmatpush1.msra.mxu0 0.0
    %2245 = vmatprep.subr.mxu0 0.0
    %2246 = vmatpush1.msra.mxu0 0.0
    %2247 = vmatprep.subr.mxu0 0.0
    %2248 = vmatpush1.msra.mxu0 0.0
    %2249 = vmatprep.subr.mxu0 0.0
    %2250 = vmatpush1.msra.mxu0 0.0
    %2251 = vmatprep.subr.mxu0 0.0
    %2252 = vmatpush1.msra.mxu0 0.0
    %2253 = vmatprep.subr.mxu0 0.0
    %2254 = vmatpush1.msra.mxu0 0.0
    %2255 = vmatprep.subr.mxu0 0.0
    %2256 = vmatpush1.msra.mxu0 0.0
    %2257 = vmatprep.subr.mxu0 0.0
    %2258 = vmatpush1.msra.mxu0 0.0
    %2259 = vmatprep.subr.mxu0 0.0
    %2260 = vmatpush1.msra.mxu0 0.0
    %2261 = vmatprep.subr.mxu0 0.0
    %2262 = vmatpush1.msra.mxu0 0.0
    %2263 = vmatprep.subr.mxu0 0.0
    %2264 = vmatpush1.msra.mxu0 0.0
    %2265 = vmatprep.subr.mxu0 0.0
    %2266 = vmatpush1.msra.mxu0 0.0
    %2267 = vmatprep.subr.mxu0 0.0
    %2268 = vmatpush1.msra.mxu0 0.0
    %2269 = vmatprep.subr.mxu0 0.0
    %2270 = vmatpush1.msra.mxu0 0.0
    %2271 = vmatprep.subr.mxu0 0.0
    %2272 = vmatpush1.msra.mxu0 0.0
    %2273 = vmatprep.subr.mxu0 0.0
    %2274 = vmatpush1.msra.mxu0 0.0
    %2275 = vmatprep.subr.mxu0 0.0
    %2276 = vmatpush1.msra.mxu0 0.0
    %2277 = vmatprep.subr.mxu0 0.0
    %2278 = vmatpush1.msra.mxu0 0.0
    %2279 = vmatprep.subr.mxu0 0.0
    %2280 = vmatpush1.msra.mxu0 0.0
    %2281 = vmatprep.subr.mxu0 0.0
    %2282 = vmatpush1.msra.mxu0 0.0
    %2283 = vmatprep.subr.mxu0 0.0
    %2284 = vmatpush1.msra.mxu0 0.0
    %2285 = vmatprep.subr.mxu0 0.0
    %2286 = vmatpush1.msra.mxu0 0.0
    %2287 = vmatprep.subr.mxu0 0.0
    %2288 = vmatpush1.msra.mxu0 0.0
    %2289 = vmatprep.subr.mxu0 0.0
    %2290 = vmatpush1.msra.mxu0 0.0
    %2291 = vmatprep.subr.mxu0 0.0
    %2292 = vmatpush1.msra.mxu0 0.0
    %2293 = vmatprep.subr.mxu0 0.0
    %2294 = vmatpush1.msra.mxu0 0.0
    %2295 = vmatprep.subr.mxu0 0.0
    %2296 = vmatpush1.msra.mxu0 0.0
    %2297 = vmatprep.subr.mxu0 0.0
    %2298 = vmatpush1.msra.mxu0 0.0
    %2299 = vmatprep.mubr.f32.mxu0 0.0
    %2300 = vmatmul.mubr.f32.gmra.mrb[0].mxu0 %v80
    %v2301 = vpop.f32.mrb[0].mxu0
    %v2302 = vadd.f32 0.0, %v2301
    %v2303 = vpop.f32.mrb[0].mxu0
    %v2304 = vadd.f32 0.0, %v2303
    %2305 = vdwg.mxu0
    %v2306 = vmul.f32 %v2302, 0.999995
    %v2307 = vmul.f32 %v2304, 0.999995
    %v2308 = vmax.f32 %v2306, 0.0
    %v2309 = vmax.f32 %v2307, 0.0
    %v2311 = vsel %vm200, %v2308, 0
    %v2314 = vsel %vm200, %v2309, 0
    %2316 = vmatprep.subr.mxu0 %v2314
    %2317 = vmatpush1.msra.mxu0 %v2311
    %2318 = vmatprep.subr.mxu0 0.0
    %2319 = vmatpush1.msra.mxu0 0.0
    %2320 = vmatprep.subr.mxu0 0.0
    %2321 = vmatpush1.msra.mxu0 0.0
    %2322 = vmatprep.subr.mxu0 0.0
    %2323 = vmatpush1.msra.mxu0 0.0
    %2324 = vmatprep.subr.mxu0 0.0
    %2325 = vmatpush1.msra.mxu0 0.0
    %2326 = vmatprep.subr.mxu0 0.0
    %2327 = vmatpush1.msra.mxu0 0.0
    %2328 = vmatprep.subr.mxu0 0.0
    %2329 = vmatpush1.msra.mxu0 0.0
    %2330 = vmatprep.subr.mxu0 0.0
    %2331 = vmatpush1.msra.mxu0 0.0
    %2332 = vmatprep.subr.mxu0 0.0
    %2333 = vmatpush1.msra.mxu0 0.0
    %2334 = vmatprep.subr.mxu0 0.0
    %2335 = vmatpush1.msra.mxu0 0.0
    %2336 = vmatprep.subr.mxu0 0.0
    %2337 = vmatpush1.msra.mxu0 0.0
    %2338 = vmatprep.subr.mxu0 0.0
    %2339 = vmatpush1.msra.mxu0 0.0
    %2340 = vmatprep.subr.mxu0 0.0
    %2341 = vmatpush1.msra.mxu0 0.0
    %2342 = vmatprep.subr.mxu0 0.0
    %2343 = vmatpush1.msra.mxu0 0.0
    %2344 = vmatprep.subr.mxu0 0.0
    %2345 = vmatpush1.msra.mxu0 0.0
    %2346 = vmatprep.subr.mxu0 0.0
    %2347 = vmatpush1.msra.mxu0 0.0
    %2348 = vmatprep.subr.mxu0 0.0
    %2349 = vmatpush1.msra.mxu0 0.0
    %2350 = vmatprep.subr.mxu0 0.0
    %2351 = vmatpush1.msra.mxu0 0.0
    %2352 = vmatprep.subr.mxu0 0.0
    %2353 = vmatpush1.msra.mxu0 0.0
    %2354 = vmatprep.subr.mxu0 0.0
    %2355 = vmatpush1.msra.mxu0 0.0
    %2356 = vmatprep.subr.mxu0 0.0
    %2357 = vmatpush1.msra.mxu0 0.0
    %2358 = vmatprep.subr.mxu0 0.0
    %2359 = vmatpush1.msra.mxu0 0.0
    %2360 = vmatprep.subr.mxu0 0.0
    %2361 = vmatpush1.msra.mxu0 0.0
    %2362 = vmatprep.subr.mxu0 0.0
    %2363 = vmatpush1.msra.mxu0 0.0
    %2364 = vmatprep.subr.mxu0 0.0
    %2365 = vmatpush1.msra.mxu0 0.0
    %2366 = vmatprep.subr.mxu0 0.0
    %2367 = vmatpush1.msra.mxu0 0.0
    %2368 = vmatprep.subr.mxu0 0.0
    %2369 = vmatpush1.msra.mxu0 0.0
    %2370 = vmatprep.subr.mxu0 0.0
    %2371 = vmatpush1.msra.mxu0 0.0
    %2372 = vmatprep.subr.mxu0 0.0
    %2373 = vmatpush1.msra.mxu0 0.0
    %2374 = vmatprep.subr.mxu0 0.0
    %2375 = vmatpush1.msra.mxu0 0.0
    %2376 = vmatprep.subr.mxu0 0.0
    %2377 = vmatpush1.msra.mxu0 0.0
    %2378 = vmatprep.subr.mxu0 0.0
    %2379 = vmatpush1.msra.mxu0 0.0
    %2380 = vmatprep.mubr.f32.mxu0 0.0
    %2381 = vmatmul.mubr.f32.gmra.mrb[0].mxu0 %v159
    %v2382 = vpop.f32.mrb[0].mxu0
    %v2383 = vadd.f32 0.0, %v2382
    %v2384 = vpop.f32.mrb[0].mxu0
    %v2385 = vadd.f32 0.0, %v2384
    %2386 = vmatprep.mubr.f32.mxu0 0.0
    %2387 = vmatmul.mubr.f32.gmra.mrb[0].mxu0 %v162
    %v2388 = vpop.f32.mrb[0].mxu0
    %v2389 = vadd.f32 0.0, %v2388
    %v2390 = vpop.f32.mrb[0].mxu0
    %v2391 = vadd.f32 0.0, %v2390
    %2392 = vmatprep.mubr.f32.mxu0 0.0
    %2393 = vmatmul.mubr.f32.gmra.mrb[0].mxu0 %v165
    %v2394 = vpop.f32.mrb[0].mxu0
    %v2395 = vadd.f32 0.0, %v2394
    %v2396 = vpop.f32.mrb[0].mxu0
    %v2397 = vadd.f32 0.0, %v2396
    %2398 = vmatprep.mubr.f32.mxu0 0.0
    %2399 = vmatmul.mubr.f32.gmra.mrb[0].mxu0 %v168
    %v2400 = vpop.f32.mrb[0].mxu0
    %v2401 = vadd.f32 0.0, %v2400
    %v2402 = vpop.f32.mrb[0].mxu0
    %v2403 = vadd.f32 0.0, %v2402
    %2404 = vmatprep.mubr.f32.mxu0 0.0
    %2405 = vmatmul.mubr.f32.gmra.mrb[0].mxu0 %v171
    %v2406 = vpop.f32.mrb[0].mxu0
    %v2407 = vadd.f32 0.0, %v2406
    %v2408 = vpop.f32.mrb[0].mxu0
    %v2409 = vadd.f32 0.0, %v2408
    %2410 = vmatprep.mubr.f32.mxu0 0.0
    %2411 = vmatmul.mubr.f32.gmra.mrb[0].mxu0 %v174
    %v2412 = vpop.f32.mrb[0].mxu0
    %v2413 = vadd.f32 0.0, %v2412
    %v2414 = vpop.f32.mrb[0].mxu0
    %v2415 = vadd.f32 0.0, %v2414
    %2416 = vmatprep.mubr.f32.mxu0 0.0
    %2417 = vmatmul.mubr.f32.gmra.mrb[0].mxu0 %v177
    %v2418 = vpop.f32.mrb[0].mxu0
    %v2419 = vadd.f32 0.0, %v2418
    %v2420 = vpop.f32.mrb[0].mxu0
    %v2421 = vadd.f32 0.0, %v2420
    %2422 = vmatprep.mubr.f32.mxu0 0.0
    %2423 = vmatmul.mubr.f32.gmra.mrb[0].mxu0 %v180
    %v2424 = vpop.f32.mrb[0].mxu0
    %v2425 = vadd.f32 0.0, %v2424
    %v2426 = vpop.f32.mrb[0].mxu0
    %v2427 = vadd.f32 0.0, %v2426
    %2428 = vmatprep.mubr.f32.mxu0 0.0
    %2429 = vmatmul.mubr.f32.gmra.mrb[0].mxu0 %v183
    %v2430 = vpop.f32.mrb[0].mxu0
    %v2431 = vadd.f32 0.0, %v2430
    %v2432 = vpop.f32.mrb[0].mxu0
    %v2433 = vadd.f32 0.0, %v2432
    %2434 = vmatprep.mubr.f32.mxu0 0.0
    %2435 = vmatmul.mubr.f32.gmra.mrb[0].mxu0 %v186
    %v2436 = vpop.f32.mrb[0].mxu0
    %v2437 = vadd.f32 0.0, %v2436
    %v2438 = vpop.f32.mrb[0].mxu0
    %v2439 = vadd.f32 0.0, %v2438
    %2440 = vmatprep.mubr.f32.mxu0 0.0
    %2441 = vmatmul.mubr.f32.gmra.mrb[0].mxu0 %v189
    %v2442 = vpop.f32.mrb[0].mxu0
    %v2443 = vadd.f32 0.0, %v2442
    %v2444 = vpop.f32.mrb[0].mxu0
    %v2445 = vadd.f32 0.0, %v2444
    %2446 = vmatprep.mubr.f32.mxu0 0.0
    %2447 = vmatmul.mubr.f32.gmra.mrb[0].mxu0 %v192
    %v2448 = vpop.f32.mrb[0].mxu0
    %v2449 = vadd.f32 0.0, %v2448
    %v2450 = vpop.f32.mrb[0].mxu0
    %v2451 = vadd.f32 0.0, %v2450
    %2452 = vmatprep.mubr.f32.mxu0 0.0
    %2453 = vmatmul.mubr.f32.gmra.mrb[0].mxu0 %v195
    %v2454 = vpop.f32.mrb[0].mxu0
    %v2455 = vadd.f32 0.0, %v2454
    %v2456 = vpop.f32.mrb[0].mxu0
    %v2457 = vadd.f32 0.0, %v2456
    %2458 = vmatprep.mubr.f32.mxu0 0.0
    %2459 = vmatmul.mubr.f32.gmra.mrb[0].mxu0 %v198
    %v2460 = vpop.f32.mrb[0].mxu0
    %v2461 = vadd.f32 0.0, %v2460
    %v2462 = vpop.f32.mrb[0].mxu0
    %v2463 = vadd.f32 0.0, %v2462
    %2464 = vdwg.mxu0
    %v2465 = vmul.f32 %v359, %v2308
    %v2466 = vmul.f32 %v359, %v2309
    %v2467 = vsel %vm200, %v2465, 0.0
    %v2468 = vrot.slane %v2467, 4
    %v2469 = vadd.f32 %v2467, %v2468
    %v2470 = vrot.slane %v2469, 2
    %v2471 = vadd.f32 %v2469, %v2470
    %v2472 = vrot.slane %v2471, 1
    %v2473 = vadd.f32 %v2471, %v2472
    %v2474 = vsel %vm200, %v2466, 0.0
    %v2475 = vrot.slane %v2474, 4
    %v2476 = vadd.f32 %v2474, %v2475
    %v2477 = vrot.slane %v2476, 2
    %v2478 = vadd.f32 %v2476, %v2477
    %v2479 = vrot.slane %v2478, 1
    %v2480 = vadd.f32 %v2478, %v2479
    %2481 = vrot.lane.b32.xlu0 %v2383, 17
    %v2482 = vpop.permute.xlu0 %2481
    %2483 = vrot.lane.b32.xlu0 %v2385, 17
    %v2484 = vpop.permute.xlu0 %2483
    %v2485 = vsel %vm383, %v2482, %v2484
    %v2486 = vsel %vm383, %v2484, %v2482
    %v2487 = vld [vmem:[%s7] ss:$8 sm:$0x3]
    %v2489 = vlaneseq
    %v2490 = vshrl.u32 %v2489, 7
    %v2491 = vsub.s32 0, %v2490
    %v2492 = vrot.slane %v2487, %v2491
    %v2493 = vlaneseq
    %v2494 = vshrl.u32 %v2493, 7
    %v2495 = vsub.s32 1, %v2494
    %v2496 = vrot.slane %v2487, %v2495
    %v2499 = vmul.f32 %v2486, %v2492
    %v2500 = vmul.f32 %v2485, %v2496
    %v2503 = vrot.slane %v2383, 4
    %v2504 = vrot.slane %v2385, 4
    %2507 = vrot.lane.b32.xlu0 %v2503, 16
    %v2508 = vpop.permute.xlu0 %2507
    %2509 = vrot.lane.b32.xlu0 %v2504, 16
    %v2510 = vpop.permute.xlu0 %2509
    %v2511 = vsel %vm410, %v2508, %v2510
    %v2512 = vsel %vm410, %v2510, %v2508
    %v2513 = vld [vmem:[%s413] ss:$8 sm:$0x3]
    %v2515 = vlaneseq
    %v2516 = vshrl.u32 %v2515, 7
    %v2517 = vsub.s32 0, %v2516
    %v2518 = vrot.slane %v2513, %v2517
    %v2519 = vlaneseq
    %v2520 = vshrl.u32 %v2519, 7
    %v2521 = vsub.s32 1, %v2520
    %v2522 = vrot.slane %v2513, %v2521
    %v2525 = vmul.f32 %v2512, %v2518
    %v2526 = vmul.f32 %v2511, %v2522
    %v2527 = vadd.f32 %v2499, %v2525
    %v2528 = vadd.f32 %v2500, %v2526
    %2529 = vrot.lane.b32.xlu0 %v2389, 15
    %v2530 = vpop.permute.xlu0 %2529
    %2531 = vrot.lane.b32.xlu0 %v2391, 15
    %v2532 = vpop.permute.xlu0 %2531
    %v2533 = vsel %vm434, %v2530, %v2532
    %v2534 = vsel %vm434, %v2532, %v2530
    %v2535 = vld [vmem:[%s437] ss:$8 sm:$0x3]
    %v2537 = vlaneseq
    %v2538 = vshrl.u32 %v2537, 7
    %v2539 = vsub.s32 0, %v2538
    %v2540 = vrot.slane %v2535, %v2539
    %v2541 = vlaneseq
    %v2542 = vshrl.u32 %v2541, 7
    %v2543 = vsub.s32 1, %v2542
    %v2544 = vrot.slane %v2535, %v2543
    %v2547 = vmul.f32 %v2534, %v2540
    %v2548 = vmul.f32 %v2533, %v2544
    %v2549 = vadd.f32 %v2527, %v2547
    %v2550 = vadd.f32 %v2528, %v2548
    %v2553 = vrot.slane %v2389, 4
    %v2554 = vrot.slane %v2391, 4
    %2557 = vrot.lane.b32.xlu0 %v2553, 1
    %v2558 = vpop.permute.xlu0 %2557
    %2559 = vrot.lane.b32.xlu0 %v2554, 1
    %v2560 = vpop.permute.xlu0 %2559
    %v2561 = vsel %vm464, %v2558, %v2560
    %v2562 = vsel %vm464, %v2560, %v2558
    %v2563 = vld [vmem:[%s467] ss:$8 sm:$0x3]
    %v2565 = vlaneseq
    %v2566 = vshrl.u32 %v2565, 7
    %v2567 = vsub.s32 0, %v2566
    %v2568 = vrot.slane %v2563, %v2567
    %v2569 = vlaneseq
    %v2570 = vshrl.u32 %v2569, 7
    %v2571 = vsub.s32 1, %v2570
    %v2572 = vrot.slane %v2563, %v2571
    %v2575 = vmul.f32 %v2562, %v2568
    %v2576 = vmul.f32 %v2561, %v2572
    %v2577 = vadd.f32 %v2549, %v2575
    %v2578 = vadd.f32 %v2550, %v2576
    %v2579 = vadd.f32 %v2577, %v2395
    %v2580 = vadd.f32 %v2578, %v2397
    %v2583 = vrot.slane %v2395, 4
    %v2584 = vrot.slane %v2397, 4
    %2587 = vrot.lane.b32.xlu0 %v2583, 127
    %v2588 = vpop.permute.xlu0 %2587
    %2589 = vrot.lane.b32.xlu0 %v2584, 127
    %v2590 = vpop.permute.xlu0 %2589
    %v2591 = vsel %vm496, %v2588, %v2590
    %v2592 = vsel %vm496, %v2590, %v2588
    %v2593 = vld [vmem:[%s499] ss:$8 sm:$0x3]
    %v2595 = vlaneseq
    %v2596 = vshrl.u32 %v2595, 7
    %v2597 = vsub.s32 0, %v2596
    %v2598 = vrot.slane %v2593, %v2597
    %v2599 = vlaneseq
    %v2600 = vshrl.u32 %v2599, 7
    %v2601 = vsub.s32 1, %v2600
    %v2602 = vrot.slane %v2593, %v2601
    %v2605 = vmul.f32 %v2591, %v2598
    %v2606 = vmul.f32 %v2592, %v2602
    %v2607 = vadd.f32 %v2579, %v2605
    %v2608 = vadd.f32 %v2580, %v2606
    %2609 = vrot.lane.b32.xlu0 %v2401, 113
    %v2610 = vpop.permute.xlu0 %2609
    %2611 = vrot.lane.b32.xlu0 %v2403, 113
    %v2612 = vpop.permute.xlu0 %2611
    %v2613 = vsel %vm520, %v2610, %v2612
    %v2614 = vsel %vm520, %v2612, %v2610
    %v2615 = vld [vmem:[%s523] ss:$8 sm:$0x3]
    %v2617 = vlaneseq
    %v2618 = vshrl.u32 %v2617, 7
    %v2619 = vsub.s32 0, %v2618
    %v2620 = vrot.slane %v2615, %v2619
    %v2621 = vlaneseq
    %v2622 = vshrl.u32 %v2621, 7
    %v2623 = vsub.s32 1, %v2622
    %v2624 = vrot.slane %v2615, %v2623
    %v2627 = vmul.f32 %v2613, %v2620
    %v2628 = vmul.f32 %v2614, %v2624
    %v2629 = vadd.f32 %v2607, %v2627
    %v2630 = vadd.f32 %v2608, %v2628
    %v2633 = vrot.slane %v2401, 4
    %v2634 = vrot.slane %v2403, 4
    %2637 = vrot.lane.b32.xlu0 %v2633, 112
    %v2638 = vpop.permute.xlu0 %2637
    %2639 = vrot.lane.b32.xlu0 %v2634, 112
    %v2640 = vpop.permute.xlu0 %2639
    %v2641 = vsel %vm550, %v2638, %v2640
    %v2642 = vsel %vm550, %v2640, %v2638
    %v2643 = vld [vmem:[%s553] ss:$8 sm:$0x3]
    %v2645 = vlaneseq
    %v2646 = vshrl.u32 %v2645, 7
    %v2647 = vsub.s32 0, %v2646
    %v2648 = vrot.slane %v2643, %v2647
    %v2649 = vlaneseq
    %v2650 = vshrl.u32 %v2649, 7
    %v2651 = vsub.s32 1, %v2650
    %v2652 = vrot.slane %v2643, %v2651
    %v2655 = vmul.f32 %v2641, %v2648
    %v2656 = vmul.f32 %v2642, %v2652
    %v2657 = vadd.f32 %v2629, %v2655
    %v2658 = vadd.f32 %v2630, %v2656
    %2659 = vrot.lane.b32.xlu0 %v2407, 111
    %v2660 = vpop.permute.xlu0 %2659
    %2661 = vrot.lane.b32.xlu0 %v2409, 111
    %v2662 = vpop.permute.xlu0 %2661
    %v2663 = vsel %vm574, %v2660, %v2662
    %v2664 = vsel %vm574, %v2662, %v2660
    %v2665 = vld [vmem:[%s577] ss:$8 sm:$0x3]
    %v2667 = vlaneseq
    %v2668 = vshrl.u32 %v2667, 7
    %v2669 = vsub.s32 0, %v2668
    %v2670 = vrot.slane %v2665, %v2669
    %v2671 = vlaneseq
    %v2672 = vshrl.u32 %v2671, 7
    %v2673 = vsub.s32 1, %v2672
    %v2674 = vrot.slane %v2665, %v2673
    %v2677 = vmul.f32 %v2663, %v2670
    %v2678 = vmul.f32 %v2664, %v2674
    %v2679 = vadd.f32 %v2657, %v2677
    %v2680 = vadd.f32 %v2658, %v2678
    %v2681 = vmul.f32 %v2679, 0.999995
    %v2682 = vmul.f32 %v2680, 0.999995
    %v2683 = vmax.f32 %v2681, 0.0
    %v2684 = vmax.f32 %v2682, 0.0
    %v2687 = vrot.slane %v2683, 4
    %v2688 = vrot.slane %v2684, 4
    %v2691 = vmul.f32 %v359, %v2687
    %v2692 = vmul.f32 %v359, %v2688
    %v2695 = vrot.slane %v2691, 4
    %v2696 = vrot.slane %v2692, 4
    %v2699 = vsel %vm200, %v2695, 0.0
    %v2700 = vrot.slane %v2699, 4
    %v2701 = vadd.f32 %v2699, %v2700
    %v2702 = vrot.slane %v2701, 2
    %v2703 = vadd.f32 %v2701, %v2702
    %v2704 = vrot.slane %v2703, 1
    %v2705 = vadd.f32 %v2703, %v2704
    %v2706 = vsel %vm200, %v2696, 0.0
    %v2707 = vrot.slane %v2706, 4
    %v2708 = vadd.f32 %v2706, %v2707
    %v2709 = vrot.slane %v2708, 2
    %v2710 = vadd.f32 %v2708, %v2709
    %v2711 = vrot.slane %v2710, 1
    %v2712 = vadd.f32 %v2710, %v2711
    %v2713 = vadd.f32 %v2473, %v2705
    %v2714 = vadd.f32 %v2480, %v2712
    %v2717 = vrot.slane %v2407, 4
    %v2718 = vrot.slane %v2409, 4
    %2721 = vrot.lane.b32.xlu0 %v2717, 34
    %v2722 = vpop.permute.xlu0 %2721
    %2723 = vrot.lane.b32.xlu0 %v2718, 34
    %v2724 = vpop.permute.xlu0 %2723
    %v2725 = vsel %vm638, %v2722, %v2724
    %v2726 = vsel %vm638, %v2724, %v2722
    %v2727 = vld [vmem:[%s641] ss:$8 sm:$0x3]
    %v2729 = vlaneseq
    %v2730 = vshrl.u32 %v2729, 7
    %v2731 = vsub.s32 0, %v2730
    %v2732 = vrot.slane %v2727, %v2731
    %v2733 = vlaneseq
    %v2734 = vshrl.u32 %v2733, 7
    %v2735 = vsub.s32 1, %v2734
    %v2736 = vrot.slane %v2727, %v2735
    %v2739 = vmul.f32 %v2726, %v2732
    %v2740 = vmul.f32 %v2725, %v2736
    %2741 = vrot.lane.b32.xlu0 %v2413, 32
    %v2742 = vpop.permute.xlu0 %2741
    %2743 = vrot.lane.b32.xlu0 %v2415, 32
    %v2744 = vpop.permute.xlu0 %2743
    %v2745 = vsel %vm660, %v2742, %v2744
    %v2746 = vsel %vm660, %v2744, %v2742
    %v2747 = vld [vmem:[%s663] ss:$8 sm:$0x3]
    %v2749 = vlaneseq
    %v2750 = vshrl.u32 %v2749, 7
    %v2751 = vsub.s32 0, %v2750
    %v2752 = vrot.slane %v2747, %v2751
    %v2753 = vlaneseq
    %v2754 = vshrl.u32 %v2753, 7
    %v2755 = vsub.s32 1, %v2754
    %v2756 = vrot.slane %v2747, %v2755
    %v2759 = vmul.f32 %v2746, %v2752
    %v2760 = vmul.f32 %v2745, %v2756
    %v2761 = vadd.f32 %v2739, %v2759
    %v2762 = vadd.f32 %v2740, %v2760
    %v2765 = vrot.slane %v2413, 4
    %v2766 = vrot.slane %v2415, 4
    %2769 = vrot.lane.b32.xlu0 %v2765, 30
    %v2770 = vpop.permute.xlu0 %2769
    %2771 = vrot.lane.b32.xlu0 %v2766, 30
    %v2772 = vpop.permute.xlu0 %2771
    %v2773 = vsel %vm690, %v2770, %v2772
    %v2774 = vsel %vm690, %v2772, %v2770
    %v2775 = vld [vmem:[%s693] ss:$8 sm:$0x3]
    %v2777 = vlaneseq
    %v2778 = vshrl.u32 %v2777, 7
    %v2779 = vsub.s32 0, %v2778
    %v2780 = vrot.slane %v2775, %v2779
    %v2781 = vlaneseq
    %v2782 = vshrl.u32 %v2781, 7
    %v2783 = vsub.s32 1, %v2782
    %v2784 = vrot.slane %v2775, %v2783
    %v2787 = vmul.f32 %v2774, %v2780
    %v2788 = vmul.f32 %v2773, %v2784
    %v2789 = vadd.f32 %v2761, %v2787
    %v2790 = vadd.f32 %v2762, %v2788
    %2791 = vrot.lane.b32.xlu0 %v2419, 2
    %v2792 = vpop.permute.xlu0 %2791
    %2793 = vrot.lane.b32.xlu0 %v2421, 2
    %v2794 = vpop.permute.xlu0 %2793
    %v2795 = vsel %vm714, %v2792, %v2794
    %v2796 = vsel %vm714, %v2794, %v2792
    %v2797 = vld [vmem:[%s717] ss:$8 sm:$0x3]
    %v2799 = vlaneseq
    %v2800 = vshrl.u32 %v2799, 7
    %v2801 = vsub.s32 0, %v2800
    %v2802 = vrot.slane %v2797, %v2801
    %v2803 = vlaneseq
    %v2804 = vshrl.u32 %v2803, 7
    %v2805 = vsub.s32 1, %v2804
    %v2806 = vrot.slane %v2797, %v2805
    %v2809 = vmul.f32 %v2796, %v2802
    %v2810 = vmul.f32 %v2795, %v2806
    %v2811 = vadd.f32 %v2789, %v2809
    %v2812 = vadd.f32 %v2790, %v2810
    %v2815 = vrot.slane %v2419, 4
    %v2816 = vrot.slane %v2421, 4
    %v2819 = vadd.f32 %v2811, %v2815
    %v2820 = vadd.f32 %v2812, %v2816
    %2821 = vrot.lane.b32.xlu0 %v2425, 126
    %v2822 = vpop.permute.xlu0 %2821
    %2823 = vrot.lane.b32.xlu0 %v2427, 126
    %v2824 = vpop.permute.xlu0 %2823
    %v2825 = vsel %vm746, %v2822, %v2824
    %v2826 = vsel %vm746, %v2824, %v2822
    %v2827 = vld [vmem:[%s749] ss:$8 sm:$0x3]
    %v2829 = vlaneseq
    %v2830 = vshrl.u32 %v2829, 7
    %v2831 = vsub.s32 0, %v2830
    %v2832 = vrot.slane %v2827, %v2831
    %v2833 = vlaneseq
    %v2834 = vshrl.u32 %v2833, 7
    %v2835 = vsub.s32 1, %v2834
    %v2836 = vrot.slane %v2827, %v2835
    %v2839 = vmul.f32 %v2825, %v2832
    %v2840 = vmul.f32 %v2826, %v2836
    %v2841 = vadd.f32 %v2819, %v2839
    %v2842 = vadd.f32 %v2820, %v2840
    %v2845 = vrot.slane %v2425, 4
    %v2846 = vrot.slane %v2427, 4
    %2849 = vrot.lane.b32.xlu0 %v2845, 98
    %v2850 = vpop.permute.xlu0 %2849
    %2851 = vrot.lane.b32.xlu0 %v2846, 98
    %v2852 = vpop.permute.xlu0 %2851
    %v2853 = vsel %vm776, %v2850, %v2852
    %v2854 = vsel %vm776, %v2852, %v2850
    %v2855 = vld [vmem:[%s779] ss:$8 sm:$0x3]
    %v2857 = vlaneseq
    %v2858 = vshrl.u32 %v2857, 7
    %v2859 = vsub.s32 0, %v2858
    %v2860 = vrot.slane %v2855, %v2859
    %v2861 = vlaneseq
    %v2862 = vshrl.u32 %v2861, 7
    %v2863 = vsub.s32 1, %v2862
    %v2864 = vrot.slane %v2855, %v2863
    %v2867 = vmul.f32 %v2853, %v2860
    %v2868 = vmul.f32 %v2854, %v2864
    %v2869 = vadd.f32 %v2841, %v2867
    %v2870 = vadd.f32 %v2842, %v2868
    %2871 = vrot.lane.b32.xlu0 %v2431, 96
    %v2872 = vpop.permute.xlu0 %2871
    %2873 = vrot.lane.b32.xlu0 %v2433, 96
    %v2874 = vpop.permute.xlu0 %2873
    %v2875 = vsel %vm800, %v2872, %v2874
    %v2876 = vsel %vm800, %v2874, %v2872
    %v2877 = vld [vmem:[%s803] ss:$8 sm:$0x3]
    %v2879 = vlaneseq
    %v2880 = vshrl.u32 %v2879, 7
    %v2881 = vsub.s32 0, %v2880
    %v2882 = vrot.slane %v2877, %v2881
    %v2883 = vlaneseq
    %v2884 = vshrl.u32 %v2883, 7
    %v2885 = vsub.s32 1, %v2884
    %v2886 = vrot.slane %v2877, %v2885
    %v2889 = vmul.f32 %v2875, %v2882
    %v2890 = vmul.f32 %v2876, %v2886
    %v2891 = vadd.f32 %v2869, %v2889
    %v2892 = vadd.f32 %v2870, %v2890
    %v2895 = vrot.slane %v2431, 4
    %v2896 = vrot.slane %v2433, 4
    %2899 = vrot.lane.b32.xlu0 %v2895, 94
    %v2900 = vpop.permute.xlu0 %2899
    %2901 = vrot.lane.b32.xlu0 %v2896, 94
    %v2902 = vpop.permute.xlu0 %2901
    %v2903 = vsel %vm830, %v2900, %v2902
    %v2904 = vsel %vm830, %v2902, %v2900
    %v2905 = vld [vmem:[%s833] ss:$8 sm:$0x3]
    %v2907 = vlaneseq
    %v2908 = vshrl.u32 %v2907, 7
    %v2909 = vsub.s32 0, %v2908
    %v2910 = vrot.slane %v2905, %v2909
    %v2911 = vlaneseq
    %v2912 = vshrl.u32 %v2911, 7
    %v2913 = vsub.s32 1, %v2912
    %v2914 = vrot.slane %v2905, %v2913
    %v2917 = vmul.f32 %v2903, %v2910
    %v2918 = vmul.f32 %v2904, %v2914
    %v2919 = vadd.f32 %v2891, %v2917
    %v2920 = vadd.f32 %v2892, %v2918
    %v2921 = vmul.f32 %v2919, 0.999995
    %v2922 = vmul.f32 %v2920, 0.999995
    %v2923 = vmax.f32 %v2921, 0.0
    %v2924 = vmax.f32 %v2922, 0.0
    %v2925 = vmul.f32 %v857, %v2923
    %v2926 = vmul.f32 %v857, %v2924
    %v2927 = vsel %vm200, %v2925, 0.0
    %v2928 = vrot.slane %v2927, 4
    %v2929 = vadd.f32 %v2927, %v2928
    %v2930 = vrot.slane %v2929, 2
    %v2931 = vadd.f32 %v2929, %v2930
    %v2932 = vrot.slane %v2931, 1
    %v2933 = vadd.f32 %v2931, %v2932
    %v2934 = vsel %vm200, %v2926, 0.0
    %v2935 = vrot.slane %v2934, 4
    %v2936 = vadd.f32 %v2934, %v2935
    %v2937 = vrot.slane %v2936, 2
    %v2938 = vadd.f32 %v2936, %v2937
    %v2939 = vrot.slane %v2938, 1
    %v2940 = vadd.f32 %v2938, %v2939
    %v2941 = vadd.f32 %v2713, %v2933
    %v2942 = vadd.f32 %v2714, %v2940
    %2943 = vrot.lane.b32.xlu0 %v2437, 51
    %v2944 = vpop.permute.xlu0 %2943
    %2945 = vrot.lane.b32.xlu0 %v2439, 51
    %v2946 = vpop.permute.xlu0 %2945
    %v2947 = vsel %vm881, %v2944, %v2946
    %v2948 = vsel %vm881, %v2946, %v2944
    %v2949 = vld [vmem:[%s884] ss:$8 sm:$0x3]
    %v2951 = vlaneseq
    %v2952 = vshrl.u32 %v2951, 7
    %v2953 = vsub.s32 0, %v2952
    %v2954 = vrot.slane %v2949, %v2953
    %v2955 = vlaneseq
    %v2956 = vshrl.u32 %v2955, 7
    %v2957 = vsub.s32 1, %v2956
    %v2958 = vrot.slane %v2949, %v2957
    %v2961 = vmul.f32 %v2948, %v2954
    %v2962 = vmul.f32 %v2947, %v2958
    %v2965 = vrot.slane %v2437, 4
    %v2966 = vrot.slane %v2439, 4
    %2969 = vrot.lane.b32.xlu0 %v2965, 48
    %v2970 = vpop.permute.xlu0 %2969
    %2971 = vrot.lane.b32.xlu0 %v2966, 48
    %v2972 = vpop.permute.xlu0 %2971
    %v2973 = vsel %vm909, %v2970, %v2972
    %v2974 = vsel %vm909, %v2972, %v2970
    %v2975 = vld [vmem:[%s912] ss:$8 sm:$0x3]
    %v2977 = vlaneseq
    %v2978 = vshrl.u32 %v2977, 7
    %v2979 = vsub.s32 0, %v2978
    %v2980 = vrot.slane %v2975, %v2979
    %v2981 = vlaneseq
    %v2982 = vshrl.u32 %v2981, 7
    %v2983 = vsub.s32 1, %v2982
    %v2984 = vrot.slane %v2975, %v2983
    %v2987 = vmul.f32 %v2974, %v2980
    %v2988 = vmul.f32 %v2973, %v2984
    %v2989 = vadd.f32 %v2961, %v2987
    %v2990 = vadd.f32 %v2962, %v2988
    %2991 = vrot.lane.b32.xlu0 %v2443, 45
    %v2992 = vpop.permute.xlu0 %2991
    %2993 = vrot.lane.b32.xlu0 %v2445, 45
    %v2994 = vpop.permute.xlu0 %2993
    %v2995 = vsel %vm933, %v2992, %v2994
    %v2996 = vsel %vm933, %v2994, %v2992
    %v2997 = vld [vmem:[%s936] ss:$8 sm:$0x3]
    %v2999 = vlaneseq
    %v3000 = vshrl.u32 %v2999, 7
    %v3001 = vsub.s32 0, %v3000
    %v3002 = vrot.slane %v2997, %v3001
    %v3003 = vlaneseq
    %v3004 = vshrl.u32 %v3003, 7
    %v3005 = vsub.s32 1, %v3004
    %v3006 = vrot.slane %v2997, %v3005
    %v3009 = vmul.f32 %v2996, %v3002
    %v3010 = vmul.f32 %v2995, %v3006
    %v3011 = vadd.f32 %v2989, %v3009
    %v3012 = vadd.f32 %v2990, %v3010
    %v3015 = vrot.slane %v2443, 4
    %v3016 = vrot.slane %v2445, 4
    %3019 = vrot.lane.b32.xlu0 %v3015, 3
    %v3020 = vpop.permute.xlu0 %3019
    %3021 = vrot.lane.b32.xlu0 %v3016, 3
    %v3022 = vpop.permute.xlu0 %3021
    %v3023 = vsel %vm963, %v3020, %v3022
    %v3024 = vsel %vm963, %v3022, %v3020
    %v3025 = vld [vmem:[%s966] ss:$8 sm:$0x3]
    %v3027 = vlaneseq
    %v3028 = vshrl.u32 %v3027, 7
    %v3029 = vsub.s32 0, %v3028
    %v3030 = vrot.slane %v3025, %v3029
    %v3031 = vlaneseq
    %v3032 = vshrl.u32 %v3031, 7
    %v3033 = vsub.s32 1, %v3032
    %v3034 = vrot.slane %v3025, %v3033
    %v3037 = vmul.f32 %v3024, %v3030
    %v3038 = vmul.f32 %v3023, %v3034
    %v3039 = vadd.f32 %v3011, %v3037
    %v3040 = vadd.f32 %v3012, %v3038
    %v3041 = vadd.f32 %v3039, %v2449
    %v3042 = vadd.f32 %v3040, %v2451
    %v3045 = vrot.slane %v2449, 4
    %v3046 = vrot.slane %v2451, 4
    %3049 = vrot.lane.b32.xlu0 %v3045, 125
    %v3050 = vpop.permute.xlu0 %3049
    %3051 = vrot.lane.b32.xlu0 %v3046, 125
    %v3052 = vpop.permute.xlu0 %3051
    %v3053 = vsel %vm995, %v3050, %v3052
    %v3054 = vsel %vm995, %v3052, %v3050
    %v3055 = vld [vmem:[%s998] ss:$8 sm:$0x3]
    %v3057 = vlaneseq
    %v3058 = vshrl.u32 %v3057, 7
    %v3059 = vsub.s32 0, %v3058
    %v3060 = vrot.slane %v3055, %v3059
    %v3061 = vlaneseq
    %v3062 = vshrl.u32 %v3061, 7
    %v3063 = vsub.s32 1, %v3062
    %v3064 = vrot.slane %v3055, %v3063
    %v3067 = vmul.f32 %v3053, %v3060
    %v3068 = vmul.f32 %v3054, %v3064
    %v3069 = vadd.f32 %v3041, %v3067
    %v3070 = vadd.f32 %v3042, %v3068
    %3071 = vrot.lane.b32.xlu0 %v2455, 83
    %v3072 = vpop.permute.xlu0 %3071
    %3073 = vrot.lane.b32.xlu0 %v2457, 83
    %v3074 = vpop.permute.xlu0 %3073
    %v3075 = vsel %vm1019, %v3072, %v3074
    %v3076 = vsel %vm1019, %v3074, %v3072
    %v3077 = vld [vmem:[%s1022] ss:$8 sm:$0x3]
    %v3079 = vlaneseq
    %v3080 = vshrl.u32 %v3079, 7
    %v3081 = vsub.s32 0, %v3080
    %v3082 = vrot.slane %v3077, %v3081
    %v3083 = vlaneseq
    %v3084 = vshrl.u32 %v3083, 7
    %v3085 = vsub.s32 1, %v3084
    %v3086 = vrot.slane %v3077, %v3085
    %v3089 = vmul.f32 %v3075, %v3082
    %v3090 = vmul.f32 %v3076, %v3086
    %v3091 = vadd.f32 %v3069, %v3089
    %v3092 = vadd.f32 %v3070, %v3090
    %v3095 = vrot.slane %v2455, 4
    %v3096 = vrot.slane %v2457, 4
    %3099 = vrot.lane.b32.xlu0 %v3095, 80
    %v3100 = vpop.permute.xlu0 %3099
    %3101 = vrot.lane.b32.xlu0 %v3096, 80
    %v3102 = vpop.permute.xlu0 %3101
    %v3103 = vsel %vm1049, %v3100, %v3102
    %v3104 = vsel %vm1049, %v3102, %v3100
    %v3105 = vld [vmem:[%s1052] ss:$8 sm:$0x3]
    %v3107 = vlaneseq
    %v3108 = vshrl.u32 %v3107, 7
    %v3109 = vsub.s32 0, %v3108
    %v3110 = vrot.slane %v3105, %v3109
    %v3111 = vlaneseq
    %v3112 = vshrl.u32 %v3111, 7
    %v3113 = vsub.s32 1, %v3112
    %v3114 = vrot.slane %v3105, %v3113
    %v3117 = vmul.f32 %v3103, %v3110
    %v3118 = vmul.f32 %v3104, %v3114
    %v3119 = vadd.f32 %v3091, %v3117
    %v3120 = vadd.f32 %v3092, %v3118
    %3121 = vrot.lane.b32.xlu0 %v2461, 77
    %v3122 = vpop.permute.xlu0 %3121
    %3123 = vrot.lane.b32.xlu0 %v2463, 77
    %v3124 = vpop.permute.xlu0 %3123
    %v3125 = vsel %vm1073, %v3122, %v3124
    %v3126 = vsel %vm1073, %v3124, %v3122
    %v3127 = vld [vmem:[%s1076] ss:$8 sm:$0x3]
    %v3129 = vlaneseq
    %v3130 = vshrl.u32 %v3129, 7
    %v3131 = vsub.s32 0, %v3130
    %v3132 = vrot.slane %v3127, %v3131
    %v3133 = vlaneseq
    %v3134 = vshrl.u32 %v3133, 7
    %v3135 = vsub.s32 1, %v3134
    %v3136 = vrot.slane %v3127, %v3135
    %v3139 = vmul.f32 %v3125, %v3132
    %v3140 = vmul.f32 %v3126, %v3136
    %v3141 = vadd.f32 %v3119, %v3139
    %v3142 = vadd.f32 %v3120, %v3140
    %v3143 = vmul.f32 %v3141, 0.999995
    %v3144 = vmul.f32 %v3142, 0.999995
    %v3145 = vmax.f32 %v3143, 0.0
    %v3146 = vmax.f32 %v3144, 0.0
    %v3149 = vrot.slane %v3145, 4
    %v3150 = vrot.slane %v3146, 4
    %v3153 = vmul.f32 %v857, %v3149
    %v3154 = vmul.f32 %v857, %v3150
    %v3157 = vrot.slane %v3153, 4
    %v3158 = vrot.slane %v3154, 4
    %v3161 = vsel %vm200, %v3157, 0.0
    %v3162 = vrot.slane %v3161, 4
    %v3163 = vadd.f32 %v3161, %v3162
    %v3164 = vrot.slane %v3163, 2
    %v3165 = vadd.f32 %v3163, %v3164
    %v3166 = vrot.slane %v3165, 1
    %v3167 = vadd.f32 %v3165, %v3166
    %v3168 = vsel %vm200, %v3158, 0.0
    %v3169 = vrot.slane %v3168, 4
    %v3170 = vadd.f32 %v3168, %v3169
    %v3171 = vrot.slane %v3170, 2
    %v3172 = vadd.f32 %v3170, %v3171
    %v3173 = vrot.slane %v3172, 1
    %v3174 = vadd.f32 %v3172, %v3173
    %v3175 = vadd.f32 %v2941, %v3167
    %v3176 = vadd.f32 %v2942, %v3174
    %v3177 = vmul.f32 %v3175, 0.999995
    %v3178 = vmul.f32 %v3176, 0.999995
    %v3179 = vmax.f32 %v3177, 0.0
    %v3180 = vmax.f32 %v3178, 0.0
    %v3181 = vpack.c.bf16 %v2308, %v2308
    %v3182 = vpack.c.bf16 %v2309, %v2309
    %v3185 = vrot.slane %v3181, 2
    %v3186 = vrot.slane %v3182, 2
    %3189 = vxpose.xlu0.c.b16.start [1/8] %v3185, 128
    %3190 = vxpose.xlu0.c.b16.cont [2/8] 0, 128
    %3191 = vxpose.xlu0.c.b16.cont [3/8] 0, 128
    %3192 = vxpose.xlu0.c.b16.cont [4/8] 0, 128
    %3193 = vxpose.xlu0.c.b16.cont [5/8] 0, 128
    %3194 = vxpose.xlu0.c.b16.cont [6/8] 0, 128
    %3195 = vxpose.xlu0.c.b16.cont [7/8] 0, 128
    %3196 = vxpose.xlu0.c.b16.end [8/8] 0, 128
    %v3197 = vpop.trf.xlu0
    %v3198 = vpop.trf.xlu0
    %v3199 = vpop.trf.xlu0
    %v3200 = vpop.trf.xlu0
    %v3201 = vpop.trf.xlu0
    %v3202 = vpop.trf.xlu0
    %v3203 = vpop.trf.xlu0
    %v3204 = vpop.trf.xlu0
    %3205 = vxpose.xlu0.c.b16.start [1/8] %v3186, 128
    %3206 = vxpose.xlu0.c.b16.cont [2/8] 0, 128
    %3207 = vxpose.xlu0.c.b16.cont [3/8] 0, 128
    %3208 = vxpose.xlu0.c.b16.cont [4/8] 0, 128
    %3209 = vxpose.xlu0.c.b16.cont [5/8] 0, 128
    %3210 = vxpose.xlu0.c.b16.cont [6/8] 0, 128
    %3211 = vxpose.xlu0.c.b16.cont [7/8] 0, 128
    %3212 = vxpose.xlu0.c.b16.end [8/8] 0, 128
    %v3213 = vpop.trf.xlu0
    %v3214 = vpop.trf.xlu0
    %v3215 = vpop.trf.xlu0
    %v3216 = vpop.trf.xlu0
    %v3217 = vpop.trf.xlu0
    %v3218 = vpop.trf.xlu0
    %v3219 = vpop.trf.xlu0
    %v3220 = vpop.trf.xlu0
    %v3222 = vsel %vm157, %v3197, 0
    %v3225 = vsel %vm157, %v3198, 0
    %v3228 = vsel %vm157, %v3199, 0
    %v3231 = vsel %vm157, %v3200, 0
    %v3234 = vsel %vm157, %v3201, 0
    %v3237 = vsel %vm157, %v3202, 0
    %v3240 = vsel %vm157, %v3203, 0
    %v3243 = vsel %vm157, %v3204, 0
    %v3246 = vsel %vm157, %v3213, 0
    %v3249 = vsel %vm157, %v3214, 0
    %v3252 = vsel %vm157, %v3215, 0
    %v3255 = vsel %vm157, %v3216, 0
    %v3258 = vsel %vm157, %v3217, 0
    %v3261 = vsel %vm157, %v3218, 0
    %v3264 = vsel %vm157, %v3219, 0
    %v3267 = vsel %vm157, %v3220, 0
    %v3270 = vsel %vm1219, %v3185, 0
    %v3273 = vsel %vm1219, %v3186, 0
    %3275 = vmatprep.subr.bf16.mxu0 %v3273
    %3276 = vmatpush1.bf16.msra.mxu0 %v3270
    %3277 = vmatprep.subr.bf16.mxu0 0
    %3278 = vmatpush1.bf16.msra.mxu0 0
    %3279 = vmatprep.subr.bf16.mxu0 0
    %3280 = vmatpush1.bf16.msra.mxu0 0
    %3281 = vmatprep.subr.bf16.mxu0 0
    %3282 = vmatpush1.bf16.msra.mxu0 0
    %3283 = vmatprep.subr.bf16.mxu0 0
    %3284 = vmatpush1.bf16.msra.mxu0 0
    %3285 = vmatprep.subr.bf16.mxu0 0
    %3286 = vmatpush1.bf16.msra.mxu0 0
    %3287 = vmatprep.subr.bf16.mxu0 0
    %3288 = vmatpush1.bf16.msra.mxu0 0
    %3289 = vmatprep.subr.bf16.mxu0 0
    %3290 = vmatpush1.bf16.msra.mxu0 0
    %3291 = vmatprep.subr.bf16.mxu0 0
    %3292 = vmatpush1.bf16.msra.mxu0 0
    %3293 = vmatprep.subr.bf16.mxu0 0
    %3294 = vmatpush1.bf16.msra.mxu0 0
    %3295 = vmatprep.subr.bf16.mxu0 0
    %3296 = vmatpush1.bf16.msra.mxu0 0
    %3297 = vmatprep.subr.bf16.mxu0 0
    %3298 = vmatpush1.bf16.msra.mxu0 0
    %3299 = vmatprep.subr.bf16.mxu0 0
    %3300 = vmatpush1.bf16.msra.mxu0 0
    %3301 = vmatprep.subr.bf16.mxu0 0
    %3302 = vmatpush1.bf16.msra.mxu0 0
    %3303 = vmatprep.subr.bf16.mxu0 0
    %3304 = vmatpush1.bf16.msra.mxu0 0
    %3305 = vmatprep.subr.bf16.mxu0 0
    %3306 = vmatpush1.bf16.msra.mxu0 0
    %3307 = vmatprep.mubr.bf16.mxu0 0
    %3308 = vmatmul.mubr.bf16.gmra.mrb[0].mxu0 %v3222
    %v3309 = vpop.f32.mrb[0].mxu0
    %v3310 = vadd.f32 0.0, %v3309
    %v3311 = vpop.f32.mrb[0].mxu0
    %v3312 = vadd.f32 0.0, %v3311
    %v3313 = vpop.f32.mrb[0].mxu0
    %v3314 = vadd.f32 0.0, %v3313
    %v3315 = vpop.f32.mrb[0].mxu0
    %v3316 = vadd.f32 0.0, %v3315
    %3317 = vmatprep.mubr.bf16.mxu0 0
    %3318 = vmatmul.mubr.bf16.gmra.mrb[0].mxu0 %v3225
    %v3319 = vpop.f32.mrb[0].mxu0
    %v3320 = vadd.f32 0.0, %v3319
    %v3321 = vpop.f32.mrb[0].mxu0
    %v3322 = vadd.f32 0.0, %v3321
    %v3323 = vpop.f32.mrb[0].mxu0
    %v3324 = vadd.f32 0.0, %v3323
    %v3325 = vpop.f32.mrb[0].mxu0
    %v3326 = vadd.f32 0.0, %v3325
    %3327 = vmatprep.mubr.bf16.mxu0 0
    %3328 = vmatmul.mubr.bf16.gmra.mrb[0].mxu0 %v3228
    %v3329 = vpop.f32.mrb[0].mxu0
    %v3330 = vadd.f32 0.0, %v3329
    %v3331 = vpop.f32.mrb[0].mxu0
    %v3332 = vadd.f32 0.0, %v3331
    %v3333 = vpop.f32.mrb[0].mxu0
    %v3334 = vadd.f32 0.0, %v3333
    %v3335 = vpop.f32.mrb[0].mxu0
    %v3336 = vadd.f32 0.0, %v3335
    %3337 = vmatprep.mubr.bf16.mxu0 0
    %3338 = vmatmul.mubr.bf16.gmra.mrb[0].mxu0 %v3231
    %v3339 = vpop.f32.mrb[0].mxu0
    %v3340 = vadd.f32 0.0, %v3339
    %v3341 = vpop.f32.mrb[0].mxu0
    %v3342 = vadd.f32 0.0, %v3341
    %v3343 = vpop.f32.mrb[0].mxu0
    %v3344 = vadd.f32 0.0, %v3343
    %v3345 = vpop.f32.mrb[0].mxu0
    %v3346 = vadd.f32 0.0, %v3345
    %3347 = vmatprep.mubr.bf16.mxu0 0
    %3348 = vmatmul.mubr.bf16.gmra.mrb[0].mxu0 %v3234
    %v3349 = vpop.f32.mrb[0].mxu0
    %v3350 = vadd.f32 0.0, %v3349
    %v3351 = vpop.f32.mrb[0].mxu0
    %v3352 = vadd.f32 0.0, %v3351
    %v3353 = vpop.f32.mrb[0].mxu0
    %v3354 = vadd.f32 0.0, %v3353
    %v3355 = vpop.f32.mrb[0].mxu0
    %v3356 = vadd.f32 0.0, %v3355
    %3357 = vmatprep.mubr.bf16.mxu0 0
    %3358 = vmatmul.mubr.bf16.gmra.mrb[0].mxu0 %v3237
    %v3359 = vpop.f32.mrb[0].mxu0
    %v3360 = vadd.f32 0.0, %v3359
    %v3361 = vpop.f32.mrb[0].mxu0
    %v3362 = vadd.f32 0.0, %v3361
    %v3363 = vpop.f32.mrb[0].mxu0
    %v3364 = vadd.f32 0.0, %v3363
    %v3365 = vpop.f32.mrb[0].mxu0
    %v3366 = vadd.f32 0.0, %v3365
    %3367 = vmatprep.mubr.bf16.mxu0 0
    %3368 = vmatmul.mubr.bf16.gmra.mrb[0].mxu0 %v3240
    %v3369 = vpop.f32.mrb[0].mxu0
    %v3370 = vadd.f32 0.0, %v3369
    %v3371 = vpop.f32.mrb[0].mxu0
    %v3372 = vadd.f32 0.0, %v3371
    %v3373 = vpop.f32.mrb[0].mxu0
    %v3374 = vadd.f32 0.0, %v3373
    %v3375 = vpop.f32.mrb[0].mxu0
    %v3376 = vadd.f32 0.0, %v3375
    %3377 = vmatprep.mubr.bf16.mxu0 0
    %3378 = vmatmul.mubr.bf16.gmra.mrb[0].mxu0 %v3243
    %v3379 = vpop.f32.mrb[0].mxu0
    %v3380 = vadd.f32 0.0, %v3379
    %v3381 = vpop.f32.mrb[0].mxu0
    %v3382 = vadd.f32 0.0, %v3381
    %v3383 = vpop.f32.mrb[0].mxu0
    %v3384 = vadd.f32 0.0, %v3383
    %v3385 = vpop.f32.mrb[0].mxu0
    %v3386 = vadd.f32 0.0, %v3385
    %3387 = vmatprep.mubr.bf16.mxu0 0
    %3388 = vmatmul.mubr.bf16.gmra.mrb[0].mxu0 %v3246
    %v3389 = vpop.f32.mrb[0].mxu0
    %v3390 = vadd.f32 0.0, %v3389
    %v3391 = vpop.f32.mrb[0].mxu0
    %v3392 = vadd.f32 0.0, %v3391
    %v3393 = vpop.f32.mrb[0].mxu0
    %v3394 = vadd.f32 0.0, %v3393
    %v3395 = vpop.f32.mrb[0].mxu0
    %v3396 = vadd.f32 0.0, %v3395
    %3397 = vmatprep.mubr.bf16.mxu0 0
    %3398 = vmatmul.mubr.bf16.gmra.mrb[0].mxu0 %v3249
    %v3399 = vpop.f32.mrb[0].mxu0
    %v3400 = vadd.f32 0.0, %v3399
    %v3401 = vpop.f32.mrb[0].mxu0
    %v3402 = vadd.f32 0.0, %v3401
    %v3403 = vpop.f32.mrb[0].mxu0
    %v3404 = vadd.f32 0.0, %v3403
    %v3405 = vpop.f32.mrb[0].mxu0
    %v3406 = vadd.f32 0.0, %v3405
    %3407 = vmatprep.mubr.bf16.mxu0 0
    %3408 = vmatmul.mubr.bf16.gmra.mrb[0].mxu0 %v3252
    %v3409 = vpop.f32.mrb[0].mxu0
    %v3410 = vadd.f32 0.0, %v3409
    %v3411 = vpop.f32.mrb[0].mxu0
    %v3412 = vadd.f32 0.0, %v3411
    %v3413 = vpop.f32.mrb[0].mxu0
    %v3414 = vadd.f32 0.0, %v3413
    %v3415 = vpop.f32.mrb[0].mxu0
    %v3416 = vadd.f32 0.0, %v3415
    %3417 = vmatprep.mubr.bf16.mxu0 0
    %3418 = vmatmul.mubr.bf16.gmra.mrb[0].mxu0 %v3255
    %v3419 = vpop.f32.mrb[0].mxu0
    %v3420 = vadd.f32 0.0, %v3419
    %v3421 = vpop.f32.mrb[0].mxu0
    %v3422 = vadd.f32 0.0, %v3421
    %v3423 = vpop.f32.mrb[0].mxu0
    %v3424 = vadd.f32 0.0, %v3423
    %v3425 = vpop.f32.mrb[0].mxu0
    %v3426 = vadd.f32 0.0, %v3425
    %3427 = vmatprep.mubr.bf16.mxu0 0
    %3428 = vmatmul.mubr.bf16.gmra.mrb[0].mxu0 %v3258
    %v3429 = vpop.f32.mrb[0].mxu0
    %v3430 = vadd.f32 0.0, %v3429
    %v3431 = vpop.f32.mrb[0].mxu0
    %v3432 = vadd.f32 0.0, %v3431
    %v3433 = vpop.f32.mrb[0].mxu0
    %v3434 = vadd.f32 0.0, %v3433
    %v3435 = vpop.f32.mrb[0].mxu0
    %v3436 = vadd.f32 0.0, %v3435
    %3437 = vmatprep.mubr.bf16.mxu0 0
    %3438 = vmatmul.mubr.bf16.gmra.mrb[0].mxu0 %v3261
    %v3439 = vpop.f32.mrb[0].mxu0
    %v3440 = vadd.f32 0.0, %v3439
    %v3441 = vpop.f32.mrb[0].mxu0
    %v3442 = vadd.f32 0.0, %v3441
    %v3443 = vpop.f32.mrb[0].mxu0
    %v3444 = vadd.f32 0.0, %v3443
    %v3445 = vpop.f32.mrb[0].mxu0
    %v3446 = vadd.f32 0.0, %v3445
    %3447 = vmatprep.mubr.bf16.mxu0 0
    %3448 = vmatmul.mubr.bf16.gmra.mrb[0].mxu0 %v3264
    %v3449 = vpop.f32.mrb[0].mxu0
    %v3450 = vadd.f32 0.0, %v3449
    %v3451 = vpop.f32.mrb[0].mxu0
    %v3452 = vadd.f32 0.0, %v3451
    %v3453 = vpop.f32.mrb[0].mxu0
    %v3454 = vadd.f32 0.0, %v3453
    %v3455 = vpop.f32.mrb[0].mxu0
    %v3456 = vadd.f32 0.0, %v3455
    %3457 = vmatprep.mubr.bf16.mxu0 0
    %3458 = vmatmul.mubr.bf16.gmra.mrb[0].mxu0 %v3267
    %v3459 = vpop.f32.mrb[0].mxu0
    %v3460 = vadd.f32 0.0, %v3459
    %v3461 = vpop.f32.mrb[0].mxu0
    %v3462 = vadd.f32 0.0, %v3461
    %v3463 = vpop.f32.mrb[0].mxu0
    %v3464 = vadd.f32 0.0, %v3463
    %v3465 = vpop.f32.mrb[0].mxu0
    %v3466 = vadd.f32 0.0, %v3465
    %3467 = vdwg.mxu0
    %v3468 = vmax.f32 %v3310, %v3312
    %3469 = vmax.xlane.f32.xlu0 %v3468
    %v3470 = vpop.xlane.xlu0 %3469
    %v3471 = vmax.f32 %v3314, %v3316
    %3472 = vmax.xlane.f32.xlu0 %v3471
    %v3473 = vpop.xlane.xlu0 %3472
    %v3474 = vmax.f32 %v3320, %v3322
    %3475 = vmax.xlane.f32.xlu0 %v3474
    %v3476 = vpop.xlane.xlu0 %3475
    %v3477 = vmax.f32 %v3324, %v3326
    %3478 = vmax.xlane.f32.xlu0 %v3477
    %v3479 = vpop.xlane.xlu0 %3478
    %v3480 = vmax.f32 %v3330, %v3332
    %3481 = vmax.xlane.f32.xlu0 %v3480
    %v3482 = vpop.xlane.xlu0 %3481
    %v3483 = vmax.f32 %v3334, %v3336
    %3484 = vmax.xlane.f32.xlu0 %v3483
    %v3485 = vpop.xlane.xlu0 %3484
    %v3486 = vmax.f32 %v3340, %v3342
    %3487 = vmax.xlane.f32.xlu0 %v3486
    %v3488 = vpop.xlane.xlu0 %3487
    %v3489 = vmax.f32 %v3344, %v3346
    %3490 = vmax.xlane.f32.xlu0 %v3489
    %v3491 = vpop.xlane.xlu0 %3490
    %v3492 = vmax.f32 %v3350, %v3352
    %3493 = vmax.xlane.f32.xlu0 %v3492
    %v3494 = vpop.xlane.xlu0 %3493
    %v3495 = vmax.f32 %v3354, %v3356
    %3496 = vmax.xlane.f32.xlu0 %v3495
    %v3497 = vpop.xlane.xlu0 %3496
    %v3498 = vmax.f32 %v3360, %v3362
    %3499 = vmax.xlane.f32.xlu0 %v3498
    %v3500 = vpop.xlane.xlu0 %3499
    %v3501 = vmax.f32 %v3364, %v3366
    %3502 = vmax.xlane.f32.xlu0 %v3501
    %v3503 = vpop.xlane.xlu0 %3502
    %v3504 = vmax.f32 %v3370, %v3372
    %3505 = vmax.xlane.f32.xlu0 %v3504
    %v3506 = vpop.xlane.xlu0 %3505
    %v3507 = vmax.f32 %v3374, %v3376
    %3508 = vmax.xlane.f32.xlu0 %v3507
    %v3509 = vpop.xlane.xlu0 %3508
    %v3510 = vmax.f32 %v3380, %v3382
    %3511 = vmax.xlane.f32.xlu0 %v3510
    %v3512 = vpop.xlane.xlu0 %3511
    %v3513 = vmax.f32 %v3384, %v3386
    %3514 = vmax.xlane.f32.xlu0 %v3513
    %v3515 = vpop.xlane.xlu0 %3514
    %v3516 = vmax.f32 %v3390, %v3392
    %3517 = vmax.xlane.f32.xlu0 %v3516
    %v3518 = vpop.xlane.xlu0 %3517
    %v3519 = vmax.f32 %v3394, %v3396
    %3520 = vmax.xlane.f32.xlu0 %v3519
    %v3521 = vpop.xlane.xlu0 %3520
    %v3522 = vmax.f32 %v3400, %v3402
    %3523 = vmax.xlane.f32.xlu0 %v3522
    %v3524 = vpop.xlane.xlu0 %3523
    %v3525 = vmax.f32 %v3404, %v3406
    %3526 = vmax.xlane.f32.xlu0 %v3525
    %v3527 = vpop.xlane.xlu0 %3526
    %v3528 = vmax.f32 %v3410, %v3412
    %3529 = vmax.xlane.f32.xlu0 %v3528
    %v3530 = vpop.xlane.xlu0 %3529
    %v3531 = vmax.f32 %v3414, %v3416
    %3532 = vmax.xlane.f32.xlu0 %v3531
    %v3533 = vpop.xlane.xlu0 %3532
    %v3534 = vmax.f32 %v3420, %v3422
    %3535 = vmax.xlane.f32.xlu0 %v3534
    %v3536 = vpop.xlane.xlu0 %3535
    %v3537 = vmax.f32 %v3424, %v3426
    %3538 = vmax.xlane.f32.xlu0 %v3537
    %v3539 = vpop.xlane.xlu0 %3538
    %v3540 = vmax.f32 %v3430, %v3432
    %3541 = vmax.xlane.f32.xlu0 %v3540
    %v3542 = vpop.xlane.xlu0 %3541
    %v3543 = vmax.f32 %v3434, %v3436
    %3544 = vmax.xlane.f32.xlu0 %v3543
    %v3545 = vpop.xlane.xlu0 %3544
    %v3546 = vmax.f32 %v3440, %v3442
    %3547 = vmax.xlane.f32.xlu0 %v3546
    %v3548 = vpop.xlane.xlu0 %3547
    %v3549 = vmax.f32 %v3444, %v3446
    %3550 = vmax.xlane.f32.xlu0 %v3549
    %v3551 = vpop.xlane.xlu0 %3550
    %v3552 = vmax.f32 %v3450, %v3452
    %3553 = vmax.xlane.f32.xlu0 %v3552
    %v3554 = vpop.xlane.xlu0 %3553
    %v3555 = vmax.f32 %v3454, %v3456
    %3556 = vmax.xlane.f32.xlu0 %v3555
    %v3557 = vpop.xlane.xlu0 %3556
    %v3558 = vmax.f32 %v3460, %v3462
    %3559 = vmax.xlane.f32.xlu0 %v3558
    %v3560 = vpop.xlane.xlu0 %3559
    %v3561 = vmax.f32 %v3464, %v3466
    %3562 = vmax.xlane.f32.xlu0 %v3561
    %v3563 = vpop.xlane.xlu0 %3562
    %v3564 = vsub.f32 %v3310, %v3470
    %v3565 = vsub.f32 %v3312, %v3470
    %v3566 = vsub.f32 %v3314, %v3473
    %v3567 = vsub.f32 %v3316, %v3473
    %v3568 = vsub.f32 %v3320, %v3476
    %v3569 = vsub.f32 %v3322, %v3476
    %v3570 = vsub.f32 %v3324, %v3479
    %v3571 = vsub.f32 %v3326, %v3479
    %v3572 = vsub.f32 %v3330, %v3482
    %v3573 = vsub.f32 %v3332, %v3482
    %v3574 = vsub.f32 %v3334, %v3485
    %v3575 = vsub.f32 %v3336, %v3485
    %v3576 = vsub.f32 %v3340, %v3488
    %v3577 = vsub.f32 %v3342, %v3488
    %v3578 = vsub.f32 %v3344, %v3491
    %v3579 = vsub.f32 %v3346, %v3491
    %v3580 = vsub.f32 %v3350, %v3494
    %v3581 = vsub.f32 %v3352, %v3494
    %v3582 = vsub.f32 %v3354, %v3497
    %v3583 = vsub.f32 %v3356, %v3497
    %v3584 = vsub.f32 %v3360, %v3500
    %v3585 = vsub.f32 %v3362, %v3500
    %v3586 = vsub.f32 %v3364, %v3503
    %v3587 = vsub.f32 %v3366, %v3503
    %v3588 = vsub.f32 %v3370, %v3506
    %v3589 = vsub.f32 %v3372, %v3506
    %v3590 = vsub.f32 %v3374, %v3509
    %v3591 = vsub.f32 %v3376, %v3509
    %v3592 = vsub.f32 %v3380, %v3512
    %v3593 = vsub.f32 %v3382, %v3512
    %v3594 = vsub.f32 %v3384, %v3515
    %v3595 = vsub.f32 %v3386, %v3515
    %v3596 = vsub.f32 %v3390, %v3518
    %v3597 = vsub.f32 %v3392, %v3518
    %v3598 = vsub.f32 %v3394, %v3521
    %v3599 = vsub.f32 %v3396, %v3521
    %v3600 = vsub.f32 %v3400, %v3524
    %v3601 = vsub.f32 %v3402, %v3524
    %v3602 = vsub.f32 %v3404, %v3527
    %v3603 = vsub.f32 %v3406, %v3527
    %v3604 = vsub.f32 %v3410, %v3530
    %v3605 = vsub.f32 %v3412, %v3530
    %v3606 = vsub.f32 %v3414, %v3533
    %v3607 = vsub.f32 %v3416, %v3533
    %v3608 = vsub.f32 %v3420, %v3536
    %v3609 = vsub.f32 %v3422, %v3536
    %v3610 = vsub.f32 %v3424, %v3539
    %v3611 = vsub.f32 %v3426, %v3539
    %v3612 = vsub.f32 %v3430, %v3542
    %v3613 = vsub.f32 %v3432, %v3542
    %v3614 = vsub.f32 %v3434, %v3545
    %v3615 = vsub.f32 %v3436, %v3545
    %v3616 = vsub.f32 %v3440, %v3548
    %v3617 = vsub.f32 %v3442, %v3548
    %v3618 = vsub.f32 %v3444, %v3551
    %v3619 = vsub.f32 %v3446, %v3551
    %v3620 = vsub.f32 %v3450, %v3554
    %v3621 = vsub.f32 %v3452, %v3554
    %v3622 = vsub.f32 %v3454, %v3557
    %v3623 = vsub.f32 %v3456, %v3557
    %v3624 = vsub.f32 %v3460, %v3560
    %v3625 = vsub.f32 %v3462, %v3560
    %v3626 = vsub.f32 %v3464, %v3563
    %v3627 = vsub.f32 %v3466, %v3563
    %v3628 = vmul.f32 %v3564, 1.442695
    %v3629 = vpow.pop %v3628
    %v3630 = vmul.f32 %v3565, 1.442695
    %v3631 = vpow.pop %v3630
    %v3632 = vmul.f32 %v3566, 1.442695
    %v3633 = vpow.pop %v3632
    %v3634 = vmul.f32 %v3567, 1.442695
    %v3635 = vpow.pop %v3634
    %v3636 = vmul.f32 %v3568, 1.442695
    %v3637 = vpow.pop %v3636
    %v3638 = vmul.f32 %v3569, 1.442695
    %v3639 = vpow.pop %v3638
    %v3640 = vmul.f32 %v3570, 1.442695
    %v3641 = vpow.pop %v3640
    %v3642 = vmul.f32 %v3571, 1.442695
    %v3643 = vpow.pop %v3642
    %v3644 = vmul.f32 %v3572, 1.442695
    %v3645 = vpow.pop %v3644
    %v3646 = vmul.f32 %v3573, 1.442695
    %v3647 = vpow.pop %v3646
    %v3648 = vmul.f32 %v3574, 1.442695
    %v3649 = vpow.pop %v3648
    %v3650 = vmul.f32 %v3575, 1.442695
    %v3651 = vpow.pop %v3650
    %v3652 = vmul.f32 %v3576, 1.442695
    %v3653 = vpow.pop %v3652
    %v3654 = vmul.f32 %v3577, 1.442695
    %v3655 = vpow.pop %v3654
    %v3656 = vmul.f32 %v3578, 1.442695
    %v3657 = vpow.pop %v3656
    %v3658 = vmul.f32 %v3579, 1.442695
    %v3659 = vpow.pop %v3658
    %v3660 = vmul.f32 %v3580, 1.442695
    %v3661 = vpow.pop %v3660
    %v3662 = vmul.f32 %v3581, 1.442695
    %v3663 = vpow.pop %v3662
    %v3664 = vmul.f32 %v3582, 1.442695
    %v3665 = vpow.pop %v3664
    %v3666 = vmul.f32 %v3583, 1.442695
    %v3667 = vpow.pop %v3666
    %v3668 = vmul.f32 %v3584, 1.442695
    %v3669 = vpow.pop %v3668
    %v3670 = vmul.f32 %v3585, 1.442695
    %v3671 = vpow.pop %v3670
    %v3672 = vmul.f32 %v3586, 1.442695
    %v3673 = vpow.pop %v3672
    %v3674 = vmul.f32 %v3587, 1.442695
    %v3675 = vpow.pop %v3674
    %v3676 = vmul.f32 %v3588, 1.442695
    %v3677 = vpow.pop %v3676
    %v3678 = vmul.f32 %v3589, 1.442695
    %v3679 = vpow.pop %v3678
    %v3680 = vmul.f32 %v3590, 1.442695
    %v3681 = vpow.pop %v3680
    %v3682 = vmul.f32 %v3591, 1.442695
    %v3683 = vpow.pop %v3682
    %v3684 = vmul.f32 %v3592, 1.442695
    %v3685 = vpow.pop %v3684
    %v3686 = vmul.f32 %v3593, 1.442695
    %v3687 = vpow.pop %v3686
    %v3688 = vmul.f32 %v3594, 1.442695
    %v3689 = vpow.pop %v3688
    %v3690 = vmul.f32 %v3595, 1.442695
    %v3691 = vpow.pop %v3690
    %v3692 = vmul.f32 %v3596, 1.442695
    %v3693 = vpow.pop %v3692
    %v3694 = vmul.f32 %v3597, 1.442695
    %v3695 = vpow.pop %v3694
    %v3696 = vmul.f32 %v3598, 1.442695
    %v3697 = vpow.pop %v3696
    %v3698 = vmul.f32 %v3599, 1.442695
    %v3699 = vpow.pop %v3698
    %v3700 = vmul.f32 %v3600, 1.442695
    %v3701 = vpow.pop %v3700
    %v3702 = vmul.f32 %v3601, 1.442695
    %v3703 = vpow.pop %v3702
    %v3704 = vmul.f32 %v3602, 1.442695
    %v3705 = vpow.pop %v3704
    %v3706 = vmul.f32 %v3603, 1.442695
    %v3707 = vpow.pop %v3706
    %v3708 = vmul.f32 %v3604, 1.442695
    %v3709 = vpow.pop %v3708
    %v3710 = vmul.f32 %v3605, 1.442695
    %v3711 = vpow.pop %v3710
    %v3712 = vmul.f32 %v3606, 1.442695
    %v3713 = vpow.pop %v3712
    %v3714 = vmul.f32 %v3607, 1.442695
    %v3715 = vpow.pop %v3714
    %v3716 = vmul.f32 %v3608, 1.442695
    %v3717 = vpow.pop %v3716
    %v3718 = vmul.f32 %v3609, 1.442695
    %v3719 = vpow.pop %v3718
    %v3720 = vmul.f32 %v3610, 1.442695
    %v3721 = vpow.pop %v3720
    %v3722 = vmul.f32 %v3611, 1.442695
    %v3723 = vpow.pop %v3722
    %v3724 = vmul.f32 %v3612, 1.442695
    %v3725 = vpow.pop %v3724
    %v3726 = vmul.f32 %v3613, 1.442695
    %v3727 = vpow.pop %v3726
    %v3728 = vmul.f32 %v3614, 1.442695
    %v3729 = vpow.pop %v3728
    %v3730 = vmul.f32 %v3615, 1.442695
    %v3731 = vpow.pop %v3730
    %v3732 = vmul.f32 %v3616, 1.442695
    %v3733 = vpow.pop %v3732
    %v3734 = vmul.f32 %v3617, 1.442695
    %v3735 = vpow.pop %v3734
    %v3736 = vmul.f32 %v3618, 1.442695
    %v3737 = vpow.pop %v3736
    %v3738 = vmul.f32 %v3619, 1.442695
    %v3739 = vpow.pop %v3738
    %v3740 = vmul.f32 %v3620, 1.442695
    %v3741 = vpow.pop %v3740
    %v3742 = vmul.f32 %v3621, 1.442695
    %v3743 = vpow.pop %v3742
    %v3744 = vmul.f32 %v3622, 1.442695
    %v3745 = vpow.pop %v3744
    %v3746 = vmul.f32 %v3623, 1.442695
    %v3747 = vpow.pop %v3746
    %v3748 = vmul.f32 %v3624, 1.442695
    %v3749 = vpow.pop %v3748
    %v3750 = vmul.f32 %v3625, 1.442695
    %v3751 = vpow.pop %v3750
    %v3752 = vmul.f32 %v3626, 1.442695
    %v3753 = vpow.pop %v3752
    %v3754 = vmul.f32 %v3627, 1.442695
    %v3755 = vpow.pop %v3754
    %v3756 = vpack.c.bf16 %v3633, %v3629
    %v3757 = vpack.c.bf16 %v3635, %v3631
    %v3758 = vpack.c.bf16 %v3641, %v3637
    %v3759 = vpack.c.bf16 %v3643, %v3639
    %v3760 = vpack.c.bf16 %v3649, %v3645
    %v3761 = vpack.c.bf16 %v3651, %v3647
    %v3762 = vpack.c.bf16 %v3657, %v3653
    %v3763 = vpack.c.bf16 %v3659, %v3655
    %v3764 = vpack.c.bf16 %v3665, %v3661
    %v3765 = vpack.c.bf16 %v3667, %v3663
    %v3766 = vpack.c.bf16 %v3673, %v3669
    %v3767 = vpack.c.bf16 %v3675, %v3671
    %v3768 = vpack.c.bf16 %v3681, %v3677
    %v3769 = vpack.c.bf16 %v3683, %v3679
    %v3770 = vpack.c.bf16 %v3689, %v3685
    %v3771 = vpack.c.bf16 %v3691, %v3687
    %v3772 = vpack.c.bf16 %v3697, %v3693
    %v3773 = vpack.c.bf16 %v3699, %v3695
    %v3774 = vpack.c.bf16 %v3705, %v3701
    %v3775 = vpack.c.bf16 %v3707, %v3703
    %v3776 = vpack.c.bf16 %v3713, %v3709
    %v3777 = vpack.c.bf16 %v3715, %v3711
    %v3778 = vpack.c.bf16 %v3721, %v3717
    %v3779 = vpack.c.bf16 %v3723, %v3719
    %v3780 = vpack.c.bf16 %v3729, %v3725
    %v3781 = vpack.c.bf16 %v3731, %v3727
    %v3782 = vpack.c.bf16 %v3737, %v3733
    %v3783 = vpack.c.bf16 %v3739, %v3735
    %v3784 = vpack.c.bf16 %v3745, %v3741
    %v3785 = vpack.c.bf16 %v3747, %v3743
    %v3786 = vpack.c.bf16 %v3753, %v3749
    %v3787 = vpack.c.bf16 %v3755, %v3751
    %v3788 = vrot.slane %v2308, 4
    %v3789 = vrot.slane %v2309, 4
    %v3792 = vsel %vm200, %v3788, 1.0
    %v3793 = vsel %vm200, %v3789, 1.0
    %v3794 = vpack.c.bf16 %v3792, %v3792
    %v3795 = vpack.c.bf16 %v3793, %v3793
    %3796 = vmatprep.subr.bf16.mxu0 %v3757
    %3797 = vmatpush1.bf16.xpose.msra.mxu0 %v3756
    %3798 = vmatprep.subr.bf16.mxu0 %v3759
    %3799 = vmatpush1.bf16.xpose.msra.mxu0 %v3758
    %3800 = vmatprep.subr.bf16.mxu0 %v3761
    %3801 = vmatpush1.bf16.xpose.msra.mxu0 %v3760
    %3802 = vmatprep.subr.bf16.mxu0 %v3763
    %3803 = vmatpush1.bf16.xpose.msra.mxu0 %v3762
    %3804 = vmatprep.subr.bf16.mxu0 %v3765
    %3805 = vmatpush1.bf16.xpose.msra.mxu0 %v3764
    %3806 = vmatprep.subr.bf16.mxu0 %v3767
    %3807 = vmatpush1.bf16.xpose.msra.mxu0 %v3766
    %3808 = vmatprep.subr.bf16.mxu0 %v3769
    %3809 = vmatpush1.bf16.xpose.msra.mxu0 %v3768
    %3810 = vmatprep.subr.bf16.mxu0 %v3771
    %3811 = vmatpush1.bf16.xpose.msra.mxu0 %v3770
    %3812 = vmatprep.subr.bf16.mxu0 %v3773
    %3813 = vmatpush1.bf16.xpose.msra.mxu0 %v3772
    %3814 = vmatprep.subr.bf16.mxu0 %v3775
    %3815 = vmatpush1.bf16.xpose.msra.mxu0 %v3774
    %3816 = vmatprep.subr.bf16.mxu0 %v3777
    %3817 = vmatpush1.bf16.xpose.msra.mxu0 %v3776
    %3818 = vmatprep.subr.bf16.mxu0 %v3779
    %3819 = vmatpush1.bf16.xpose.msra.mxu0 %v3778
    %3820 = vmatprep.subr.bf16.mxu0 %v3781
    %3821 = vmatpush1.bf16.xpose.msra.mxu0 %v3780
    %3822 = vmatprep.subr.bf16.mxu0 %v3783
    %3823 = vmatpush1.bf16.xpose.msra.mxu0 %v3782
    %3824 = vmatprep.subr.bf16.mxu0 %v3785
    %3825 = vmatpush1.bf16.xpose.msra.mxu0 %v3784
    %3826 = vmatprep.subr.bf16.mxu0 %v3787
    %3827 = vmatpush1.bf16.xpose.msra.mxu0 %v3786
    %3828 = vmatprep.mubr.bf16.mxu0 %v3795
    %3829 = vmatmul.mubr.bf16.gmra.mrb[0].mxu0 %v3794
    %v3830 = vpop.f32.mrb[0].mxu0
    %v3831 = vadd.f32 0.0, %v3830
    %v3832 = vpop.f32.mrb[0].mxu0
    %v3833 = vadd.f32 0.0, %v3832
    %v3834 = vpop.f32.mrb[0].mxu0
    %v3835 = vpop.f32.mrb[0].mxu0
    %3836 = vdwg.mxu0
    %v3837 = vlaneseq
    %v3838 = vshrl.u32 %v3837, 7
    %v3839 = vsub.s32 4, %v3838
    %v3840 = vrot.slane %v3831, %v3839
    %v3841 = vlaneseq
    %v3842 = vshrl.u32 %v3841, 7
    %v3843 = vsub.s32 4, %v3842
    %v3844 = vrot.slane %v3833, %v3843
    %v3845 = vrcp.pop %v3840
    %v3846 = vmul.f32 %v3831, %v3845
    %v3847 = vrcp.pop %v3844
    %v3848 = vmul.f32 %v3833, %v3847
    %v3850 = vsel %vm200, %v3846, 0
    %v3853 = vsel %vm200, %v3848, 0
    %3855 = vmatprep.subr.mxu0 %v3853
    %3856 = vmatpush1.msra.mxu0 %v3850
    %3857 = vmatprep.subr.mxu0 0.0
    %3858 = vmatpush1.msra.mxu0 0.0
    %3859 = vmatprep.subr.mxu0 0.0
    %3860 = vmatpush1.msra.mxu0 0.0
    %3861 = vmatprep.subr.mxu0 0.0
    %3862 = vmatpush1.msra.mxu0 0.0
    %3863 = vmatprep.subr.mxu0 0.0
    %3864 = vmatpush1.msra.mxu0 0.0
    %3865 = vmatprep.subr.mxu0 0.0
    %3866 = vmatpush1.msra.mxu0 0.0
    %3867 = vmatprep.subr.mxu0 0.0
    %3868 = vmatpush1.msra.mxu0 0.0
    %3869 = vmatprep.subr.mxu0 0.0
    %3870 = vmatpush1.msra.mxu0 0.0
    %3871 = vmatprep.subr.mxu0 0.0
    %3872 = vmatpush1.msra.mxu0 0.0
    %3873 = vmatprep.subr.mxu0 0.0
    %3874 = vmatpush1.msra.mxu0 0.0
    %3875 = vmatprep.subr.mxu0 0.0
    %3876 = vmatpush1.msra.mxu0 0.0
    %3877 = vmatprep.subr.mxu0 0.0
    %3878 = vmatpush1.msra.mxu0 0.0
    %3879 = vmatprep.subr.mxu0 0.0
    %3880 = vmatpush1.msra.mxu0 0.0
    %3881 = vmatprep.subr.mxu0 0.0
    %3882 = vmatpush1.msra.mxu0 0.0
    %3883 = vmatprep.subr.mxu0 0.0
    %3884 = vmatpush1.msra.mxu0 0.0
    %3885 = vmatprep.subr.mxu0 0.0
    %3886 = vmatpush1.msra.mxu0 0.0
    %3887 = vmatprep.subr.mxu0 0.0
    %3888 = vmatpush1.msra.mxu0 0.0
    %3889 = vmatprep.subr.mxu0 0.0
    %3890 = vmatpush1.msra.mxu0 0.0
    %3891 = vmatprep.subr.mxu0 0.0
    %3892 = vmatpush1.msra.mxu0 0.0
    %3893 = vmatprep.subr.mxu0 0.0
    %3894 = vmatpush1.msra.mxu0 0.0
    %3895 = vmatprep.subr.mxu0 0.0
    %3896 = vmatpush1.msra.mxu0 0.0
    %3897 = vmatprep.subr.mxu0 0.0
    %3898 = vmatpush1.msra.mxu0 0.0
    %3899 = vmatprep.subr.mxu0 0.0
    %3900 = vmatpush1.msra.mxu0 0.0
    %3901 = vmatprep.subr.mxu0 0.0
    %3902 = vmatpush1.msra.mxu0 0.0
    %3903 = vmatprep.subr.mxu0 0.0
    %3904 = vmatpush1.msra.mxu0 0.0
    %3905 = vmatprep.subr.mxu0 0.0
    %3906 = vmatpush1.msra.mxu0 0.0
    %3907 = vmatprep.subr.mxu0 0.0
    %3908 = vmatpush1.msra.mxu0 0.0
    %3909 = vmatprep.subr.mxu0 0.0
    %3910 = vmatpush1.msra.mxu0 0.0
    %3911 = vmatprep.subr.mxu0 0.0
    %3912 = vmatpush1.msra.mxu0 0.0
    %3913 = vmatprep.subr.mxu0 0.0
    %3914 = vmatpush1.msra.mxu0 0.0
    %3915 = vmatprep.subr.mxu0 0.0
    %3916 = vmatpush1.msra.mxu0 0.0
    %3917 = vmatprep.subr.mxu0 0.0
    %3918 = vmatpush1.msra.mxu0 0.0
    %3919 = vmatprep.mubr.f32.mxu0 0.0
    %3920 = vmatmul.mubr.f32.gmra.mrb[0].mxu0 %v1801
    %v3921 = vpop.f32.mrb[0].mxu0
    %v3922 = vadd.f32 0.0, %v3921
    %v3923 = vpop.f32.mrb[0].mxu0
    %v3924 = vadd.f32 0.0, %v3923
    %3925 = vmatprep.mubr.f32.mxu0 0.0
    %3926 = vmatmul.mubr.f32.gmra.mrb[0].mxu0 %v1804
    %v3927 = vpop.f32.mrb[0].mxu0
    %v3928 = vadd.f32 0.0, %v3927
    %v3929 = vpop.f32.mrb[0].mxu0
    %v3930 = vadd.f32 0.0, %v3929
    %3931 = vmatprep.mubr.f32.mxu0 0.0
    %3932 = vmatmul.mubr.f32.gmra.mrb[0].mxu0 %v1807
    %v3933 = vpop.f32.mrb[0].mxu0
    %v3934 = vadd.f32 0.0, %v3933
    %v3935 = vpop.f32.mrb[0].mxu0
    %v3936 = vadd.f32 0.0, %v3935
    %3937 = vmatprep.mubr.f32.mxu0 0.0
    %3938 = vmatmul.mubr.f32.gmra.mrb[0].mxu0 %v1810
    %v3939 = vpop.f32.mrb[0].mxu0
    %v3940 = vadd.f32 0.0, %v3939
    %v3941 = vpop.f32.mrb[0].mxu0
    %v3942 = vadd.f32 0.0, %v3941
    %3943 = vdwg.mxu0
    %v3944 = vmul.f32 %v3922, 0.999995
    %v3945 = vmul.f32 %v3924, 0.999995
    %v3946 = vmul.f32 %v3928, 0.999995
    %v3947 = vmul.f32 %v3930, 0.999995
    %v3948 = vmul.f32 %v3934, 0.999995
    %v3949 = vmul.f32 %v3936, 0.999995
    %v3950 = vmul.f32 %v3940, 0.999995
    %v3951 = vmul.f32 %v3942, 0.999995
    %v3952 = vmax.f32 %v3944, 0.0
    %v3953 = vmax.f32 %v3945, 0.0
    %v3954 = vmax.f32 %v3946, 0.0
    %v3955 = vmax.f32 %v3947, 0.0
    %v3956 = vmax.f32 %v3948, 0.0
    %v3957 = vmax.f32 %v3949, 0.0
    %v3958 = vmax.f32 %v3950, 0.0
    %v3959 = vmax.f32 %v3951, 0.0
    %s3960 = scalar_lea.vmem %s1, 32
    %v3961 = vld [vmem:[%s3960] sm:$0xff]
    %v3962 = vld [vmem:[%s3960 + $0x8] sm:$0xff]
    %v3963 = vld [vmem:[%s3960 + $0x10] sm:$0xff]
    %v3964 = vld [vmem:[%s3960 + $0x18] sm:$0xff]
    %s3965 = scalar_lea.vmem %s2, 1
    %v3966 = vld [vmem:[%s3965] sm:$0x1]
    %3968 = vset.pattern.permute.xlu0 1
    %3969 = vperm.xlu0 %3968, %v3961
    %v3970 = vpop.permute.xlu0 %3969
    %3973 = vset.pattern.permute.xlu0 1
    %3974 = vperm.xlu0 %3973, %v3962
    %v3975 = vpop.permute.xlu0 %3974
    %3978 = vset.pattern.permute.xlu0 1
    %3979 = vperm.xlu0 %3978, %v3963
    %v3980 = vpop.permute.xlu0 %3979
    %3983 = vset.pattern.permute.xlu0 1
    %3984 = vperm.xlu0 %3983, %v3964
    %v3985 = vpop.permute.xlu0 %3984
    %v3988 = vlaneseq
    %v3989 = vshrl.u32 %v3988, 7
    %v3990 = vsub.s32 0, %v3989
    %v3991 = vrot.slane %v3966, %v3990
    %v3993 = vmul.f32 %v3970, %v3991
    %v3994 = vmul.f32 %v3975, %v3991
    %v3995 = vmul.f32 %v3980, %v3991
    %v3996 = vmul.f32 %v3985, %v3991
    %v3997 = vsel %vm78, %v3993, -inf
    %3998 = vmax.xlane.f32.xlu0 %v3997
    %v3999 = vpop.xlane.xlu0 %3998
    %v4000 = vsel %vm78, %v3994, -inf
    %4001 = vmax.xlane.f32.xlu0 %v4000
    %v4002 = vpop.xlane.xlu0 %4001
    %v4003 = vsel %vm78, %v3995, -inf
    %4004 = vmax.xlane.f32.xlu0 %v4003
    %v4005 = vpop.xlane.xlu0 %4004
    %v4006 = vsel %vm78, %v3996, -inf
    %4007 = vmax.xlane.f32.xlu0 %v4006
    %v4008 = vpop.xlane.xlu0 %4007
    %v4009 = vsub.f32 %v3993, %v3999
    %v4010 = vsub.f32 %v3994, %v4002
    %v4011 = vsub.f32 %v3995, %v4005
    %v4012 = vsub.f32 %v3996, %v4008
    %v4013 = vmul.f32 %v4009, 1.442695
    %v4014 = vpow.pop %v4013
    %v4015 = vmul.f32 %v4010, 1.442695
    %v4016 = vpow.pop %v4015
    %v4017 = vmul.f32 %v4011, 1.442695
    %v4018 = vpow.pop %v4017
    %v4019 = vmul.f32 %v4012, 1.442695
    %v4020 = vpow.pop %v4019
    %v4021 = vsel %vm78, %v4014, 0.0
    %4022 = vadd.xlane.f32.xlu0 %v4021
    %v4023 = vpop.xlane.xlu0 %4022
    %v4024 = vsel %vm78, %v4016, 0.0
    %4025 = vadd.xlane.f32.xlu0 %v4024
    %v4026 = vpop.xlane.xlu0 %4025
    %v4027 = vsel %vm78, %v4018, 0.0
    %4028 = vadd.xlane.f32.xlu0 %v4027
    %v4029 = vpop.xlane.xlu0 %4028
    %v4030 = vsel %vm78, %v4020, 0.0
    %4031 = vadd.xlane.f32.xlu0 %v4030
    %v4032 = vpop.xlane.xlu0 %4031
    %v4033 = vrcp.pop %v4023
    %v4034 = vmul.f32 %v4014, %v4033
    %v4035 = vrcp.pop %v4026
    %v4036 = vmul.f32 %v4016, %v4035
    %v4037 = vrcp.pop %v4029
    %v4038 = vmul.f32 %v4018, %v4037
    %v4039 = vrcp.pop %v4032
    %v4040 = vmul.f32 %v4020, %v4039
    %v4042 = vsel %vm78, %v4034, 0
    %v4045 = vsel %vm78, %v4036, 0
    %v4048 = vsel %vm78, %v4038, 0
    %v4051 = vsel %vm78, %v4040, 0
    %4053 = vmatprep.subr.mxu0 %v2228
    %4054 = vmatpush1.msra.mxu0 %v2227
    %4055 = vmatprep.subr.mxu0 %v2230
    %4056 = vmatpush1.msra.mxu0 %v2229
    %4057 = vmatprep.subr.mxu0 %v2232
    %4058 = vmatpush1.msra.mxu0 %v2231
    %4059 = vmatprep.subr.mxu0 %v2234
    %4060 = vmatpush1.msra.mxu0 %v2233
    %4061 = vmatprep.subr.mxu0 0.0
    %4062 = vmatpush1.msra.mxu0 0.0
    %4063 = vmatprep.subr.mxu0 0.0
    %4064 = vmatpush1.msra.mxu0 0.0
    %4065 = vmatprep.subr.mxu0 0.0
    %4066 = vmatpush1.msra.mxu0 0.0
    %4067 = vmatprep.subr.mxu0 0.0
    %4068 = vmatpush1.msra.mxu0 0.0
    %4069 = vmatprep.subr.mxu0 0.0
    %4070 = vmatpush1.msra.mxu0 0.0
    %4071 = vmatprep.subr.mxu0 0.0
    %4072 = vmatpush1.msra.mxu0 0.0
    %4073 = vmatprep.subr.mxu0 0.0
    %4074 = vmatpush1.msra.mxu0 0.0
    %4075 = vmatprep.subr.mxu0 0.0
    %4076 = vmatpush1.msra.mxu0 0.0
    %4077 = vmatprep.subr.mxu0 0.0
    %4078 = vmatpush1.msra.mxu0 0.0
    %4079 = vmatprep.subr.mxu0 0.0
    %4080 = vmatpush1.msra.mxu0 0.0
    %4081 = vmatprep.subr.mxu0 0.0
    %4082 = vmatpush1.msra.mxu0 0.0
    %4083 = vmatprep.subr.mxu0 0.0
    %4084 = vmatpush1.msra.mxu0 0.0
    %4085 = vmatprep.subr.mxu0 0.0
    %4086 = vmatpush1.msra.mxu0 0.0
    %4087 = vmatprep.subr.mxu0 0.0
    %4088 = vmatpush1.msra.mxu0 0.0
    %4089 = vmatprep.subr.mxu0 0.0
    %4090 = vmatpush1.msra.mxu0 0.0
    %4091 = vmatprep.subr.mxu0 0.0
    %4092 = vmatpush1.msra.mxu0 0.0
    %4093 = vmatprep.subr.mxu0 0.0
    %4094 = vmatpush1.msra.mxu0 0.0
    %4095 = vmatprep.subr.mxu0 0.0
    %4096 = vmatpush1.msra.mxu0 0.0
    %4097 = vmatprep.subr.mxu0 0.0
    %4098 = vmatpush1.msra.mxu0 0.0
    %4099 = vmatprep.subr.mxu0 0.0
    %4100 = vmatpush1.msra.mxu0 0.0
    %4101 = vmatprep.subr.mxu0 0.0
    %4102 = vmatpush1.msra.mxu0 0.0
    %4103 = vmatprep.subr.mxu0 0.0
    %4104 = vmatpush1.msra.mxu0 0.0
    %4105 = vmatprep.subr.mxu0 0.0
    %4106 = vmatpush1.msra.mxu0 0.0
    %4107 = vmatprep.subr.mxu0 0.0
    %4108 = vmatpush1.msra.mxu0 0.0
    %4109 = vmatprep.subr.mxu0 0.0
    %4110 = vmatpush1.msra.mxu0 0.0
    %4111 = vmatprep.subr.mxu0 0.0
    %4112 = vmatpush1.msra.mxu0 0.0
    %4113 = vmatprep.subr.mxu0 0.0
    %4114 = vmatpush1.msra.mxu0 0.0
    %4115 = vmatprep.subr.mxu0 0.0
    %4116 = vmatpush1.msra.mxu0 0.0
    %4117 = vmatprep.mubr.f32.mxu0 0.0
    %4118 = vmatmul.mubr.f32.gmra.mrb[0].mxu0 %v4042
    %v4119 = vpop.f32.mrb[0].mxu0
    %v4120 = vadd.f32 0.0, %v4119
    %v4121 = vpop.f32.mrb[0].mxu0
    %v4122 = vadd.f32 0.0, %v4121
    %4123 = vmatprep.mubr.f32.mxu0 0.0
    %4124 = vmatmul.mubr.f32.gmra.mrb[0].mxu0 %v4045
    %v4125 = vpop.f32.mrb[0].mxu0
    %v4126 = vadd.f32 0.0, %v4125
    %v4127 = vpop.f32.mrb[0].mxu0
    %v4128 = vadd.f32 0.0, %v4127
    %4129 = vmatprep.mubr.f32.mxu0 0.0
    %4130 = vmatmul.mubr.f32.gmra.mrb[0].mxu0 %v4048
    %v4131 = vpop.f32.mrb[0].mxu0
    %v4132 = vadd.f32 0.0, %v4131
    %v4133 = vpop.f32.mrb[0].mxu0
    %v4134 = vadd.f32 0.0, %v4133
    %4135 = vmatprep.mubr.f32.mxu0 0.0
    %4136 = vmatmul.mubr.f32.gmra.mrb[0].mxu0 %v4051
    %v4137 = vpop.f32.mrb[0].mxu0
    %v4138 = vadd.f32 0.0, %v4137
    %v4139 = vpop.f32.mrb[0].mxu0
    %v4140 = vadd.f32 0.0, %v4139
    %4141 = vdwg.mxu0
    %4142 = vset.pattern.permute.xlu0 0
    %4143 = vperm.xlu0 %4142, %v3961
    %v4144 = vpop.permute.xlu0 %4143
    %4146 = vset.pattern.permute.xlu0 0
    %4147 = vperm.xlu0 %4146, %v3962
    %v4148 = vpop.permute.xlu0 %4147
    %4150 = vset.pattern.permute.xlu0 0
    %4151 = vperm.xlu0 %4150, %v3963
    %v4152 = vpop.permute.xlu0 %4151
    %4154 = vset.pattern.permute.xlu0 0
    %4155 = vperm.xlu0 %4154, %v3964
    %v4156 = vpop.permute.xlu0 %4155
    %v4158 = vmul.f32 %v4144, %v2227
    %v4159 = vmul.f32 %v4144, %v2228
    %v4160 = vmul.f32 %v4148, %v2229
    %v4161 = vmul.f32 %v4148, %v2230
    %v4162 = vmul.f32 %v4152, %v2231
    %v4163 = vmul.f32 %v4152, %v2232
    %v4164 = vmul.f32 %v4156, %v2233
    %v4165 = vmul.f32 %v4156, %v2234
    %v4166 = vadd.f32 %v4158, %v2227
    %v4167 = vadd.f32 %v4159, %v2228
    %v4168 = vadd.f32 %v4160, %v2229
    %v4169 = vadd.f32 %v4161, %v2230
    %v4170 = vadd.f32 %v4162, %v2231
    %v4171 = vadd.f32 %v4163, %v2232
    %v4172 = vadd.f32 %v4164, %v2233
    %v4173 = vadd.f32 %v4165, %v2234
    %v4174 = vmul.f32 %v3179, %v4166
    %v4175 = vmul.f32 %v3180, %v4167
    %v4176 = vmul.f32 %v3179, %v4168
    %v4177 = vmul.f32 %v3180, %v4169
    %v4178 = vmul.f32 %v3179, %v4170
    %v4179 = vmul.f32 %v3180, %v4171
    %v4180 = vmul.f32 %v3179, %v4172
    %v4181 = vmul.f32 %v3180, %v4173
    %v4182 = vadd.f32 %v4174, %v4166
    %v4183 = vadd.f32 %v4175, %v4167
    %v4184 = vadd.f32 %v4176, %v4168
    %v4185 = vadd.f32 %v4177, %v4169
    %v4186 = vadd.f32 %v4178, %v4170
    %v4187 = vadd.f32 %v4179, %v4171
    %v4188 = vadd.f32 %v4180, %v4172
    %v4189 = vadd.f32 %v4181, %v4173
    %v4190 = vmul.f32 %v4120, %v2227
    %v4191 = vmul.f32 %v4122, %v2228
    %v4192 = vmul.f32 %v4126, %v2229
    %v4193 = vmul.f32 %v4128, %v2230
    %v4194 = vmul.f32 %v4132, %v2231
    %v4195 = vmul.f32 %v4134, %v2232
    %v4196 = vmul.f32 %v4138, %v2233
    %v4197 = vmul.f32 %v4140, %v2234
    %v4198 = vmul.f32 %v3952, %v4190
    %v4199 = vmul.f32 %v3953, %v4191
    %v4200 = vmul.f32 %v3954, %v4192
    %v4201 = vmul.f32 %v3955, %v4193
    %v4202 = vmul.f32 %v3956, %v4194
    %v4203 = vmul.f32 %v3957, %v4195
    %v4204 = vmul.f32 %v3958, %v4196
    %v4205 = vmul.f32 %v3959, %v4197
    %v4206 = vadd.f32 %v4198, %v4190
    %v4207 = vadd.f32 %v4199, %v4191
    %v4208 = vadd.f32 %v4200, %v4192
    %v4209 = vadd.f32 %v4201, %v4193
    %v4210 = vadd.f32 %v4202, %v4194
    %v4211 = vadd.f32 %v4203, %v4195
    %v4212 = vadd.f32 %v4204, %v4196
    %v4213 = vadd.f32 %v4205, %v4197
    %v4214 = vmul.f32 %v2175, %v2227
    %v4215 = vmul.f32 %v2175, %v2228
    %v4216 = vmul.f32 %v2175, %v2229
    %v4217 = vmul.f32 %v2175, %v2230
    %v4218 = vmul.f32 %v2175, %v2231
    %v4219 = vmul.f32 %v2175, %v2232
    %v4220 = vmul.f32 %v2175, %v2233
    %v4221 = vmul.f32 %v2175, %v2234
    %v4222 = vmul.f32 %v2184, %v4182
    %v4223 = vmul.f32 %v2184, %v4183
    %v4224 = vmul.f32 %v2184, %v4184
    %v4225 = vmul.f32 %v2184, %v4185
    %v4226 = vmul.f32 %v2184, %v4186
    %v4227 = vmul.f32 %v2184, %v4187
    %v4228 = vmul.f32 %v2184, %v4188
    %v4229 = vmul.f32 %v2184, %v4189
    %v4230 = vadd.f32 %v4214, %v4222
    %v4231 = vadd.f32 %v4215, %v4223
    %v4232 = vadd.f32 %v4216, %v4224
    %v4233 = vadd.f32 %v4217, %v4225
    %v4234 = vadd.f32 %v4218, %v4226
    %v4235 = vadd.f32 %v4219, %v4227
    %v4236 = vadd.f32 %v4220, %v4228
    %v4237 = vadd.f32 %v4221, %v4229
    %v4238 = vmul.f32 %v2201, %v4206
    %v4239 = vmul.f32 %v2201, %v4207
    %v4240 = vmul.f32 %v2201, %v4208
    %v4241 = vmul.f32 %v2201, %v4209
    %v4242 = vmul.f32 %v2201, %v4210
    %v4243 = vmul.f32 %v2201, %v4211
    %v4244 = vmul.f32 %v2201, %v4212
    %v4245 = vmul.f32 %v2201, %v4213
    %v4246 = vadd.f32 %v4230, %v4238
    %v4247 = vadd.f32 %v4231, %v4239
    %v4248 = vadd.f32 %v4232, %v4240
    %v4249 = vadd.f32 %v4233, %v4241
    %v4250 = vadd.f32 %v4234, %v4242
    %v4251 = vadd.f32 %v4235, %v4243
    %v4252 = vadd.f32 %v4236, %v4244
    %v4253 = vadd.f32 %v4237, %v4245
    %s4254 = scalar_lea.vmem %s9, 64
    %4255 = vst [vmem:[%s4254] sm:$0xff] %v4246
    %4256 = vst [vmem:[%s4254 + $0x8] sm:$0xff] %v4247
    %4257 = vst [vmem:[%s4254 + $0x10] sm:$0xff] %v4248
    %4258 = vst [vmem:[%s4254 + $0x18] sm:$0xff] %v4249
    %4259 = vst [vmem:[%s4254 + $0x20] sm:$0xff] %v4250
    %4260 = vst [vmem:[%s4254 + $0x28] sm:$0xff] %v4251
    %4261 = vst [vmem:[%s4254 + $0x30] sm:$0xff] %v4252
    %4262 = vst [vmem:[%s4254 + $0x38] sm:$0xff] %v4253
    // Predicated region
    $region42: #{gla_forward.1} parent=1 // pred_check
      _
    $region43: #{gla_forward.1} parent=1 // pred_check_branch
      %4264 = sbr.rel (0) target = $region45
    $region44: #{gla_forward.1} parent=1 // pred_region
      _
    $region45: #{gla_forward.1} parent=1 // pred_fallthru
      _
    // Predicated region
    $region46: #{gla_forward.1} parent=1 // pred_check
      _
    $region47: #{gla_forward.1} parent=1 // pred_check_branch
      %4266 = sbr.rel (0) target = $region49
    $region48: #{gla_forward.1} parent=1 // pred_region
      _
    $region49: #{gla_forward.1} parent=1 // pred_fallthru
      _
    %4267 = vsyncpa [#allocation3], 1

</llo_original>
